<compile_context>
chip_gen: v6e
topology: v6e:2x2x1
jax: 0.10.0
libtpu: 0.0.40
codegen_flags: <defaults>
</compile_context>

<pallas_src>
from functools import partial
from typing import NamedTuple, Tuple

import jax
import jax.numpy as jnp
import numpy as np
from jax import lax
from jax.experimental import pallas as pl
from jax.experimental.pallas import tpu as pltpu


# ----------------------------------------------------------------------------
# Static packing metadata (hashable -> usable as a jit static arg)
# ----------------------------------------------------------------------------
class _Dims(NamedTuple):
    L: int          # num LSTM layers
    H: int          # hidden dim
    A: int          # additional_dim
    F1: int         # head hidden width (64)
    out_dim: int
    Dp2: int        # padded 2*input_dim (layer-0 paired input rows)
    Ap: int         # padded additional_dim
    Fp: int         # padded head width (lane tile)
    off_hh: Tuple[int, ...]
    off_A: Tuple[int, ...]
    off_B: Tuple[int, ...]
    off_w1h: int
    off_w1a: int
    off_w2: int


def _round_up(n, m):
    return ((n + m - 1) // m) * m


def _interleave_gate_cols(w, H, direction):
    """(k, 4H) gate-major [i|f|g|o] -> (k, 8H) per-gate-contiguous
    [i_f i_b | f_f f_b | g_f g_b | o_f o_b]; `direction` 0=fwd cols, 1=bwd cols."""
    w = np.asarray(w, np.float32)
    out = np.zeros((w.shape[0], 8 * H), np.float32)
    for g in range(4):
        out[:, (2 * g + direction) * H:(2 * g + direction + 1) * H] = \
            w[:, g * H:(g + 1) * H]
    return out


# ----------------------------------------------------------------------------
# One-time host-side weight packing (OUTSIDE jit -> never re-runs per call)
# ----------------------------------------------------------------------------
def pack_params(params):
    lstm = params["lstm"]
    L = len(lstm)
    H = lstm[0]["w_hh_f"].shape[0]
    D = lstm[0]["w_ih_f"].shape[0]
    assert H % 16 == 0, "hidden_dim must be a multiple of 16 for this packing"
    w1 = np.asarray(params["w1"], np.float32)
    w2 = np.asarray(params["w2"], np.float32)
    b1 = np.asarray(params["b1"], np.float32)
    b2 = np.asarray(params["b2"], np.float32)
    F1 = w1.shape[1]
    A = w1.shape[0] - 2 * H
    out_dim = w2.shape[1]
    G = 8 * H
    Dp2 = _round_up(2 * D, 16)
    Ap = _round_up(A, 16)
    Fp = _round_up(max(F1, out_dim), 128)
    assert G >= Fp, "8*hidden_dim must cover the padded head width"

    blocks = []
    off = 0

    def add_block(arr):
        nonlocal off
        r = off
        blocks.append((r, arr))
        off += arr.shape[0]
        return r

    # Layer-0 paired input projection: rows [0:D) act on x_t (fwd gate cols),
    # rows [D:2D) act on x_{T-1-t} (bwd gate cols -> backward projections land
    # time-reversed in the slab).
    w_in0 = np.zeros((Dp2, G), np.float32)
    w_in0[0:D] = _interleave_gate_cols(lstm[0]["w_ih_f"], H, 0)
    w_in0[D:2 * D] = _interleave_gate_cols(lstm[0]["w_ih_b"], H, 1)
    add_block(w_in0)

    off_hh, off_A, off_B = [], [], []
    for l in range(L):
        # Combined recurrent weight: rows 0:H (h_f) -> fwd gate cols,
        # rows H:2H (h_b) -> bwd gate cols (off-blocks stay exactly zero).
        w_hh = np.zeros((2 * H, G), np.float32)
        w_hh[0:H] = _interleave_gate_cols(lstm[l]["w_hh_f"], H, 0)
        w_hh[H:2 * H] = _interleave_gate_cols(lstm[l]["w_hh_b"], H, 1)
        off_hh.append(add_block(w_hh))
        if l + 1 < L:
            wf = np.asarray(lstm[l + 1]["w_ih_f"], np.float32)   # (2H, 4H)
            wb = np.asarray(lstm[l + 1]["w_ih_b"], np.float32)   # (2H, 4H)
            # d_a = [h_f(t) | h_b(T-1-t)] @ W_A  -> slab_next row t
            w_a = np.zeros((2 * H, G), np.float32)
            w_a[0:H] = _interleave_gate_cols(wf[0:H], H, 0)
            w_a[H:2 * H] = _interleave_gate_cols(wb[H:2 * H], H, 1)
            # d_b = [h_f(t) | h_b(T-1-t)] @ W_B  -> slab_next row T-1-t
            w_b = np.zeros((2 * H, G), np.float32)
            w_b[0:H] = _interleave_gate_cols(wb[0:H], H, 1)
            w_b[H:2 * H] = _interleave_gate_cols(wf[H:2 * H], H, 0)
            off_A.append(add_block(w_a))
            off_B.append(add_block(w_b))

    # MLP head, column-padded into the same G-wide slab.
    w1h = np.zeros((2 * H, G), np.float32)
    w1h[:, 0:F1] = w1[0:2 * H]
    w1a = np.zeros((Ap, G), np.float32)
    w1a[0:A, 0:F1] = w1[2 * H:2 * H + A]
    w2p = np.zeros((Fp, G), np.float32)
    w2p[0:F1, 0:out_dim] = w2
    off_w1h = add_block(w1h)
    off_w1a = add_block(w1a)
    off_w2 = add_block(w2p)

    rows = _round_up(off, 16)
    wpack = np.zeros((rows, G), np.float32)
    for r, arr in blocks:
        wpack[r:r + arr.shape[0]] = arr

    # Biases: one 8-row (sublane-aligned) slot each; data in row 0 of the slot.
    bpack = np.zeros(((L + 2) * 8, G), np.float32)
    for l in range(L):
        bpack[8 * l] = (_interleave_gate_cols(lstm[l]["b_f"], H, 0)
                        + _interleave_gate_cols(lstm[l]["b_b"], H, 1))[0]
    bpack[8 * L, 0:F1] = b1[0]
    bpack[8 * (L + 1), 0:out_dim] = b2[0]

    dims = _Dims(L=L, H=H, A=A, F1=F1, out_dim=out_dim, Dp2=Dp2, Ap=Ap, Fp=Fp,
                 off_hh=tuple(off_hh), off_A=tuple(off_A), off_B=tuple(off_B),
                 off_w1h=off_w1h, off_w1a=off_w1a, off_w2=off_w2)
    return {"wpack": jnp.asarray(wpack, dtype=jnp.bfloat16),
            "bpack": jnp.asarray(bpack, dtype=jnp.float32),
            "dims": dims}


# ----------------------------------------------------------------------------
# Fused kernel: all bi-LSTM layers + MLP head in one pallas_call
# ----------------------------------------------------------------------------
def _make_fused_kernel(T, B, d):
    H, L, G = d.H, d.L, 8 * d.H
    H2 = 2 * d.H

    def kernel(x_ref, add_ref, w_ref, b_ref, out_ref, slab_a, slab_b):
        f32, bf16 = jnp.float32, jnp.bfloat16

        # Hoisted per-lane activation constants: candidate lanes [4H:6H) -> tanh,
        # all other gate lanes -> sigmoid(x) = 0.5*tanh(0.5x)+0.5 (EUP, no divide).
        col = lax.broadcasted_iota(jnp.int32, (B, G), 1)
        is_cand = (col >= 4 * H) & (col < 6 * H)
        m = jnp.where(is_cand, 1.0, 0.5).astype(f32)
        a0 = jnp.where(is_cand, 0.0, 0.5).astype(f32)

        def activate(g):
            return m * jnp.tanh(m * g) + a0

        slabs = (slab_a, slab_b)

        # Layer-0 input projection hoisted over all timesteps and both
        # directions.  Slab row block t holds interleaved gates for the forward
        # direction at time t and the backward direction at time T-1-t (already
        # time-reversed), so each step reads a single (B, 8H) row block.
        slab_a[...] = (jnp.dot(x_ref[...], w_ref[0:d.Dp2, :],
                               preferred_element_type=f32)
                       + b_ref[0:1, :])

        hb = None
        for l in range(L):
            cur = slabs[l % 2]
            w_hh = w_ref[d.off_hh[l]:d.off_hh[l] + H2, :]      # (2H, 8H) bf16
            last = (l + 1 == L)
            if not last:
                nxt = slabs[(l + 1) % 2]
                w_a = w_ref[d.off_A[l]:d.off_A[l] + H2, :]
                w_b = w_ref[d.off_B[l]:d.off_B[l] + H2, :]
                b_nx = jnp.broadcast_to(b_ref[8 * (l + 1):8 * (l + 1) + 1, :],
                                        (B, G))

            c = jnp.zeros((B, H2), f32)
            for t in range(T):                       # static unroll (T is small)
                r0 = t * B
                g = cur[r0:r0 + B, :]
                if t > 0:                            # h0 = c0 = 0 -> skip matmul
                    g = g + jnp.dot(hb, w_hh, preferred_element_type=f32)
                act = activate(g)
                c = act[:, 2 * H:4 * H] * c + act[:, 0:2 * H] * act[:, 4 * H:6 * H]
                h = act[:, 6 * H:8 * H] * jnp.tanh(c)
                hb = h.astype(bf16)
                if not last:
                    # Interleave the next layer's input projection under this
                    # (latency-bound) recurrence: hb = [h_f(t) | h_b(T-1-t)]
                    # contributes to slab_next rows t and T-1-t.
                    d_a = jnp.dot(hb, w_a, preferred_element_type=f32)
                    d_b = jnp.dot(hb, w_b, preferred_element_type=f32)
                    rr0 = (T - 1 - t) * B
                    if t < T - 1 - t:                # first contribution: set+bias
                        nxt[r0:r0 + B, :] = d_a + b_nx
                        nxt[rr0:rr0 + B, :] = d_b + b_nx
                    elif t == T - 1 - t:             # odd-T midpoint
                        nxt[r0:r0 + B, :] = d_a + d_b + b_nx
                    else:                            # second contribution: accumulate
                        nxt[r0:r0 + B, :] = nxt[r0:r0 + B, :] + d_a
                        nxt[rr0:rr0 + B, :] = nxt[rr0:rr0 + B, :] + d_b

        # MLP head.  hb == [h_n[-2] | h_n[-1]]; split fc1 into two dots so the
        # feature concat disappears.  Widths are padded to 128 lanes.
        hid = (jnp.dot(hb, w_ref[d.off_w1h:d.off_w1h + H2, 0:d.Fp],
                       preferred_element_type=f32)
               + jnp.dot(add_ref[...], w_ref[d.off_w1a:d.off_w1a + d.Ap, 0:d.Fp],
                         preferred_element_type=f32)
               + b_ref[8 * L:8 * L + 1, 0:d.Fp])
        hid = jnp.maximum(hid, 0.0)
        o = (jnp.dot(hid.astype(bf16), w_ref[d.off_w2:d.off_w2 + d.Fp, 0:d.Fp],
                     preferred_element_type=f32)
             + b_ref[8 * (L + 1):8 * (L + 1) + 1, 0:d.Fp])
        ocol = lax.broadcasted_iota(jnp.int32, (B, d.Fp), 1)
        sig = 0.5 * jnp.tanh(0.5 * o) + 0.5
        softplus = jnp.maximum(o, 0.0) + jnp.log1p(jnp.exp(-jnp.abs(o)))
        out_ref[...] = jnp.where(ocol == 0, sig, softplus)

    return kernel


# ----------------------------------------------------------------------------
# Jitted forward (packed weights are device-resident; only x/add prep per call)
# ----------------------------------------------------------------------------
@partial(jax.jit, static_argnames=("dims",))
def _forward(x, add_inputs, wpack, bpack, dims):
    B, T, D = x.shape
    d = dims
    G = 8 * d.H

    # Paired, time-major input: row block t = [x_t | x_{T-1-t}] so one hoisted
    # matmul yields the backward direction's projections already time-reversed.
    x_tm = jnp.transpose(x, (1, 0, 2)).astype(jnp.float32)
    x_pair = jnp.concatenate([x_tm, x_tm[::-1]], axis=-1).reshape(T * B, 2 * D)
    x_pair = x_pair.astype(jnp.bfloat16)
    if d.Dp2 > 2 * D:
        x_pair = jnp.pad(x_pair, ((0, 0), (0, d.Dp2 - 2 * D)))
    add_p = add_inputs.astype(jnp.bfloat16)
    if d.Ap > d.A:
        add_p = jnp.pad(add_p, ((0, 0), (0, d.Ap - d.A)))

    # Advisory cost estimate so XLA can schedule surrounding ops sensibly.
    flops = 2 * T * B * d.Dp2 * G
    for l in range(d.L):
        flops += 2 * (T - 1) * B * (2 * d.H) * G
        if l + 1 < d.L:
            flops += 2 * T * B * (2 * d.H) * (2 * G)
    flops += 2 * B * (2 * d.H + d.Ap + d.Fp) * d.Fp
    transcendentals = d.L * T * B * (G + 2 * d.H) + 3 * B * d.Fp
    bytes_accessed = (x_pair.size * 2 + add_p.size * 2 + wpack.size * 2
                      + bpack.size * 4 + B * d.Fp * 4)

    vmem = pl.BlockSpec(memory_space=pltpu.MemorySpace.VMEM)
    out_pad = pl.pallas_call(
        _make_fused_kernel(T, B, d),
        out_shape=jax.ShapeDtypeStruct((B, d.Fp), jnp.float32),
        in_specs=[vmem, vmem, vmem, vmem],
        out_specs=vmem,
        scratch_shapes=[pltpu.VMEM((T * B, G), jnp.float32),   # slab (layer l)
                        pltpu.VMEM((T * B, G), jnp.float32)],  # slab (layer l+1)
        cost_estimate=pl.CostEstimate(flops=flops,
                                      transcendentals=transcendentals,
                                      bytes_accessed=bytes_accessed),
    )(x_pair, add_p, wpack, bpack)
    return out_pad[:, :d.out_dim]


def bilstm_model_forward(x, add_inputs, packed):
    return _forward(x, add_inputs, packed["wpack"], packed["bpack"],
                    dims=packed["dims"])


# ----------------------------------------------------------------------------
# Deterministic parameter init (shapes follow nn.LSTM / nn.Linear; b = b_ih+b_hh)
# ----------------------------------------------------------------------------
def init_params(key, input_dim, hidden_dim, num_layers, additional_dim, output_dim):
    assert output_dim == 3, "forward() indexes out[:, 0..2]"
    H = hidden_dim
    params = {"lstm": []}

    def w(k, shape):
        return 0.1 * jax.random.normal(k, shape, jnp.float32)

    for layer in range(num_layers):
        d_in = input_dim if layer == 0 else 2 * hidden_dim
        ks = jax.random.split(jax.random.fold_in(key, layer), 6)
        params["lstm"].append({
            "w_ih_f": w(ks[0], (d_in, 4 * H)),   # transposed weight_ih_l{k}
            "w_hh_f": w(ks[1], (H, 4 * H)),      # transposed weight_hh_l{k}
            "b_f":    w(ks[2], (1, 4 * H)),      # bias_ih + bias_hh folded
            "w_ih_b": w(ks[3], (d_in, 4 * H)),   # *_reverse
            "w_hh_b": w(ks[4], (H, 4 * H)),
            "b_b":    w(ks[5], (1, 4 * H)),
        })
    kf = jax.random.split(jax.random.fold_in(key, 1000), 4)
    params["w1"] = w(kf[0], (2 * H + additional_dim, 64))
    params["b1"] = w(kf[1], (1, 64))
    params["w2"] = w(kf[2], (64, output_dim))
    params["b2"] = w(kf[3], (1, output_dim))
    return params


# ----------------------------------------------------------------------------
# Pure-JAX f32 reference (mirrors the PyTorch forward) for a correctness check
# ----------------------------------------------------------------------------
def _reference_forward(x, add_inputs, params):
    B, T, _ = x.shape
    H = params["lstm"][0]["w_hh_f"].shape[0]
    xs = jnp.transpose(x, (1, 0, 2)).astype(jnp.float32)   # (T, B, D)

    def run_dir(seq, w_ih, w_hh, b):
        def step(carry, xt):
            h, c = carry
            g = xt @ w_ih + h @ w_hh + b[0]
            i = jax.nn.sigmoid(g[:, 0:H])
            f = jax.nn.sigmoid(g[:, H:2 * H])
            cand = jnp.tanh(g[:, 2 * H:3 * H])
            o = jax.nn.sigmoid(g[:, 3 * H:4 * H])
            c = f * c + i * cand
            h = o * jnp.tanh(c)
            return (h, c), h
        init = (jnp.zeros((B, H), jnp.float32), jnp.zeros((B, H), jnp.float32))
        (h, _), hs = lax.scan(step, init, seq)
        return h, hs

    inp = xs
    h_f = h_b = None
    for lp in params["lstm"]:
        h_f, hs_f = run_dir(inp, lp["w_ih_f"], lp["w_hh_f"], lp["b_f"])
        h_b, hs_b = run_dir(inp[::-1], lp["w_ih_b"], lp["w_hh_b"], lp["b_b"])
        inp = jnp.concatenate([hs_f, hs_b[::-1]], axis=-1)
    feat = jnp.concatenate([h_f, h_b, add_inputs.astype(jnp.float32)], axis=1)
    hid = jnp.maximum(feat @ params["w1"] + params["b1"][0], 0.0)
    o = hid @ params["w2"] + params["b2"][0]
    return jnp.concatenate([jax.nn.sigmoid(o[:, 0:1]),
                            jax.nn.softplus(o[:, 1:2]),
                            jax.nn.softplus(o[:, 2:3])], axis=1)


if __name__ == "__main__":
    B, T = 8, 8
    input_dim, hidden_dim, num_layers = 16, 32, 2
    additional_dim, output_dim = 8, 3

    key = jax.random.PRNGKey(0)
    kx, ka, kp = jax.random.split(key, 3)
    x = jax.random.normal(kx, (B, T, input_dim), jnp.float32)
    add_inputs = jax.random.normal(ka, (B, additional_dim), jnp.float32)
    params = init_params(kp, input_dim, hidden_dim, num_layers,
                         additional_dim, output_dim)

    packed = pack_params(params)          # one-time pre-pack (outside jit)

    out = bilstm_model_forward(x, add_inputs, packed)
    jax.block_until_ready(out)
    assert out.shape == (B, output_dim), out.shape

    # Reference is pure f32; the kernel uses bf16 MXU operands (f32 accumulate),
    # so the tolerance is loosened accordingly (still far below bug-level error).
    ref = _reference_forward(x, add_inputs, params)
    np.testing.assert_allclose(np.asarray(out), np.asarray(ref),
                               rtol=4e-2, atol=4e-3)
    print("KERNEL_OK")
</pallas_src>

<mosaic_0001>
module attributes {stable_mosaic.version = 11 : i64} {
  func.func @kernel(%arg0: memref<64x32xbf16, #tpu.memory_space<vmem>>, %arg1: memref<8x16xbf16, #tpu.memory_space<vmem>>, %arg2: memref<496x256xbf16, #tpu.memory_space<vmem>>, %arg3: memref<32x256xf32, #tpu.memory_space<vmem>>, %arg4: memref<8x128xf32, #tpu.memory_space<vmem>>, %arg5: memref<64x256xf32, #tpu.memory_space<vmem>>, %arg6: memref<64x256xf32, #tpu.memory_space<vmem>>) attributes {dimension_semantics = [], scalar_prefetch = 0 : i64, scratch_operands = 2 : i64, tpu.core_type = #tpu.core_type<tc>} {
    %0 = tpu.iota {dimensions = array<i32: 1>} : vector<8x256xi32>
    %c128_i32 = arith.constant 128 : i32
    %1 = vector.broadcast %c128_i32 : i32 to vector<8x256xi32>
    %2 = arith.cmpi sge, %0, %1 : vector<8x256xi32>
    %c192_i32 = arith.constant 192 : i32
    %3 = vector.broadcast %c192_i32 : i32 to vector<8x256xi32>
    %4 = arith.cmpi slt, %0, %3 : vector<8x256xi32>
    %5 = arith.andi %2, %4 : vector<8x256xi1>
    %cst = arith.constant 1.000000e+00 : f32
    %cst_0 = arith.constant 5.000000e-01 : f32
    %6 = vector.broadcast %cst : f32 to vector<8x256xf32>
    %7 = vector.broadcast %cst_0 : f32 to vector<8x256xf32>
    %8 = arith.select %5, %6, %7 : vector<8x256xi1>, vector<8x256xf32>
    %cst_1 = arith.constant 0.000000e+00 : f32
    %cst_2 = arith.constant 5.000000e-01 : f32
    %9 = vector.broadcast %cst_1 : f32 to vector<8x256xf32>
    %10 = vector.broadcast %cst_2 : f32 to vector<8x256xf32>
    %11 = arith.select %5, %9, %10 : vector<8x256xi1>, vector<8x256xf32>
    %c0 = arith.constant 0 : index
    %c0_3 = arith.constant 0 : index
    %12 = vector.load %arg0[%c0, %c0_3] : memref<64x32xbf16, #tpu.memory_space<vmem>>, vector<64x32xbf16>
    %c0_4 = arith.constant 0 : index
    %c0_5 = arith.constant 0 : index
    %13 = vector.load %arg2[%c0_4, %c0_5] : memref<496x256xbf16, #tpu.memory_space<vmem>>, vector<32x256xbf16>
    %cst_6 = arith.constant dense<0.000000e+00> : vector<64x256xf32>
    %14 = tpu.matmul %12, %13, %cst_6 {dimension_numbers = #tpu.dot_dimension_numbers<[1], [0], [0], [1], [0, 0, 1, 1], [], []>} : vector<64x32xbf16>, vector<32x256xbf16>, vector<64x256xf32> -> vector<64x256xf32>
    %c0_7 = arith.constant 0 : index
    %c0_8 = arith.constant 0 : index
    %15 = vector.load %arg3[%c0_7, %c0_8] : memref<32x256xf32, #tpu.memory_space<vmem>>, vector<1x256xf32>
    %16 = vector.broadcast %15 : vector<1x256xf32> to vector<64x256xf32>
    %17 = arith.addf %14, %16 : vector<64x256xf32>
    %c0_9 = arith.constant 0 : index
    %c0_10 = arith.constant 0 : index
    %18 = vector.load %arg5[%c0_9, %c0_10] : memref<64x256xf32, #tpu.memory_space<vmem>>, vector<64x256xf32>
    tpu.vector_store %arg5[%c0_9, %c0_10], %17 {strides = array<i32>} : memref<64x256xf32, #tpu.memory_space<vmem>>, vector<64x256xf32>,
    %c32 = arith.constant 32 : index
    %c0_11 = arith.constant 0 : index
    %19 = vector.load %arg2[%c32, %c0_11] : memref<496x256xbf16, #tpu.memory_space<vmem>>, vector<64x256xbf16>
    %c96 = arith.constant 96 : index
    %c0_12 = arith.constant 0 : index
    %20 = vector.load %arg2[%c96, %c0_12] : memref<496x256xbf16, #tpu.memory_space<vmem>>, vector<64x256xbf16>
    %c160 = arith.constant 160 : index
    %c0_13 = arith.constant 0 : index
    %21 = vector.load %arg2[%c160, %c0_13] : memref<496x256xbf16, #tpu.memory_space<vmem>>, vector<64x256xbf16>
    %c8 = arith.constant 8 : index
    %c0_14 = arith.constant 0 : index
    %22 = vector.load %arg3[%c8, %c0_14] : memref<32x256xf32, #tpu.memory_space<vmem>>, vector<1x256xf32>
    %23 = vector.shape_cast %22 : vector<1x256xf32> to vector<1x256xf32>
    %24 = vector.broadcast %23 : vector<1x256xf32> to vector<8x256xf32>
    %cst_15 = arith.constant 0.000000e+00 : f32
    %25 = vector.broadcast %cst_15 : f32 to vector<8x64xf32>
    %c0_16 = arith.constant 0 : index
    %c0_17 = arith.constant 0 : index
    %26 = vector.load %arg5[%c0_16, %c0_17] : memref<64x256xf32, #tpu.memory_space<vmem>>, vector<8x256xf32>
    %27 = arith.mulf %8, %26 : vector<8x256xf32>
    %28 = math.tanh %27 : vector<8x256xf32>
    %29 = arith.mulf %8, %28 : vector<8x256xf32>
    %30 = arith.addf %29, %11 : vector<8x256xf32>
    %31 = vector.extract_strided_slice %30 {offsets = [0, 64], sizes = [8, 64], strides = [1, 1]} : vector<8x256xf32> to vector<8x64xf32>
    %32 = arith.mulf %31, %25 : vector<8x64xf32>
    %33 = vector.extract_strided_slice %30 {offsets = [0, 0], sizes = [8, 64], strides = [1, 1]} : vector<8x256xf32> to vector<8x64xf32>
    %34 = vector.extract_strided_slice %30 {offsets = [0, 128], sizes = [8, 64], strides = [1, 1]} : vector<8x256xf32> to vector<8x64xf32>
    %35 = arith.mulf %33, %34 : vector<8x64xf32>
    %36 = arith.addf %32, %35 : vector<8x64xf32>
    %37 = vector.extract_strided_slice %30 {offsets = [0, 192], sizes = [8, 64], strides = [1, 1]} : vector<8x256xf32> to vector<8x64xf32>
    %38 = math.tanh %36 : vector<8x64xf32>
    %39 = arith.mulf %37, %38 : vector<8x64xf32>
    %40 = arith.truncf %39 : vector<8x64xf32> to vector<8x64xbf16>
    %cst_18 = arith.constant dense<0.000000e+00> : vector<8x256xf32>
    %41 = tpu.matmul %40, %20, %cst_18 {dimension_numbers = #tpu.dot_dimension_numbers<[1], [0], [0], [1], [0, 0, 1, 1], [], []>} : vector<8x64xbf16>, vector<64x256xbf16>, vector<8x256xf32> -> vector<8x256xf32>
    %cst_19 = arith.constant dense<0.000000e+00> : vector<8x256xf32>
    %42 = tpu.matmul %40, %21, %cst_19 {dimension_numbers = #tpu.dot_dimension_numbers<[1], [0], [0], [1], [0, 0, 1, 1], [], []>} : vector<8x64xbf16>, vector<64x256xbf16>, vector<8x256xf32> -> vector<8x256xf32>
    %43 = arith.addf %41, %24 : vector<8x256xf32>
    %c0_20 = arith.constant 0 : index
    %c0_21 = arith.constant 0 : index
    %44 = vector.load %arg6[%c0_20, %c0_21] : memref<64x256xf32, #tpu.memory_space<vmem>>, vector<8x256xf32>
    tpu.vector_store %arg6[%c0_20, %c0_21], %43 {strides = array<i32>} : memref<64x256xf32, #tpu.memory_space<vmem>>, vector<8x256xf32>,
    %45 = arith.addf %42, %24 : vector<8x256xf32>
    %c56 = arith.constant 56 : index
    %c0_22 = arith.constant 0 : index
    %46 = vector.load %arg6[%c56, %c0_22] : memref<64x256xf32, #tpu.memory_space<vmem>>, vector<8x256xf32>
    tpu.vector_store %arg6[%c56, %c0_22], %45 {strides = array<i32>} : memref<64x256xf32, #tpu.memory_space<vmem>>, vector<8x256xf32>,
    %c8_23 = arith.constant 8 : index
    %c0_24 = arith.constant 0 : index
    %47 = vector.load %arg5[%c8_23, %c0_24] : memref<64x256xf32, #tpu.memory_space<vmem>>, vector<8x256xf32>
    %cst_25 = arith.constant dense<0.000000e+00> : vector<8x256xf32>
    %48 = tpu.matmul %40, %19, %cst_25 {dimension_numbers = #tpu.dot_dimension_numbers<[1], [0], [0], [1], [0, 0, 1, 1], [], []>} : vector<8x64xbf16>, vector<64x256xbf16>, vector<8x256xf32> -> vector<8x256xf32>
    %49 = arith.addf %47, %48 : vector<8x256xf32>
    %50 = arith.mulf %8, %49 : vector<8x256xf32>
    %51 = math.tanh %50 : vector<8x256xf32>
    %52 = arith.mulf %8, %51 : vector<8x256xf32>
    %53 = arith.addf %52, %11 : vector<8x256xf32>
    %54 = vector.extract_strided_slice %53 {offsets = [0, 64], sizes = [8, 64], strides = [1, 1]} : vector<8x256xf32> to vector<8x64xf32>
    %55 = arith.mulf %54, %36 : vector<8x64xf32>
    %56 = vector.extract_strided_slice %53 {offsets = [0, 0], sizes = [8, 64], strides = [1, 1]} : vector<8x256xf32> to vector<8x64xf32>
    %57 = vector.extract_strided_slice %53 {offsets = [0, 128], sizes = [8, 64], strides = [1, 1]} : vector<8x256xf32> to vector<8x64xf32>
    %58 = arith.mulf %56, %57 : vector<8x64xf32>
    %59 = arith.addf %55, %58 : vector<8x64xf32>
    %60 = vector.extract_strided_slice %53 {offsets = [0, 192], sizes = [8, 64], strides = [1, 1]} : vector<8x256xf32> to vector<8x64xf32>
    %61 = math.tanh %59 : vector<8x64xf32>
    %62 = arith.mulf %60, %61 : vector<8x64xf32>
    %63 = arith.truncf %62 : vector<8x64xf32> to vector<8x64xbf16>
    %cst_26 = arith.constant dense<0.000000e+00> : vector<8x256xf32>
    %64 = tpu.matmul %63, %20, %cst_26 {dimension_numbers = #tpu.dot_dimension_numbers<[1], [0], [0], [1], [0, 0, 1, 1], [], []>} : vector<8x64xbf16>, vector<64x256xbf16>, vector<8x256xf32> -> vector<8x256xf32>
    %cst_27 = arith.constant dense<0.000000e+00> : vector<8x256xf32>
    %65 = tpu.matmul %63, %21, %cst_27 {dimension_numbers = #tpu.dot_dimension_numbers<[1], [0], [0], [1], [0, 0, 1, 1], [], []>} : vector<8x64xbf16>, vector<64x256xbf16>, vector<8x256xf32> -> vector<8x256xf32>
    %66 = arith.addf %64, %24 : vector<8x256xf32>
    %c8_28 = arith.constant 8 : index
    %c0_29 = arith.constant 0 : index
    %67 = vector.load %arg6[%c8_28, %c0_29] : memref<64x256xf32, #tpu.memory_space<vmem>>, vector<8x256xf32>
    tpu.vector_store %arg6[%c8_28, %c0_29], %66 {strides = array<i32>} : memref<64x256xf32, #tpu.memory_space<vmem>>, vector<8x256xf32>,
    %68 = arith.addf %65, %24 : vector<8x256xf32>
    %c48 = arith.constant 48 : index
    %c0_30 = arith.constant 0 : index
    %69 = vector.load %arg6[%c48, %c0_30] : memref<64x256xf32, #tpu.memory_space<vmem>>, vector<8x256xf32>
    tpu.vector_store %arg6[%c48, %c0_30], %68 {strides = array<i32>} : memref<64x256xf32, #tpu.memory_space<vmem>>, vector<8x256xf32>,
    %c16 = arith.constant 16 : index
    %c0_31 = arith.constant 0 : index
    %70 = vector.load %arg5[%c16, %c0_31] : memref<64x256xf32, #tpu.memory_space<vmem>>, vector<8x256xf32>
    %cst_32 = arith.constant dense<0.000000e+00> : vector<8x256xf32>
    %71 = tpu.matmul %63, %19, %cst_32 {dimension_numbers = #tpu.dot_dimension_numbers<[1], [0], [0], [1], [0, 0, 1, 1], [], []>} : vector<8x64xbf16>, vector<64x256xbf16>, vector<8x256xf32> -> vector<8x256xf32>
    %72 = arith.addf %70, %71 : vector<8x256xf32>
    %73 = arith.mulf %8, %72 : vector<8x256xf32>
    %74 = math.tanh %73 : vector<8x256xf32>
    %75 = arith.mulf %8, %74 : vector<8x256xf32>
    %76 = arith.addf %75, %11 : vector<8x256xf32>
    %77 = vector.extract_strided_slice %76 {offsets = [0, 64], sizes = [8, 64], strides = [1, 1]} : vector<8x256xf32> to vector<8x64xf32>
    %78 = arith.mulf %77, %59 : vector<8x64xf32>
    %79 = vector.extract_strided_slice %76 {offsets = [0, 0], sizes = [8, 64], strides = [1, 1]} : vector<8x256xf32> to vector<8x64xf32>
    %80 = vector.extract_strided_slice %76 {offsets = [0, 128], sizes = [8, 64], strides = [1, 1]} : vector<8x256xf32> to vector<8x64xf32>
    %81 = arith.mulf %79, %80 : vector<8x64xf32>
    %82 = arith.addf %78, %81 : vector<8x64xf32>
    %83 = vector.extract_strided_slice %76 {offsets = [0, 192], sizes = [8, 64], strides = [1, 1]} : vector<8x256xf32> to vector<8x64xf32>
    %84 = math.tanh %82 : vector<8x64xf32>
    %85 = arith.mulf %83, %84 : vector<8x64xf32>
    %86 = arith.truncf %85 : vector<8x64xf32> to vector<8x64xbf16>
    %cst_33 = arith.constant dense<0.000000e+00> : vector<8x256xf32>
    %87 = tpu.matmul %86, %20, %cst_33 {dimension_numbers = #tpu.dot_dimension_numbers<[1], [0], [0], [1], [0, 0, 1, 1], [], []>} : vector<8x64xbf16>, vector<64x256xbf16>, vector<8x256xf32> -> vector<8x256xf32>
    %cst_34 = arith.constant dense<0.000000e+00> : vector<8x256xf32>
    %88 = tpu.matmul %86, %21, %cst_34 {dimension_numbers = #tpu.dot_dimension_numbers<[1], [0], [0], [1], [0, 0, 1, 1], [], []>} : vector<8x64xbf16>, vector<64x256xbf16>, vector<8x256xf32> -> vector<8x256xf32>
    %89 = arith.addf %87, %24 : vector<8x256xf32>
    %c16_35 = arith.constant 16 : index
    %c0_36 = arith.constant 0 : index
    %90 = vector.load %arg6[%c16_35, %c0_36] : memref<64x256xf32, #tpu.memory_space<vmem>>, vector<8x256xf32>
    tpu.vector_store %arg6[%c16_35, %c0_36], %89 {strides = array<i32>} : memref<64x256xf32, #tpu.memory_space<vmem>>, vector<8x256xf32>,
    %91 = arith.addf %88, %24 : vector<8x256xf32>
    %c40 = arith.constant 40 : index
    %c0_37 = arith.constant 0 : index
    %92 = vector.load %arg6[%c40, %c0_37] : memref<64x256xf32, #tpu.memory_space<vmem>>, vector<8x256xf32>
    tpu.vector_store %arg6[%c40, %c0_37], %91 {strides = array<i32>} : memref<64x256xf32, #tpu.memory_space<vmem>>, vector<8x256xf32>,
    %c24 = arith.constant 24 : index
    %c0_38 = arith.constant 0 : index
    %93 = vector.load %arg5[%c24, %c0_38] : memref<64x256xf32, #tpu.memory_space<vmem>>, vector<8x256xf32>
    %cst_39 = arith.constant dense<0.000000e+00> : vector<8x256xf32>
    %94 = tpu.matmul %86, %19, %cst_39 {dimension_numbers = #tpu.dot_dimension_numbers<[1], [0], [0], [1], [0, 0, 1, 1], [], []>} : vector<8x64xbf16>, vector<64x256xbf16>, vector<8x256xf32> -> vector<8x256xf32>
    %95 = arith.addf %93, %94 : vector<8x256xf32>
    %96 = arith.mulf %8, %95 : vector<8x256xf32>
    %97 = math.tanh %96 : vector<8x256xf32>
    %98 = arith.mulf %8, %97 : vector<8x256xf32>
    %99 = arith.addf %98, %11 : vector<8x256xf32>
    %100 = vector.extract_strided_slice %99 {offsets = [0, 64], sizes = [8, 64], strides = [1, 1]} : vector<8x256xf32> to vector<8x64xf32>
    %101 = arith.mulf %100, %82 : vector<8x64xf32>
    %102 = vector.extract_strided_slice %99 {offsets = [0, 0], sizes = [8, 64], strides = [1, 1]} : vector<8x256xf32> to vector<8x64xf32>
    %103 = vector.extract_strided_slice %99 {offsets = [0, 128], sizes = [8, 64], strides = [1, 1]} : vector<8x256xf32> to vector<8x64xf32>
    %104 = arith.mulf %102, %103 : vector<8x64xf32>
    %105 = arith.addf %101, %104 : vector<8x64xf32>
    %106 = vector.extract_strided_slice %99 {offsets = [0, 192], sizes = [8, 64], strides = [1, 1]} : vector<8x256xf32> to vector<8x64xf32>
    %107 = math.tanh %105 : vector<8x64xf32>
    %108 = arith.mulf %106, %107 : vector<8x64xf32>
    %109 = arith.truncf %108 : vector<8x64xf32> to vector<8x64xbf16>
    %cst_40 = arith.constant dense<0.000000e+00> : vector<8x256xf32>
    %110 = tpu.matmul %109, %20, %cst_40 {dimension_numbers = #tpu.dot_dimension_numbers<[1], [0], [0], [1], [0, 0, 1, 1], [], []>} : vector<8x64xbf16>, vector<64x256xbf16>, vector<8x256xf32> -> vector<8x256xf32>
    %cst_41 = arith.constant dense<0.000000e+00> : vector<8x256xf32>
    %111 = tpu.matmul %109, %21, %cst_41 {dimension_numbers = #tpu.dot_dimension_numbers<[1], [0], [0], [1], [0, 0, 1, 1], [], []>} : vector<8x64xbf16>, vector<64x256xbf16>, vector<8x256xf32> -> vector<8x256xf32>
    %112 = arith.addf %110, %24 : vector<8x256xf32>
    %c24_42 = arith.constant 24 : index
    %c0_43 = arith.constant 0 : index
    %113 = vector.load %arg6[%c24_42, %c0_43] : memref<64x256xf32, #tpu.memory_space<vmem>>, vector<8x256xf32>
    tpu.vector_store %arg6[%c24_42, %c0_43], %112 {strides = array<i32>} : memref<64x256xf32, #tpu.memory_space<vmem>>, vector<8x256xf32>,
    %114 = arith.addf %111, %24 : vector<8x256xf32>
    %c32_44 = arith.constant 32 : index
    %c0_45 = arith.constant 0 : index
    %115 = vector.load %arg6[%c32_44, %c0_45] : memref<64x256xf32, #tpu.memory_space<vmem>>, vector<8x256xf32>
    tpu.vector_store %arg6[%c32_44, %c0_45], %114 {strides = array<i32>} : memref<64x256xf32, #tpu.memory_space<vmem>>, vector<8x256xf32>,
    %c32_46 = arith.constant 32 : index
    %c0_47 = arith.constant 0 : index
    %116 = vector.load %arg5[%c32_46, %c0_47] : memref<64x256xf32, #tpu.memory_space<vmem>>, vector<8x256xf32>
    %cst_48 = arith.constant dense<0.000000e+00> : vector<8x256xf32>
    %117 = tpu.matmul %109, %19, %cst_48 {dimension_numbers = #tpu.dot_dimension_numbers<[1], [0], [0], [1], [0, 0, 1, 1], [], []>} : vector<8x64xbf16>, vector<64x256xbf16>, vector<8x256xf32> -> vector<8x256xf32>
    %118 = arith.addf %116, %117 : vector<8x256xf32>
    %119 = arith.mulf %8, %118 : vector<8x256xf32>
    %120 = math.tanh %119 : vector<8x256xf32>
    %121 = arith.mulf %8, %120 : vector<8x256xf32>
    %122 = arith.addf %121, %11 : vector<8x256xf32>
    %123 = vector.extract_strided_slice %122 {offsets = [0, 64], sizes = [8, 64], strides = [1, 1]} : vector<8x256xf32> to vector<8x64xf32>
    %124 = arith.mulf %123, %105 : vector<8x64xf32>
    %125 = vector.extract_strided_slice %122 {offsets = [0, 0], sizes = [8, 64], strides = [1, 1]} : vector<8x256xf32> to vector<8x64xf32>
    %126 = vector.extract_strided_slice %122 {offsets = [0, 128], sizes = [8, 64], strides = [1, 1]} : vector<8x256xf32> to vector<8x64xf32>
    %127 = arith.mulf %125, %126 : vector<8x64xf32>
    %128 = arith.addf %124, %127 : vector<8x64xf32>
    %129 = vector.extract_strided_slice %122 {offsets = [0, 192], sizes = [8, 64], strides = [1, 1]} : vector<8x256xf32> to vector<8x64xf32>
    %130 = math.tanh %128 : vector<8x64xf32>
    %131 = arith.mulf %129, %130 : vector<8x64xf32>
    %132 = arith.truncf %131 : vector<8x64xf32> to vector<8x64xbf16>
    %cst_49 = arith.constant dense<0.000000e+00> : vector<8x256xf32>
    %133 = tpu.matmul %132, %20, %cst_49 {dimension_numbers = #tpu.dot_dimension_numbers<[1], [0], [0], [1], [0, 0, 1, 1], [], []>} : vector<8x64xbf16>, vector<64x256xbf16>, vector<8x256xf32> -> vector<8x256xf32>
    %cst_50 = arith.constant dense<0.000000e+00> : vector<8x256xf32>
    %134 = tpu.matmul %132, %21, %cst_50 {dimension_numbers = #tpu.dot_dimension_numbers<[1], [0], [0], [1], [0, 0, 1, 1], [], []>} : vector<8x64xbf16>, vector<64x256xbf16>, vector<8x256xf32> -> vector<8x256xf32>
    %c32_51 = arith.constant 32 : index
    %c0_52 = arith.constant 0 : index
    %135 = vector.load %arg6[%c32_51, %c0_52] : memref<64x256xf32, #tpu.memory_space<vmem>>, vector<8x256xf32>
    %136 = arith.addf %135, %133 : vector<8x256xf32>
    %c32_53 = arith.constant 32 : index
    %c0_54 = arith.constant 0 : index
    %137 = vector.load %arg6[%c32_53, %c0_54] : memref<64x256xf32, #tpu.memory_space<vmem>>, vector<8x256xf32>
    tpu.vector_store %arg6[%c32_53, %c0_54], %136 {strides = array<i32>} : memref<64x256xf32, #tpu.memory_space<vmem>>, vector<8x256xf32>,
    %c24_55 = arith.constant 24 : index
    %c0_56 = arith.constant 0 : index
    %138 = vector.load %arg6[%c24_55, %c0_56] : memref<64x256xf32, #tpu.memory_space<vmem>>, vector<8x256xf32>
    %139 = arith.addf %138, %134 : vector<8x256xf32>
    %c24_57 = arith.constant 24 : index
    %c0_58 = arith.constant 0 : index
    %140 = vector.load %arg6[%c24_57, %c0_58] : memref<64x256xf32, #tpu.memory_space<vmem>>, vector<8x256xf32>
    tpu.vector_store %arg6[%c24_57, %c0_58], %139 {strides = array<i32>} : memref<64x256xf32, #tpu.memory_space<vmem>>, vector<8x256xf32>,
    %c40_59 = arith.constant 40 : index
    %c0_60 = arith.constant 0 : index
    %141 = vector.load %arg5[%c40_59, %c0_60] : memref<64x256xf32, #tpu.memory_space<vmem>>, vector<8x256xf32>
    %cst_61 = arith.constant dense<0.000000e+00> : vector<8x256xf32>
    %142 = tpu.matmul %132, %19, %cst_61 {dimension_numbers = #tpu.dot_dimension_numbers<[1], [0], [0], [1], [0, 0, 1, 1], [], []>} : vector<8x64xbf16>, vector<64x256xbf16>, vector<8x256xf32> -> vector<8x256xf32>
    %143 = arith.addf %141, %142 : vector<8x256xf32>
    %144 = arith.mulf %8, %143 : vector<8x256xf32>
    %145 = math.tanh %144 : vector<8x256xf32>
    %146 = arith.mulf %8, %145 : vector<8x256xf32>
    %147 = arith.addf %146, %11 : vector<8x256xf32>
    %148 = vector.extract_strided_slice %147 {offsets = [0, 64], sizes = [8, 64], strides = [1, 1]} : vector<8x256xf32> to vector<8x64xf32>
    %149 = arith.mulf %148, %128 : vector<8x64xf32>
    %150 = vector.extract_strided_slice %147 {offsets = [0, 0], sizes = [8, 64], strides = [1, 1]} : vector<8x256xf32> to vector<8x64xf32>
    %151 = vector.extract_strided_slice %147 {offsets = [0, 128], sizes = [8, 64], strides = [1, 1]} : vector<8x256xf32> to vector<8x64xf32>
    %152 = arith.mulf %150, %151 : vector<8x64xf32>
    %153 = arith.addf %149, %152 : vector<8x64xf32>
    %154 = vector.extract_strided_slice %147 {offsets = [0, 192], sizes = [8, 64], strides = [1, 1]} : vector<8x256xf32> to vector<8x64xf32>
    %155 = math.tanh %153 : vector<8x64xf32>
    %156 = arith.mulf %154, %155 : vector<8x64xf32>
    %157 = arith.truncf %156 : vector<8x64xf32> to vector<8x64xbf16>
    %cst_62 = arith.constant dense<0.000000e+00> : vector<8x256xf32>
    %158 = tpu.matmul %157, %20, %cst_62 {dimension_numbers = #tpu.dot_dimension_numbers<[1], [0], [0], [1], [0, 0, 1, 1], [], []>} : vector<8x64xbf16>, vector<64x256xbf16>, vector<8x256xf32> -> vector<8x256xf32>
    %cst_63 = arith.constant dense<0.000000e+00> : vector<8x256xf32>
    %159 = tpu.matmul %157, %21, %cst_63 {dimension_numbers = #tpu.dot_dimension_numbers<[1], [0], [0], [1], [0, 0, 1, 1], [], []>} : vector<8x64xbf16>, vector<64x256xbf16>, vector<8x256xf32> -> vector<8x256xf32>
    %c40_64 = arith.constant 40 : index
    %c0_65 = arith.constant 0 : index
    %160 = vector.load %arg6[%c40_64, %c0_65] : memref<64x256xf32, #tpu.memory_space<vmem>>, vector<8x256xf32>
    %161 = arith.addf %160, %158 : vector<8x256xf32>
    %c40_66 = arith.constant 40 : index
    %c0_67 = arith.constant 0 : index
    %162 = vector.load %arg6[%c40_66, %c0_67] : memref<64x256xf32, #tpu.memory_space<vmem>>, vector<8x256xf32>
    tpu.vector_store %arg6[%c40_66, %c0_67], %161 {strides = array<i32>} : memref<64x256xf32, #tpu.memory_space<vmem>>, vector<8x256xf32>,
    %c16_68 = arith.constant 16 : index
    %c0_69 = arith.constant 0 : index
    %163 = vector.load %arg6[%c16_68, %c0_69] : memref<64x256xf32, #tpu.memory_space<vmem>>, vector<8x256xf32>
    %164 = arith.addf %163, %159 : vector<8x256xf32>
    %c16_70 = arith.constant 16 : index
    %c0_71 = arith.constant 0 : index
    %165 = vector.load %arg6[%c16_70, %c0_71] : memref<64x256xf32, #tpu.memory_space<vmem>>, vector<8x256xf32>
    tpu.vector_store %arg6[%c16_70, %c0_71], %164 {strides = array<i32>} : memref<64x256xf32, #tpu.memory_space<vmem>>, vector<8x256xf32>,
    %c48_72 = arith.constant 48 : index
    %c0_73 = arith.constant 0 : index
    %166 = vector.load %arg5[%c48_72, %c0_73] : memref<64x256xf32, #tpu.memory_space<vmem>>, vector<8x256xf32>
    %cst_74 = arith.constant dense<0.000000e+00> : vector<8x256xf32>
    %167 = tpu.matmul %157, %19, %cst_74 {dimension_numbers = #tpu.dot_dimension_numbers<[1], [0], [0], [1], [0, 0, 1, 1], [], []>} : vector<8x64xbf16>, vector<64x256xbf16>, vector<8x256xf32> -> vector<8x256xf32>
    %168 = arith.addf %166, %167 : vector<8x256xf32>
    %169 = arith.mulf %8, %168 : vector<8x256xf32>
    %170 = math.tanh %169 : vector<8x256xf32>
    %171 = arith.mulf %8, %170 : vector<8x256xf32>
    %172 = arith.addf %171, %11 : vector<8x256xf32>
    %173 = vector.extract_strided_slice %172 {offsets = [0, 64], sizes = [8, 64], strides = [1, 1]} : vector<8x256xf32> to vector<8x64xf32>
    %174 = arith.mulf %173, %153 : vector<8x64xf32>
    %175 = vector.extract_strided_slice %172 {offsets = [0, 0], sizes = [8, 64], strides = [1, 1]} : vector<8x256xf32> to vector<8x64xf32>
    %176 = vector.extract_strided_slice %172 {offsets = [0, 128], sizes = [8, 64], strides = [1, 1]} : vector<8x256xf32> to vector<8x64xf32>
    %177 = arith.mulf %175, %176 : vector<8x64xf32>
    %178 = arith.addf %174, %177 : vector<8x64xf32>
    %179 = vector.extract_strided_slice %172 {offsets = [0, 192], sizes = [8, 64], strides = [1, 1]} : vector<8x256xf32> to vector<8x64xf32>
    %180 = math.tanh %178 : vector<8x64xf32>
    %181 = arith.mulf %179, %180 : vector<8x64xf32>
    %182 = arith.truncf %181 : vector<8x64xf32> to vector<8x64xbf16>
    %cst_75 = arith.constant dense<0.000000e+00> : vector<8x256xf32>
    %183 = tpu.matmul %182, %20, %cst_75 {dimension_numbers = #tpu.dot_dimension_numbers<[1], [0], [0], [1], [0, 0, 1, 1], [], []>} : vector<8x64xbf16>, vector<64x256xbf16>, vector<8x256xf32> -> vector<8x256xf32>
    %cst_76 = arith.constant dense<0.000000e+00> : vector<8x256xf32>
    %184 = tpu.matmul %182, %21, %cst_76 {dimension_numbers = #tpu.dot_dimension_numbers<[1], [0], [0], [1], [0, 0, 1, 1], [], []>} : vector<8x64xbf16>, vector<64x256xbf16>, vector<8x256xf32> -> vector<8x256xf32>
    %c48_77 = arith.constant 48 : index
    %c0_78 = arith.constant 0 : index
    %185 = vector.load %arg6[%c48_77, %c0_78] : memref<64x256xf32, #tpu.memory_space<vmem>>, vector<8x256xf32>
    %186 = arith.addf %185, %183 : vector<8x256xf32>
    %c48_79 = arith.constant 48 : index
    %c0_80 = arith.constant 0 : index
    %187 = vector.load %arg6[%c48_79, %c0_80] : memref<64x256xf32, #tpu.memory_space<vmem>>, vector<8x256xf32>
    tpu.vector_store %arg6[%c48_79, %c0_80], %186 {strides = array<i32>} : memref<64x256xf32, #tpu.memory_space<vmem>>, vector<8x256xf32>,
    %c8_81 = arith.constant 8 : index
    %c0_82 = arith.constant 0 : index
    %188 = vector.load %arg6[%c8_81, %c0_82] : memref<64x256xf32, #tpu.memory_space<vmem>>, vector<8x256xf32>
    %189 = arith.addf %188, %184 : vector<8x256xf32>
    %c8_83 = arith.constant 8 : index
    %c0_84 = arith.constant 0 : index
    %190 = vector.load %arg6[%c8_83, %c0_84] : memref<64x256xf32, #tpu.memory_space<vmem>>, vector<8x256xf32>
    tpu.vector_store %arg6[%c8_83, %c0_84], %189 {strides = array<i32>} : memref<64x256xf32, #tpu.memory_space<vmem>>, vector<8x256xf32>,
    %c56_85 = arith.constant 56 : index
    %c0_86 = arith.constant 0 : index
    %191 = vector.load %arg5[%c56_85, %c0_86] : memref<64x256xf32, #tpu.memory_space<vmem>>, vector<8x256xf32>
    %cst_87 = arith.constant dense<0.000000e+00> : vector<8x256xf32>
    %192 = tpu.matmul %182, %19, %cst_87 {dimension_numbers = #tpu.dot_dimension_numbers<[1], [0], [0], [1], [0, 0, 1, 1], [], []>} : vector<8x64xbf16>, vector<64x256xbf16>, vector<8x256xf32> -> vector<8x256xf32>
    %193 = arith.addf %191, %192 : vector<8x256xf32>
    %194 = arith.mulf %8, %193 : vector<8x256xf32>
    %195 = math.tanh %194 : vector<8x256xf32>
    %196 = arith.mulf %8, %195 : vector<8x256xf32>
    %197 = arith.addf %196, %11 : vector<8x256xf32>
    %198 = vector.extract_strided_slice %197 {offsets = [0, 64], sizes = [8, 64], strides = [1, 1]} : vector<8x256xf32> to vector<8x64xf32>
    %199 = arith.mulf %198, %178 : vector<8x64xf32>
    %200 = vector.extract_strided_slice %197 {offsets = [0, 0], sizes = [8, 64], strides = [1, 1]} : vector<8x256xf32> to vector<8x64xf32>
    %201 = vector.extract_strided_slice %197 {offsets = [0, 128], sizes = [8, 64], strides = [1, 1]} : vector<8x256xf32> to vector<8x64xf32>
    %202 = arith.mulf %200, %201 : vector<8x64xf32>
    %203 = arith.addf %199, %202 : vector<8x64xf32>
    %204 = vector.extract_strided_slice %197 {offsets = [0, 192], sizes = [8, 64], strides = [1, 1]} : vector<8x256xf32> to vector<8x64xf32>
    %205 = math.tanh %203 : vector<8x64xf32>
    %206 = arith.mulf %204, %205 : vector<8x64xf32>
    %207 = arith.truncf %206 : vector<8x64xf32> to vector<8x64xbf16>
    %cst_88 = arith.constant dense<0.000000e+00> : vector<8x256xf32>
    %208 = tpu.matmul %207, %20, %cst_88 {dimension_numbers = #tpu.dot_dimension_numbers<[1], [0], [0], [1], [0, 0, 1, 1], [], []>} : vector<8x64xbf16>, vector<64x256xbf16>, vector<8x256xf32> -> vector<8x256xf32>
    %cst_89 = arith.constant dense<0.000000e+00> : vector<8x256xf32>
    %209 = tpu.matmul %207, %21, %cst_89 {dimension_numbers = #tpu.dot_dimension_numbers<[1], [0], [0], [1], [0, 0, 1, 1], [], []>} : vector<8x64xbf16>, vector<64x256xbf16>, vector<8x256xf32> -> vector<8x256xf32>
    %c56_90 = arith.constant 56 : index
    %c0_91 = arith.constant 0 : index
    %210 = vector.load %arg6[%c56_90, %c0_91] : memref<64x256xf32, #tpu.memory_space<vmem>>, vector<8x256xf32>
    %211 = arith.addf %210, %208 : vector<8x256xf32>
    %c56_92 = arith.constant 56 : index
    %c0_93 = arith.constant 0 : index
    %212 = vector.load %arg6[%c56_92, %c0_93] : memref<64x256xf32, #tpu.memory_space<vmem>>, vector<8x256xf32>
    tpu.vector_store %arg6[%c56_92, %c0_93], %211 {strides = array<i32>} : memref<64x256xf32, #tpu.memory_space<vmem>>, vector<8x256xf32>,
    %c0_94 = arith.constant 0 : index
    %c0_95 = arith.constant 0 : index
    %213 = vector.load %arg6[%c0_94, %c0_95] : memref<64x256xf32, #tpu.memory_space<vmem>>, vector<8x256xf32>
    %214 = arith.addf %213, %209 : vector<8x256xf32>
    %c0_96 = arith.constant 0 : index
    %c0_97 = arith.constant 0 : index
    %215 = vector.load %arg6[%c0_96, %c0_97] : memref<64x256xf32, #tpu.memory_space<vmem>>, vector<8x256xf32>
    tpu.vector_store %arg6[%c0_96, %c0_97], %214 {strides = array<i32>} : memref<64x256xf32, #tpu.memory_space<vmem>>, vector<8x256xf32>,
    %c224 = arith.constant 224 : index
    %c0_98 = arith.constant 0 : index
    %216 = vector.load %arg2[%c224, %c0_98] : memref<496x256xbf16, #tpu.memory_space<vmem>>, vector<64x256xbf16>
    %cst_99 = arith.constant 0.000000e+00 : f32
    %217 = vector.broadcast %cst_99 : f32 to vector<8x64xf32>
    %c0_100 = arith.constant 0 : index
    %c0_101 = arith.constant 0 : index
    %218 = vector.load %arg6[%c0_100, %c0_101] : memref<64x256xf32, #tpu.memory_space<vmem>>, vector<8x256xf32>
    %219 = arith.mulf %8, %218 : vector<8x256xf32>
    %220 = math.tanh %219 : vector<8x256xf32>
    %221 = arith.mulf %8, %220 : vector<8x256xf32>
    %222 = arith.addf %221, %11 : vector<8x256xf32>
    %223 = vector.extract_strided_slice %222 {offsets = [0, 64], sizes = [8, 64], strides = [1, 1]} : vector<8x256xf32> to vector<8x64xf32>
    %224 = arith.mulf %223, %217 : vector<8x64xf32>
    %225 = vector.extract_strided_slice %222 {offsets = [0, 0], sizes = [8, 64], strides = [1, 1]} : vector<8x256xf32> to vector<8x64xf32>
    %226 = vector.extract_strided_slice %222 {offsets = [0, 128], sizes = [8, 64], strides = [1, 1]} : vector<8x256xf32> to vector<8x64xf32>
    %227 = arith.mulf %225, %226 : vector<8x64xf32>
    %228 = arith.addf %224, %227 : vector<8x64xf32>
    %229 = vector.extract_strided_slice %222 {offsets = [0, 192], sizes = [8, 64], strides = [1, 1]} : vector<8x256xf32> to vector<8x64xf32>
    %230 = math.tanh %228 : vector<8x64xf32>
    %231 = arith.mulf %229, %230 : vector<8x64xf32>
    %232 = arith.truncf %231 : vector<8x64xf32> to vector<8x64xbf16>
    %c8_102 = arith.constant 8 : index
    %c0_103 = arith.constant 0 : index
    %233 = vector.load %arg6[%c8_102, %c0_103] : memref<64x256xf32, #tpu.memory_space<vmem>>, vector<8x256xf32>
    %cst_104 = arith.constant dense<0.000000e+00> : vector<8x256xf32>
    %234 = tpu.matmul %232, %216, %cst_104 {dimension_numbers = #tpu.dot_dimension_numbers<[1], [0], [0], [1], [0, 0, 1, 1], [], []>} : vector<8x64xbf16>, vector<64x256xbf16>, vector<8x256xf32> -> vector<8x256xf32>
    %235 = arith.addf %233, %234 : vector<8x256xf32>
    %236 = arith.mulf %8, %235 : vector<8x256xf32>
    %237 = math.tanh %236 : vector<8x256xf32>
    %238 = arith.mulf %8, %237 : vector<8x256xf32>
    %239 = arith.addf %238, %11 : vector<8x256xf32>
    %240 = vector.extract_strided_slice %239 {offsets = [0, 64], sizes = [8, 64], strides = [1, 1]} : vector<8x256xf32> to vector<8x64xf32>
    %241 = arith.mulf %240, %228 : vector<8x64xf32>
    %242 = vector.extract_strided_slice %239 {offsets = [0, 0], sizes = [8, 64], strides = [1, 1]} : vector<8x256xf32> to vector<8x64xf32>
    %243 = vector.extract_strided_slice %239 {offsets = [0, 128], sizes = [8, 64], strides = [1, 1]} : vector<8x256xf32> to vector<8x64xf32>
    %244 = arith.mulf %242, %243 : vector<8x64xf32>
    %245 = arith.addf %241, %244 : vector<8x64xf32>
    %246 = vector.extract_strided_slice %239 {offsets = [0, 192], sizes = [8, 64], strides = [1, 1]} : vector<8x256xf32> to vector<8x64xf32>
    %247 = math.tanh %245 : vector<8x64xf32>
    %248 = arith.mulf %246, %247 : vector<8x64xf32>
    %249 = arith.truncf %248 : vector<8x64xf32> to vector<8x64xbf16>
    %c16_105 = arith.constant 16 : index
    %c0_106 = arith.constant 0 : index
    %250 = vector.load %arg6[%c16_105, %c0_106] : memref<64x256xf32, #tpu.memory_space<vmem>>, vector<8x256xf32>
    %cst_107 = arith.constant dense<0.000000e+00> : vector<8x256xf32>
    %251 = tpu.matmul %249, %216, %cst_107 {dimension_numbers = #tpu.dot_dimension_numbers<[1], [0], [0], [1], [0, 0, 1, 1], [], []>} : vector<8x64xbf16>, vector<64x256xbf16>, vector<8x256xf32> -> vector<8x256xf32>
    %252 = arith.addf %250, %251 : vector<8x256xf32>
    %253 = arith.mulf %8, %252 : vector<8x256xf32>
    %254 = math.tanh %253 : vector<8x256xf32>
    %255 = arith.mulf %8, %254 : vector<8x256xf32>
    %256 = arith.addf %255, %11 : vector<8x256xf32>
    %257 = vector.extract_strided_slice %256 {offsets = [0, 64], sizes = [8, 64], strides = [1, 1]} : vector<8x256xf32> to vector<8x64xf32>
    %258 = arith.mulf %257, %245 : vector<8x64xf32>
    %259 = vector.extract_strided_slice %256 {offsets = [0, 0], sizes = [8, 64], strides = [1, 1]} : vector<8x256xf32> to vector<8x64xf32>
    %260 = vector.extract_strided_slice %256 {offsets = [0, 128], sizes = [8, 64], strides = [1, 1]} : vector<8x256xf32> to vector<8x64xf32>
    %261 = arith.mulf %259, %260 : vector<8x64xf32>
    %262 = arith.addf %258, %261 : vector<8x64xf32>
    %263 = vector.extract_strided_slice %256 {offsets = [0, 192], sizes = [8, 64], strides = [1, 1]} : vector<8x256xf32> to vector<8x64xf32>
    %264 = math.tanh %262 : vector<8x64xf32>
    %265 = arith.mulf %263, %264 : vector<8x64xf32>
    %266 = arith.truncf %265 : vector<8x64xf32> to vector<8x64xbf16>
    %c24_108 = arith.constant 24 : index
    %c0_109 = arith.constant 0 : index
    %267 = vector.load %arg6[%c24_108, %c0_109] : memref<64x256xf32, #tpu.memory_space<vmem>>, vector<8x256xf32>
    %cst_110 = arith.constant dense<0.000000e+00> : vector<8x256xf32>
    %268 = tpu.matmul %266, %216, %cst_110 {dimension_numbers = #tpu.dot_dimension_numbers<[1], [0], [0], [1], [0, 0, 1, 1], [], []>} : vector<8x64xbf16>, vector<64x256xbf16>, vector<8x256xf32> -> vector<8x256xf32>
    %269 = arith.addf %267, %268 : vector<8x256xf32>
    %270 = arith.mulf %8, %269 : vector<8x256xf32>
    %271 = math.tanh %270 : vector<8x256xf32>
    %272 = arith.mulf %8, %271 : vector<8x256xf32>
    %273 = arith.addf %272, %11 : vector<8x256xf32>
    %274 = vector.extract_strided_slice %273 {offsets = [0, 64], sizes = [8, 64], strides = [1, 1]} : vector<8x256xf32> to vector<8x64xf32>
    %275 = arith.mulf %274, %262 : vector<8x64xf32>
    %276 = vector.extract_strided_slice %273 {offsets = [0, 0], sizes = [8, 64], strides = [1, 1]} : vector<8x256xf32> to vector<8x64xf32>
    %277 = vector.extract_strided_slice %273 {offsets = [0, 128], sizes = [8, 64], strides = [1, 1]} : vector<8x256xf32> to vector<8x64xf32>
    %278 = arith.mulf %276, %277 : vector<8x64xf32>
    %279 = arith.addf %275, %278 : vector<8x64xf32>
    %280 = vector.extract_strided_slice %273 {offsets = [0, 192], sizes = [8, 64], strides = [1, 1]} : vector<8x256xf32> to vector<8x64xf32>
    %281 = math.tanh %279 : vector<8x64xf32>
    %282 = arith.mulf %280, %281 : vector<8x64xf32>
    %283 = arith.truncf %282 : vector<8x64xf32> to vector<8x64xbf16>
    %c32_111 = arith.constant 32 : index
    %c0_112 = arith.constant 0 : index
    %284 = vector.load %arg6[%c32_111, %c0_112] : memref<64x256xf32, #tpu.memory_space<vmem>>, vector<8x256xf32>
    %cst_113 = arith.constant dense<0.000000e+00> : vector<8x256xf32>
    %285 = tpu.matmul %283, %216, %cst_113 {dimension_numbers = #tpu.dot_dimension_numbers<[1], [0], [0], [1], [0, 0, 1, 1], [], []>} : vector<8x64xbf16>, vector<64x256xbf16>, vector<8x256xf32> -> vector<8x256xf32>
    %286 = arith.addf %284, %285 : vector<8x256xf32>
    %287 = arith.mulf %8, %286 : vector<8x256xf32>
    %288 = math.tanh %287 : vector<8x256xf32>
    %289 = arith.mulf %8, %288 : vector<8x256xf32>
    %290 = arith.addf %289, %11 : vector<8x256xf32>
    %291 = vector.extract_strided_slice %290 {offsets = [0, 64], sizes = [8, 64], strides = [1, 1]} : vector<8x256xf32> to vector<8x64xf32>
    %292 = arith.mulf %291, %279 : vector<8x64xf32>
    %293 = vector.extract_strided_slice %290 {offsets = [0, 0], sizes = [8, 64], strides = [1, 1]} : vector<8x256xf32> to vector<8x64xf32>
    %294 = vector.extract_strided_slice %290 {offsets = [0, 128], sizes = [8, 64], strides = [1, 1]} : vector<8x256xf32> to vector<8x64xf32>
    %295 = arith.mulf %293, %294 : vector<8x64xf32>
    %296 = arith.addf %292, %295 : vector<8x64xf32>
    %297 = vector.extract_strided_slice %290 {offsets = [0, 192], sizes = [8, 64], strides = [1, 1]} : vector<8x256xf32> to vector<8x64xf32>
    %298 = math.tanh %296 : vector<8x64xf32>
    %299 = arith.mulf %297, %298 : vector<8x64xf32>
    %300 = arith.truncf %299 : vector<8x64xf32> to vector<8x64xbf16>
    %c40_114 = arith.constant 40 : index
    %c0_115 = arith.constant 0 : index
    %301 = vector.load %arg6[%c40_114, %c0_115] : memref<64x256xf32, #tpu.memory_space<vmem>>, vector<8x256xf32>
    %cst_116 = arith.constant dense<0.000000e+00> : vector<8x256xf32>
    %302 = tpu.matmul %300, %216, %cst_116 {dimension_numbers = #tpu.dot_dimension_numbers<[1], [0], [0], [1], [0, 0, 1, 1], [], []>} : vector<8x64xbf16>, vector<64x256xbf16>, vector<8x256xf32> -> vector<8x256xf32>
    %303 = arith.addf %301, %302 : vector<8x256xf32>
    %304 = arith.mulf %8, %303 : vector<8x256xf32>
    %305 = math.tanh %304 : vector<8x256xf32>
    %306 = arith.mulf %8, %305 : vector<8x256xf32>
    %307 = arith.addf %306, %11 : vector<8x256xf32>
    %308 = vector.extract_strided_slice %307 {offsets = [0, 64], sizes = [8, 64], strides = [1, 1]} : vector<8x256xf32> to vector<8x64xf32>
    %309 = arith.mulf %308, %296 : vector<8x64xf32>
    %310 = vector.extract_strided_slice %307 {offsets = [0, 0], sizes = [8, 64], strides = [1, 1]} : vector<8x256xf32> to vector<8x64xf32>
    %311 = vector.extract_strided_slice %307 {offsets = [0, 128], sizes = [8, 64], strides = [1, 1]} : vector<8x256xf32> to vector<8x64xf32>
    %312 = arith.mulf %310, %311 : vector<8x64xf32>
    %313 = arith.addf %309, %312 : vector<8x64xf32>
    %314 = vector.extract_strided_slice %307 {offsets = [0, 192], sizes = [8, 64], strides = [1, 1]} : vector<8x256xf32> to vector<8x64xf32>
    %315 = math.tanh %313 : vector<8x64xf32>
    %316 = arith.mulf %314, %315 : vector<8x64xf32>
    %317 = arith.truncf %316 : vector<8x64xf32> to vector<8x64xbf16>
    %c48_117 = arith.constant 48 : index
    %c0_118 = arith.constant 0 : index
    %318 = vector.load %arg6[%c48_117, %c0_118] : memref<64x256xf32, #tpu.memory_space<vmem>>, vector<8x256xf32>
    %cst_119 = arith.constant dense<0.000000e+00> : vector<8x256xf32>
    %319 = tpu.matmul %317, %216, %cst_119 {dimension_numbers = #tpu.dot_dimension_numbers<[1], [0], [0], [1], [0, 0, 1, 1], [], []>} : vector<8x64xbf16>, vector<64x256xbf16>, vector<8x256xf32> -> vector<8x256xf32>
    %320 = arith.addf %318, %319 : vector<8x256xf32>
    %321 = arith.mulf %8, %320 : vector<8x256xf32>
    %322 = math.tanh %321 : vector<8x256xf32>
    %323 = arith.mulf %8, %322 : vector<8x256xf32>
    %324 = arith.addf %323, %11 : vector<8x256xf32>
    %325 = vector.extract_strided_slice %324 {offsets = [0, 64], sizes = [8, 64], strides = [1, 1]} : vector<8x256xf32> to vector<8x64xf32>
    %326 = arith.mulf %325, %313 : vector<8x64xf32>
    %327 = vector.extract_strided_slice %324 {offsets = [0, 0], sizes = [8, 64], strides = [1, 1]} : vector<8x256xf32> to vector<8x64xf32>
    %328 = vector.extract_strided_slice %324 {offsets = [0, 128], sizes = [8, 64], strides = [1, 1]} : vector<8x256xf32> to vector<8x64xf32>
    %329 = arith.mulf %327, %328 : vector<8x64xf32>
    %330 = arith.addf %326, %329 : vector<8x64xf32>
    %331 = vector.extract_strided_slice %324 {offsets = [0, 192], sizes = [8, 64], strides = [1, 1]} : vector<8x256xf32> to vector<8x64xf32>
    %332 = math.tanh %330 : vector<8x64xf32>
    %333 = arith.mulf %331, %332 : vector<8x64xf32>
    %334 = arith.truncf %333 : vector<8x64xf32> to vector<8x64xbf16>
    %c56_120 = arith.constant 56 : index
    %c0_121 = arith.constant 0 : index
    %335 = vector.load %arg6[%c56_120, %c0_121] : memref<64x256xf32, #tpu.memory_space<vmem>>, vector<8x256xf32>
    %cst_122 = arith.constant dense<0.000000e+00> : vector<8x256xf32>
    %336 = tpu.matmul %334, %216, %cst_122 {dimension_numbers = #tpu.dot_dimension_numbers<[1], [0], [0], [1], [0, 0, 1, 1], [], []>} : vector<8x64xbf16>, vector<64x256xbf16>, vector<8x256xf32> -> vector<8x256xf32>
    %337 = arith.addf %335, %336 : vector<8x256xf32>
    %338 = arith.mulf %8, %337 : vector<8x256xf32>
    %339 = math.tanh %338 : vector<8x256xf32>
    %340 = arith.mulf %8, %339 : vector<8x256xf32>
    %341 = arith.addf %340, %11 : vector<8x256xf32>
    %342 = vector.extract_strided_slice %341 {offsets = [0, 64], sizes = [8, 64], strides = [1, 1]} : vector<8x256xf32> to vector<8x64xf32>
    %343 = arith.mulf %342, %330 : vector<8x64xf32>
    %344 = vector.extract_strided_slice %341 {offsets = [0, 0], sizes = [8, 64], strides = [1, 1]} : vector<8x256xf32> to vector<8x64xf32>
    %345 = vector.extract_strided_slice %341 {offsets = [0, 128], sizes = [8, 64], strides = [1, 1]} : vector<8x256xf32> to vector<8x64xf32>
    %346 = arith.mulf %344, %345 : vector<8x64xf32>
    %347 = arith.addf %343, %346 : vector<8x64xf32>
    %348 = vector.extract_strided_slice %341 {offsets = [0, 192], sizes = [8, 64], strides = [1, 1]} : vector<8x256xf32> to vector<8x64xf32>
    %349 = math.tanh %347 : vector<8x64xf32>
    %350 = arith.mulf %348, %349 : vector<8x64xf32>
    %351 = arith.truncf %350 : vector<8x64xf32> to vector<8x64xbf16>
    %c288 = arith.constant 288 : index
    %c0_123 = arith.constant 0 : index
    %352 = vector.load %arg2[%c288, %c0_123] : memref<496x256xbf16, #tpu.memory_space<vmem>>, vector<64x128xbf16>
    %cst_124 = arith.constant dense<0.000000e+00> : vector<8x128xf32>
    %353 = tpu.matmul %351, %352, %cst_124 {dimension_numbers = #tpu.dot_dimension_numbers<[1], [0], [0], [1], [0, 0, 1, 1], [], []>} : vector<8x64xbf16>, vector<64x128xbf16>, vector<8x128xf32> -> vector<8x128xf32>
    %c0_125 = arith.constant 0 : index
    %c0_126 = arith.constant 0 : index
    %354 = vector.load %arg1[%c0_125, %c0_126] : memref<8x16xbf16, #tpu.memory_space<vmem>>, vector<8x16xbf16>
    %c352 = arith.constant 352 : index
    %c0_127 = arith.constant 0 : index
    %355 = vector.load %arg2[%c352, %c0_127] : memref<496x256xbf16, #tpu.memory_space<vmem>>, vector<16x128xbf16>
    %cst_128 = arith.constant dense<0.000000e+00> : vector<8x128xf32>
    %356 = tpu.matmul %354, %355, %cst_128 {dimension_numbers = #tpu.dot_dimension_numbers<[1], [0], [0], [1], [0, 0, 1, 1], [], []>} : vector<8x16xbf16>, vector<16x128xbf16>, vector<8x128xf32> -> vector<8x128xf32>
    %357 = arith.addf %353, %356 : vector<8x128xf32>
    %c16_129 = arith.constant 16 : index
    %c0_130 = arith.constant 0 : index
    %358 = vector.load %arg3[%c16_129, %c0_130] : memref<32x256xf32, #tpu.memory_space<vmem>>, vector<1x128xf32>
    %359 = vector.broadcast %358 : vector<1x128xf32> to vector<8x128xf32>
    %360 = arith.addf %357, %359 : vector<8x128xf32>
    %cst_131 = arith.constant 0.000000e+00 : f32
    %361 = vector.broadcast %cst_131 : f32 to vector<8x128xf32>
    %362 = arith.maximumf %360, %361 : vector<8x128xf32>
    %363 = arith.truncf %362 : vector<8x128xf32> to vector<8x128xbf16>
    %c368 = arith.constant 368 : index
    %c0_132 = arith.constant 0 : index
    %364 = vector.load %arg2[%c368, %c0_132] : memref<496x256xbf16, #tpu.memory_space<vmem>>, vector<128x128xbf16>
    %cst_133 = arith.constant dense<0.000000e+00> : vector<8x128xf32>
    %365 = tpu.matmul %363, %364, %cst_133 {dimension_numbers = #tpu.dot_dimension_numbers<[1], [0], [0], [1], [0, 0, 1, 1], [], []>} : vector<8x128xbf16>, vector<128x128xbf16>, vector<8x128xf32> -> vector<8x128xf32>
    %c24_134 = arith.constant 24 : index
    %c0_135 = arith.constant 0 : index
    %366 = vector.load %arg3[%c24_134, %c0_135] : memref<32x256xf32, #tpu.memory_space<vmem>>, vector<1x128xf32>
    %367 = vector.broadcast %366 : vector<1x128xf32> to vector<8x128xf32>
    %368 = arith.addf %365, %367 : vector<8x128xf32>
    %369 = tpu.iota {dimensions = array<i32: 1>} : vector<8x128xi32>
    %cst_136 = arith.constant 5.000000e-01 : f32
    %370 = vector.broadcast %cst_136 : f32 to vector<8x128xf32>
    %371 = arith.mulf %370, %368 : vector<8x128xf32>
    %372 = math.tanh %371 : vector<8x128xf32>
    %cst_137 = arith.constant 5.000000e-01 : f32
    %373 = vector.broadcast %cst_137 : f32 to vector<8x128xf32>
    %374 = arith.mulf %373, %372 : vector<8x128xf32>
    %cst_138 = arith.constant 5.000000e-01 : f32
    %375 = vector.broadcast %cst_138 : f32 to vector<8x128xf32>
    %376 = arith.addf %374, %375 : vector<8x128xf32>
    %cst_139 = arith.constant 0.000000e+00 : f32
    %377 = vector.broadcast %cst_139 : f32 to vector<8x128xf32>
    %378 = arith.maximumf %368, %377 : vector<8x128xf32>
    %379 = math.absf %368 : vector<8x128xf32>
    %cst_140 = arith.constant 0.000000e+00 : f32
    %380 = vector.broadcast %cst_140 : f32 to vector<8x128xf32>
    %381 = arith.subf %380, %379 : vector<8x128xf32>
    %382 = math.exp %381 : vector<8x128xf32>
    %383 = math.log1p %382 : vector<8x128xf32>
    %384 = arith.addf %378, %383 : vector<8x128xf32>
    %c0_i32 = arith.constant 0 : i32
    %385 = vector.broadcast %c0_i32 : i32 to vector<8x128xi32>
    %386 = arith.cmpi eq, %369, %385 : vector<8x128xi32>
    %387 = arith.select %386, %376, %384 : vector<8x128xi1>, vector<8x128xf32>
    %c0_141 = arith.constant 0 : index
    %c0_142 = arith.constant 0 : index
    %388 = vector.load %arg4[%c0_141, %c0_142] : memref<8x128xf32, #tpu.memory_space<vmem>>, vector<8x128xf32>
    tpu.vector_store %arg4[%c0_141, %c0_142], %387 {strides = array<i32>} : memref<8x128xf32, #tpu.memory_space<vmem>>, vector<8x128xf32>,
    return
  }
}

</mosaic_0001>

<llo_original>
// kernel: _forward.1
$region0: #{_forward.1}
  #allocation0 [shape = 'u32[]', space=smem, size = 0x4, offset = 0x4, fixed_abs, tag = 'smem constant byte address 0x4 - core index']
  #allocation1 [shape = 'u32[144,128]{1,0:T(1,128)}', space=vmem, size = 0x12000, scoped, tag = 'internal scratch']
  #allocation2 [shape = 'f32[64,256]{1,0:T(8,128)}', space=vmem, size = 0x10000, scoped, tag = 'scratch operand']
  #allocation3 [shape = 'f32[64,256]{1,0:T(8,128)}', space=vmem, size = 0x10000, scoped, tag = 'scratch operand']
  %s0 = inlined_call_operand.vmem [shape: bf16[64,32], index: 0, kind: input, shape index: {}]
  %s1 = inlined_call_operand.vmem [shape: bf16[8,16], index: 1, kind: input, shape index: {}]
  %s2 = inlined_call_operand.hbm [shape: bf16[496,256], index: 2, kind: input, shape index: {}]
  %s3 = inlined_call_operand.vmem [shape: f32[32,256], index: 3, kind: input, shape index: {}]
  %s4 = inlined_call_operand.vmem [shape: f32[8,128], index: 4, kind: output, shape index: {}]
  %s5 = sld [smem:[#allocation0]]
  $region30: #{_forward.1} parent=0
    _
  %s7 = ssub.s32 1, %s5
  %s8 = scalar_select 0, %s7, %s5
  $region1: #{_forward.1} parent=0
    #allocation4 [shape = 'u8[253952]{0}', space=vmem, size = 0x3e000, scoped, tag = 'input window, operand 2, single buffered']
    #allocation5 [shape = 's32[1]{0}', space=sflag, size = 0x4, scoped, tag = 'scoped memory for _forward.1']
    %9 = vsyncpa [#allocation5], 0
    // Predicated region
    $region2: #{_forward.1} parent=1 // pred_check
      _
    $region3: #{_forward.1} parent=1 // pred_check_branch
      %11 = sbr.rel (0) target = $region5
    $region4: #{_forward.1} parent=1 // pred_region
      _
    $region5: #{_forward.1} parent=1 // pred_fallthru
      _
    // Predicated region
    $region6: #{_forward.1} parent=1 // pred_check
      _
    $region7: #{_forward.1} parent=1 // pred_check_branch
      %13 = sbr.rel (0) target = $region9
    $region8: #{_forward.1} parent=1 // pred_region
      _
    $region9: #{_forward.1} parent=1 // pred_fallthru
      _
    // Predicated region
    $region10: #{_forward.1} parent=1 // pred_check
      _
    $region11: #{_forward.1} parent=1 // pred_check_branch
      %15 = sbr.rel (0) target = $region13
    $region12: #{_forward.1} parent=1 // pred_region
      %s17 = ssub.s32 7936, 7936
      %18 = vsyncadd [#allocation5], %s17
      %s19 = sshll.u32 [#allocation4], 4
      %s20 = int_to_ptr.vmem [resolvable:$true] %s19
      %25 = dma.hbm_to_vmem [thread:$0]  %s2, 7936, %s20, [#allocation5], 128, 128, 8
    $region13: #{_forward.1} parent=1 // pred_fallthru
      _
    // Predicated region
    $region14: #{_forward.1} parent=1 // pred_check
      _
    $region15: #{_forward.1} parent=1 // pred_check_branch
      %27 = sbr.rel (0) target = $region17
    $region16: #{_forward.1} parent=1 // pred_region
      _
    $region17: #{_forward.1} parent=1 // pred_fallthru
      _
    // Predicated region
    $region18: #{_forward.1} parent=1 // pred_check
      _
    $region19: #{_forward.1} parent=1 // pred_check_branch
      %29 = sbr.rel (0) target = $region21
    $region20: #{_forward.1} parent=1 // pred_region
      %30 = dma.done [#allocation5], 7936
    $region21: #{_forward.1} parent=1 // pred_fallthru
      _
    %v32 = vlaneseq
    %v33 = vand.u32 %v32, 127
    %v34 = vadd.s32 %v33, 128
    %vm35 = vcmp.ge.s32.totalorder %v33, 128
    %vm36 = vcmp.ge.s32.totalorder %v34, 128
    %vm37 = vcmp.lt.s32.totalorder %v33, 192
    %vm38 = vcmp.lt.s32.totalorder %v34, 192
    %vm39 = vmand %vm35, %vm37
    %vm40 = vmand %vm36, %vm38
    %v41 = vsel %vm39, 1.0, 0.5
    %v42 = vsel %vm40, 1.0, 0.5
    %v43 = vsel %vm39, 0.0, 0.5
    %v44 = vsel %vm40, 0.0, 0.5
    %v45 = vld [vmem:[%s0] sm:$0xf]
    %v46 = vld [vmem:[%s0 + $0x4] sm:$0xf]
    %v47 = vld [vmem:[%s0 + $0x8] sm:$0xf]
    %v48 = vld [vmem:[%s0 + $0xc] sm:$0xf]
    %v49 = vld [vmem:[%s0 + $0x10] sm:$0xf]
    %v50 = vld [vmem:[%s0 + $0x14] sm:$0xf]
    %v51 = vld [vmem:[%s0 + $0x18] sm:$0xf]
    %v52 = vld [vmem:[%s0 + $0x1c] sm:$0xf]
    %v53 = vld [vmem:[#allocation4] sm:$0xff]
    %v54 = vld [vmem:[#allocation4 + $0x8] sm:$0xff]
    %v55 = vld [vmem:[#allocation4 + $0x10] sm:$0xff]
    %v56 = vld [vmem:[#allocation4 + $0x18] sm:$0xff]
    %v57 = vld [vmem:[%s3] ss:$8 sm:$0x3]
    %v59 = vlaneseq
    %v60 = vshrl.u32 %v59, 7
    %v61 = vsub.s32 0, %v60
    %v62 = vrot.slane %v57, %v61
    %v63 = vlaneseq
    %v64 = vshrl.u32 %v63, 7
    %v65 = vsub.s32 1, %v64
    %v66 = vrot.slane %v57, %v65
    %v77 = vunpack.c.l.b16 %v45
    %v78 = vunpack.c.l.b16 %v46
    %v79 = vunpack.c.l.b16 %v47
    %v80 = vunpack.c.l.b16 %v48
    %v81 = vunpack.c.l.b16 %v49
    %v82 = vunpack.c.l.b16 %v50
    %v83 = vunpack.c.l.b16 %v51
    %v84 = vunpack.c.l.b16 %v52
    %v85 = vpack.c.b16 %v78, %v77
    %v86 = vpack.c.b16 %v80, %v79
    %v87 = vpack.c.b16 %v82, %v81
    %v88 = vpack.c.b16 %v84, %v83
    %v93 = vunpack.c.l.b16 %v53
    %v94 = vunpack.c.h.b16 %v53
    %v95 = vunpack.c.l.b16 %v54
    %v96 = vunpack.c.h.b16 %v54
    %v97 = vunpack.c.l.b16 %v55
    %v98 = vunpack.c.h.b16 %v55
    %v99 = vunpack.c.l.b16 %v56
    %v100 = vunpack.c.h.b16 %v56
    %v101 = vpack.c.b16 %v95, %v93
    %v102 = vpack.c.b16 %v96, %v94
    %v103 = vpack.c.b16 %v99, %v97
    %v104 = vpack.c.b16 %v100, %v98
    %vm109 = vcmask 261120
    %v111 = vsel %vm109, %v85, 0
    %v114 = vsel %vm109, %v86, 0
    %v117 = vsel %vm109, %v87, 0
    %v120 = vsel %vm109, %v88, 0
    %122 = vmatprep.subr.bf16.mxu0 0
    %123 = vmatpush1.bf16.msra.mxu0 0
    %124 = vmatprep.subr.bf16.mxu0 0
    %125 = vmatpush1.bf16.msra.mxu0 0
    %126 = vmatprep.subr.bf16.mxu0 0
    %127 = vmatpush1.bf16.msra.mxu0 0
    %128 = vmatprep.subr.bf16.mxu0 0
    %129 = vmatpush1.bf16.msra.mxu0 0
    %130 = vmatprep.subr.bf16.mxu0 0
    %131 = vmatpush1.bf16.msra.mxu0 0
    %132 = vmatprep.subr.bf16.mxu0 0
    %133 = vmatpush1.bf16.msra.mxu0 0
    %134 = vmatprep.subr.bf16.mxu0 %v104
    %135 = vmatpush1.bf16.msra.mxu0 %v103
    %136 = vmatprep.subr.bf16.mxu0 %v102
    %137 = vmatpush1.bf16.msra.mxu0 %v101
    %138 = vmatprep.subr.bf16.mxu0 0
    %139 = vmatpush2.bf16.msra.mxu0 0
    %140 = vmatprep.subr.bf16.mxu0 0
    %141 = vmatpush2.bf16.msra.mxu0 0
    %142 = vmatprep.subr.bf16.mxu0 0
    %143 = vmatpush2.bf16.msra.mxu0 0
    %144 = vmatprep.subr.bf16.mxu0 0
    %145 = vmatpush2.bf16.msra.mxu0 0
    %146 = vmatprep.subr.bf16.mxu0 0
    %147 = vmatpush2.bf16.msra.mxu0 0
    %148 = vmatprep.subr.bf16.mxu0 0
    %149 = vmatpush2.bf16.msra.mxu0 0
    %150 = vmatprep.subr.bf16.mxu0 0
    %151 = vmatpush2.bf16.msra.mxu0 0
    %152 = vmatprep.subr.bf16.mxu0 0
    %153 = vmatpush2.bf16.msra.mxu0 0
    %154 = vmatprep.mubr.bf16.mxu0 0
    %155 = vmatmul.mubr.bf16.gmra.mxu0 %v111
    %v156 = vpop.f32.mrf.mxu0
    %v157 = vadd.f32 %v62, %v156
    %v158 = vpop.f32.mrf.mxu0
    %v159 = vadd.f32 %v66, %v158
    %v160 = vpop.f32.mrf.mxu0
    %v161 = vadd.f32 %v62, %v160
    %v162 = vpop.f32.mrf.mxu0
    %v163 = vadd.f32 %v66, %v162
    %164 = vmatprep.mubr.bf16.mxu0 0
    %165 = vmatmul.mubr.bf16.gmra.mxu0 %v114
    %v166 = vpop.f32.mrf.mxu0
    %v167 = vadd.f32 %v62, %v166
    %v168 = vpop.f32.mrf.mxu0
    %v169 = vadd.f32 %v66, %v168
    %v170 = vpop.f32.mrf.mxu0
    %v171 = vadd.f32 %v62, %v170
    %v172 = vpop.f32.mrf.mxu0
    %v173 = vadd.f32 %v66, %v172
    %174 = vmatprep.mubr.bf16.mxu0 0
    %175 = vmatmul.mubr.bf16.gmra.mxu0 %v117
    %v176 = vpop.f32.mrf.mxu0
    %v177 = vadd.f32 %v62, %v176
    %v178 = vpop.f32.mrf.mxu0
    %v179 = vadd.f32 %v66, %v178
    %v180 = vpop.f32.mrf.mxu0
    %v181 = vadd.f32 %v62, %v180
    %v182 = vpop.f32.mrf.mxu0
    %v183 = vadd.f32 %v66, %v182
    %184 = vmatprep.mubr.bf16.mxu0 0
    %185 = vmatmul.mubr.bf16.gmra.mxu0 %v120
    %v186 = vpop.f32.mrf.mxu0
    %v187 = vadd.f32 %v62, %v186
    %v188 = vpop.f32.mrf.mxu0
    %v189 = vadd.f32 %v66, %v188
    %v190 = vpop.f32.mrf.mxu0
    %v191 = vadd.f32 %v62, %v190
    %v192 = vpop.f32.mrf.mxu0
    %v193 = vadd.f32 %v66, %v192
    %194 = vdwg.mxu0
    %195 = vst [vmem:[#allocation2] sm:$0xff] %v157
    %196 = vst [vmem:[#allocation2 + $0x8] sm:$0xff] %v159
    %197 = vst [vmem:[#allocation2 + $0x10] sm:$0xff] %v161
    %198 = vst [vmem:[#allocation2 + $0x18] sm:$0xff] %v163
    %199 = vst [vmem:[#allocation2 + $0x20] sm:$0xff] %v167
    %200 = vst [vmem:[#allocation2 + $0x28] sm:$0xff] %v169
    %201 = vst [vmem:[#allocation2 + $0x30] sm:$0xff] %v171
    %202 = vst [vmem:[#allocation2 + $0x38] sm:$0xff] %v173
    %203 = vst [vmem:[#allocation2 + $0x40] sm:$0xff] %v177
    %204 = vst [vmem:[#allocation2 + $0x48] sm:$0xff] %v179
    %205 = vst [vmem:[#allocation2 + $0x50] sm:$0xff] %v181
    %206 = vst [vmem:[#allocation2 + $0x58] sm:$0xff] %v183
    %207 = vst [vmem:[#allocation2 + $0x60] sm:$0xff] %v187
    %208 = vst [vmem:[#allocation2 + $0x68] sm:$0xff] %v189
    %209 = vst [vmem:[#allocation2 + $0x70] sm:$0xff] %v191
    %210 = vst [vmem:[#allocation2 + $0x78] sm:$0xff] %v193
    %v211 = vld [vmem:[#allocation4 + $0x20] sm:$0xff]
    %v212 = vld [vmem:[#allocation4 + $0x28] sm:$0xff]
    %v213 = vld [vmem:[#allocation4 + $0x30] sm:$0xff]
    %v214 = vld [vmem:[#allocation4 + $0x38] sm:$0xff]
    %v215 = vld [vmem:[#allocation4 + $0x40] sm:$0xff]
    %v216 = vld [vmem:[#allocation4 + $0x48] sm:$0xff]
    %v217 = vld [vmem:[#allocation4 + $0x50] sm:$0xff]
    %v218 = vld [vmem:[#allocation4 + $0x58] sm:$0xff]
    %v219 = vld [vmem:[#allocation4 + $0x60] sm:$0xff]
    %v220 = vld [vmem:[#allocation4 + $0x68] sm:$0xff]
    %v221 = vld [vmem:[#allocation4 + $0x70] sm:$0xff]
    %v222 = vld [vmem:[#allocation4 + $0x78] sm:$0xff]
    %v223 = vld [vmem:[#allocation4 + $0x80] sm:$0xff]
    %v224 = vld [vmem:[#allocation4 + $0x88] sm:$0xff]
    %v225 = vld [vmem:[#allocation4 + $0x90] sm:$0xff]
    %v226 = vld [vmem:[#allocation4 + $0x98] sm:$0xff]
    %v227 = vld [vmem:[#allocation4 + $0xa0] sm:$0xff]
    %v228 = vld [vmem:[#allocation4 + $0xa8] sm:$0xff]
    %v229 = vld [vmem:[#allocation4 + $0xb0] sm:$0xff]
    %v230 = vld [vmem:[#allocation4 + $0xb8] sm:$0xff]
    %v231 = vld [vmem:[#allocation4 + $0xc0] sm:$0xff]
    %v232 = vld [vmem:[#allocation4 + $0xc8] sm:$0xff]
    %v233 = vld [vmem:[#allocation4 + $0xd0] sm:$0xff]
    %v234 = vld [vmem:[#allocation4 + $0xd8] sm:$0xff]
    %s235 = scalar_lea.vmem %s3, 16
    %v236 = vld [vmem:[%s235] ss:$8 sm:$0x3]
    %v238 = vlaneseq
    %v239 = vshrl.u32 %v238, 7
    %v240 = vsub.s32 0, %v239
    %v241 = vrot.slane %v236, %v240
    %v242 = vlaneseq
    %v243 = vshrl.u32 %v242, 7
    %v244 = vsub.s32 1, %v243
    %v245 = vrot.slane %v236, %v244
    %v248 = vld [vmem:[#allocation2] sm:$0xff]
    %v249 = vld [vmem:[#allocation2 + $0x8] sm:$0xff]
    %v250 = vmul.f32 %v41, %v248
    %v251 = vmul.f32 %v42, %v249
    %v252 = vtanh.pop %v250
    %v253 = vtanh.pop %v251
    %v254 = vmul.f32 %v41, %v252
    %v255 = vmul.f32 %v42, %v253
    %v256 = vadd.f32 %v254, %v43
    %v257 = vadd.f32 %v255, %v44
    %v258 = vmul.f32 %v256, 0.0
    %v259 = vmul.f32 %v256, %v257
    %261 = vrot.lane.b32.xlu0 %v259, 64
    %v262 = vpop.permute.xlu0 %261
    %v264 = vadd.f32 %v258, %v262
    %v265 = vtanh.pop %v264
    %v266 = vmul.f32 %v257, %v265
    %v267 = vpack.c.bf16 %v266, %v266
    %269 = vrot.lane.b32.xlu0 %v267, 64
    %v270 = vpop.permute.xlu0 %269
    %v279 = vunpack.c.l.b16 %v219
    %v280 = vunpack.c.h.b16 %v219
    %v281 = vunpack.c.l.b16 %v220
    %v282 = vunpack.c.h.b16 %v220
    %v283 = vunpack.c.l.b16 %v221
    %v284 = vunpack.c.h.b16 %v221
    %v285 = vunpack.c.l.b16 %v222
    %v286 = vunpack.c.h.b16 %v222
    %v287 = vunpack.c.l.b16 %v223
    %v288 = vunpack.c.h.b16 %v223
    %v289 = vunpack.c.l.b16 %v224
    %v290 = vunpack.c.h.b16 %v224
    %v291 = vunpack.c.l.b16 %v225
    %v292 = vunpack.c.h.b16 %v225
    %v293 = vunpack.c.l.b16 %v226
    %v294 = vunpack.c.h.b16 %v226
    %v295 = vpack.c.b16 %v281, %v279
    %v296 = vpack.c.b16 %v282, %v280
    %v297 = vpack.c.b16 %v285, %v283
    %v298 = vpack.c.b16 %v286, %v284
    %v299 = vpack.c.b16 %v289, %v287
    %v300 = vpack.c.b16 %v290, %v288
    %v301 = vpack.c.b16 %v293, %v291
    %v302 = vpack.c.b16 %v294, %v292
    %vm311 = vcmask 523264
    %v313 = vsel %vm311, %v270, 0
    %315 = vmatprep.subr.bf16.mxu0 0
    %316 = vmatpush1.bf16.msra.mxu0 0
    %317 = vmatprep.subr.bf16.mxu0 0
    %318 = vmatpush1.bf16.msra.mxu0 0
    %319 = vmatprep.subr.bf16.mxu0 0
    %320 = vmatpush1.bf16.msra.mxu0 0
    %321 = vmatprep.subr.bf16.mxu0 0
    %322 = vmatpush1.bf16.msra.mxu0 0
    %323 = vmatprep.subr.bf16.mxu0 %v302
    %324 = vmatpush1.bf16.msra.mxu0 %v301
    %325 = vmatprep.subr.bf16.mxu0 %v300
    %326 = vmatpush1.bf16.msra.mxu0 %v299
    %327 = vmatprep.subr.bf16.mxu0 %v298
    %328 = vmatpush1.bf16.msra.mxu0 %v297
    %329 = vmatprep.subr.bf16.mxu0 %v296
    %330 = vmatpush1.bf16.msra.mxu0 %v295
    %331 = vmatprep.subr.bf16.mxu0 0
    %332 = vmatpush2.bf16.msra.mxu0 0
    %333 = vmatprep.subr.bf16.mxu0 0
    %334 = vmatpush2.bf16.msra.mxu0 0
    %335 = vmatprep.subr.bf16.mxu0 0
    %336 = vmatpush2.bf16.msra.mxu0 0
    %337 = vmatprep.subr.bf16.mxu0 0
    %338 = vmatpush2.bf16.msra.mxu0 0
    %339 = vmatprep.subr.bf16.mxu0 0
    %340 = vmatpush2.bf16.msra.mxu0 0
    %341 = vmatprep.subr.bf16.mxu0 0
    %342 = vmatpush2.bf16.msra.mxu0 0
    %343 = vmatprep.subr.bf16.mxu0 0
    %344 = vmatpush2.bf16.msra.mxu0 0
    %345 = vmatprep.subr.bf16.mxu0 0
    %346 = vmatpush2.bf16.msra.mxu0 0
    %347 = vmatprep.mubr.bf16.mxu0 0
    %348 = vmatmul.mubr.bf16.gmra.mxu0 %v313
    %v349 = vpop.f32.mrf.mxu0
    %v350 = vadd.f32 %v241, %v349
    %v351 = vpop.f32.mrf.mxu0
    %v352 = vadd.f32 %v245, %v351
    %v353 = vpop.f32.mrf.mxu0
    %v354 = vpop.f32.mrf.mxu0
    %355 = vdwg.mxu0
    %356 = vst [vmem:[#allocation3] sm:$0xff] %v350
    %357 = vst [vmem:[#allocation3 + $0x8] sm:$0xff] %v352
    %v366 = vunpack.c.l.b16 %v227
    %v367 = vunpack.c.h.b16 %v227
    %v368 = vunpack.c.l.b16 %v228
    %v369 = vunpack.c.h.b16 %v228
    %v370 = vunpack.c.l.b16 %v229
    %v371 = vunpack.c.h.b16 %v229
    %v372 = vunpack.c.l.b16 %v230
    %v373 = vunpack.c.h.b16 %v230
    %v374 = vunpack.c.l.b16 %v231
    %v375 = vunpack.c.h.b16 %v231
    %v376 = vunpack.c.l.b16 %v232
    %v377 = vunpack.c.h.b16 %v232
    %v378 = vunpack.c.l.b16 %v233
    %v379 = vunpack.c.h.b16 %v233
    %v380 = vunpack.c.l.b16 %v234
    %v381 = vunpack.c.h.b16 %v234
    %v382 = vpack.c.b16 %v368, %v366
    %v383 = vpack.c.b16 %v369, %v367
    %v384 = vpack.c.b16 %v372, %v370
    %v385 = vpack.c.b16 %v373, %v371
    %v386 = vpack.c.b16 %v376, %v374
    %v387 = vpack.c.b16 %v377, %v375
    %v388 = vpack.c.b16 %v380, %v378
    %v389 = vpack.c.b16 %v381, %v379
    %398 = vmatprep.subr.bf16.mxu0 0
    %399 = vmatpush1.bf16.msra.mxu0 0
    %400 = vmatprep.subr.bf16.mxu0 0
    %401 = vmatpush1.bf16.msra.mxu0 0
    %402 = vmatprep.subr.bf16.mxu0 0
    %403 = vmatpush1.bf16.msra.mxu0 0
    %404 = vmatprep.subr.bf16.mxu0 0
    %405 = vmatpush1.bf16.msra.mxu0 0
    %406 = vmatprep.subr.bf16.mxu0 %v389
    %407 = vmatpush1.bf16.msra.mxu0 %v388
    %408 = vmatprep.subr.bf16.mxu0 %v387
    %409 = vmatpush1.bf16.msra.mxu0 %v386
    %410 = vmatprep.subr.bf16.mxu0 %v385
    %411 = vmatpush1.bf16.msra.mxu0 %v384
    %412 = vmatprep.subr.bf16.mxu0 %v383
    %413 = vmatpush1.bf16.msra.mxu0 %v382
    %414 = vmatprep.subr.bf16.mxu0 0
    %415 = vmatpush2.bf16.msra.mxu0 0
    %416 = vmatprep.subr.bf16.mxu0 0
    %417 = vmatpush2.bf16.msra.mxu0 0
    %418 = vmatprep.subr.bf16.mxu0 0
    %419 = vmatpush2.bf16.msra.mxu0 0
    %420 = vmatprep.subr.bf16.mxu0 0
    %421 = vmatpush2.bf16.msra.mxu0 0
    %422 = vmatprep.subr.bf16.mxu0 0
    %423 = vmatpush2.bf16.msra.mxu0 0
    %424 = vmatprep.subr.bf16.mxu0 0
    %425 = vmatpush2.bf16.msra.mxu0 0
    %426 = vmatprep.subr.bf16.mxu0 0
    %427 = vmatpush2.bf16.msra.mxu0 0
    %428 = vmatprep.subr.bf16.mxu0 0
    %429 = vmatpush2.bf16.msra.mxu0 0
    %430 = vmatprep.mubr.bf16.mxu0 0
    %431 = vmatmul.mubr.bf16.gmra.mxu0 %v313
    %v432 = vpop.f32.mrf.mxu0
    %v433 = vadd.f32 %v241, %v432
    %v434 = vpop.f32.mrf.mxu0
    %v435 = vadd.f32 %v245, %v434
    %v436 = vpop.f32.mrf.mxu0
    %v437 = vpop.f32.mrf.mxu0
    %438 = vdwg.mxu0
    %439 = vst [vmem:[#allocation3 + $0x70] sm:$0xff] %v433
    %440 = vst [vmem:[#allocation3 + $0x78] sm:$0xff] %v435
    %v441 = vld [vmem:[#allocation2 + $0x10] sm:$0xff]
    %v442 = vld [vmem:[#allocation2 + $0x18] sm:$0xff]
    %v451 = vunpack.c.l.b16 %v211
    %v452 = vunpack.c.h.b16 %v211
    %v453 = vunpack.c.l.b16 %v212
    %v454 = vunpack.c.h.b16 %v212
    %v455 = vunpack.c.l.b16 %v213
    %v456 = vunpack.c.h.b16 %v213
    %v457 = vunpack.c.l.b16 %v214
    %v458 = vunpack.c.h.b16 %v214
    %v459 = vunpack.c.l.b16 %v215
    %v460 = vunpack.c.h.b16 %v215
    %v461 = vunpack.c.l.b16 %v216
    %v462 = vunpack.c.h.b16 %v216
    %v463 = vunpack.c.l.b16 %v217
    %v464 = vunpack.c.h.b16 %v217
    %v465 = vunpack.c.l.b16 %v218
    %v466 = vunpack.c.h.b16 %v218
    %v467 = vpack.c.b16 %v453, %v451
    %v468 = vpack.c.b16 %v454, %v452
    %v469 = vpack.c.b16 %v457, %v455
    %v470 = vpack.c.b16 %v458, %v456
    %v471 = vpack.c.b16 %v461, %v459
    %v472 = vpack.c.b16 %v462, %v460
    %v473 = vpack.c.b16 %v465, %v463
    %v474 = vpack.c.b16 %v466, %v464
    %483 = vmatprep.subr.bf16.mxu0 0
    %484 = vmatpush1.bf16.msra.mxu0 0
    %485 = vmatprep.subr.bf16.mxu0 0
    %486 = vmatpush1.bf16.msra.mxu0 0
    %487 = vmatprep.subr.bf16.mxu0 0
    %488 = vmatpush1.bf16.msra.mxu0 0
    %489 = vmatprep.subr.bf16.mxu0 0
    %490 = vmatpush1.bf16.msra.mxu0 0
    %491 = vmatprep.subr.bf16.mxu0 %v474
    %492 = vmatpush1.bf16.msra.mxu0 %v473
    %493 = vmatprep.subr.bf16.mxu0 %v472
    %494 = vmatpush1.bf16.msra.mxu0 %v471
    %495 = vmatprep.subr.bf16.mxu0 %v470
    %496 = vmatpush1.bf16.msra.mxu0 %v469
    %497 = vmatprep.subr.bf16.mxu0 %v468
    %498 = vmatpush1.bf16.msra.mxu0 %v467
    %499 = vmatprep.subr.bf16.mxu0 0
    %500 = vmatpush2.bf16.msra.mxu0 0
    %501 = vmatprep.subr.bf16.mxu0 0
    %502 = vmatpush2.bf16.msra.mxu0 0
    %503 = vmatprep.subr.bf16.mxu0 0
    %504 = vmatpush2.bf16.msra.mxu0 0
    %505 = vmatprep.subr.bf16.mxu0 0
    %506 = vmatpush2.bf16.msra.mxu0 0
    %507 = vmatprep.subr.bf16.mxu0 0
    %508 = vmatpush2.bf16.msra.mxu0 0
    %509 = vmatprep.subr.bf16.mxu0 0
    %510 = vmatpush2.bf16.msra.mxu0 0
    %511 = vmatprep.subr.bf16.mxu0 0
    %512 = vmatpush2.bf16.msra.mxu0 0
    %513 = vmatprep.subr.bf16.mxu0 0
    %514 = vmatpush2.bf16.msra.mxu0 0
    %515 = vmatprep.mubr.bf16.mxu0 0
    %516 = vmatmul.mubr.bf16.gmra.mxu0 %v313
    %v517 = vpop.f32.mrf.mxu0
    %v518 = vadd.f32 0.0, %v517
    %v519 = vpop.f32.mrf.mxu0
    %v520 = vadd.f32 0.0, %v519
    %v521 = vpop.f32.mrf.mxu0
    %v522 = vpop.f32.mrf.mxu0
    %523 = vdwg.mxu0
    %v524 = vadd.f32 %v441, %v518
    %v525 = vadd.f32 %v442, %v520
    %v526 = vmul.f32 %v41, %v524
    %v527 = vmul.f32 %v42, %v525
    %v528 = vtanh.pop %v526
    %v529 = vtanh.pop %v527
    %v530 = vmul.f32 %v41, %v528
    %v531 = vmul.f32 %v42, %v529
    %v532 = vadd.f32 %v530, %v43
    %v533 = vadd.f32 %v531, %v44
    %v534 = vmul.f32 %v532, %v264
    %v535 = vmul.f32 %v532, %v533
    %537 = vrot.lane.b32.xlu0 %v535, 64
    %v538 = vpop.permute.xlu0 %537
    %v540 = vadd.f32 %v534, %v538
    %v541 = vtanh.pop %v540
    %v542 = vmul.f32 %v533, %v541
    %v543 = vpack.c.bf16 %v542, %v542
    %545 = vrot.lane.b32.xlu0 %v543, 64
    %v546 = vpop.permute.xlu0 %545
    %v548 = vsel %vm311, %v546, 0
    %550 = vmatprep.subr.bf16.mxu0 0
    %551 = vmatpush1.bf16.msra.mxu0 0
    %552 = vmatprep.subr.bf16.mxu0 0
    %553 = vmatpush1.bf16.msra.mxu0 0
    %554 = vmatprep.subr.bf16.mxu0 0
    %555 = vmatpush1.bf16.msra.mxu0 0
    %556 = vmatprep.subr.bf16.mxu0 0
    %557 = vmatpush1.bf16.msra.mxu0 0
    %558 = vmatprep.subr.bf16.mxu0 %v302
    %559 = vmatpush1.bf16.msra.mxu0 %v301
    %560 = vmatprep.subr.bf16.mxu0 %v300
    %561 = vmatpush1.bf16.msra.mxu0 %v299
    %562 = vmatprep.subr.bf16.mxu0 %v298
    %563 = vmatpush1.bf16.msra.mxu0 %v297
    %564 = vmatprep.subr.bf16.mxu0 %v296
    %565 = vmatpush1.bf16.msra.mxu0 %v295
    %566 = vmatprep.subr.bf16.mxu0 0
    %567 = vmatpush2.bf16.msra.mxu0 0
    %568 = vmatprep.subr.bf16.mxu0 0
    %569 = vmatpush2.bf16.msra.mxu0 0
    %570 = vmatprep.subr.bf16.mxu0 0
    %571 = vmatpush2.bf16.msra.mxu0 0
    %572 = vmatprep.subr.bf16.mxu0 0
    %573 = vmatpush2.bf16.msra.mxu0 0
    %574 = vmatprep.subr.bf16.mxu0 0
    %575 = vmatpush2.bf16.msra.mxu0 0
    %576 = vmatprep.subr.bf16.mxu0 0
    %577 = vmatpush2.bf16.msra.mxu0 0
    %578 = vmatprep.subr.bf16.mxu0 0
    %579 = vmatpush2.bf16.msra.mxu0 0
    %580 = vmatprep.subr.bf16.mxu0 0
    %581 = vmatpush2.bf16.msra.mxu0 0
    %582 = vmatprep.mubr.bf16.mxu0 0
    %583 = vmatmul.mubr.bf16.gmra.mxu0 %v548
    %v584 = vpop.f32.mrf.mxu0
    %v585 = vadd.f32 %v241, %v584
    %v586 = vpop.f32.mrf.mxu0
    %v587 = vadd.f32 %v245, %v586
    %v588 = vpop.f32.mrf.mxu0
    %v589 = vpop.f32.mrf.mxu0
    %590 = vdwg.mxu0
    %591 = vst [vmem:[#allocation3 + $0x10] sm:$0xff] %v585
    %592 = vst [vmem:[#allocation3 + $0x18] sm:$0xff] %v587
    %593 = vmatprep.subr.bf16.mxu0 0
    %594 = vmatpush1.bf16.msra.mxu0 0
    %595 = vmatprep.subr.bf16.mxu0 0
    %596 = vmatpush1.bf16.msra.mxu0 0
    %597 = vmatprep.subr.bf16.mxu0 0
    %598 = vmatpush1.bf16.msra.mxu0 0
    %599 = vmatprep.subr.bf16.mxu0 0
    %600 = vmatpush1.bf16.msra.mxu0 0
    %601 = vmatprep.subr.bf16.mxu0 %v389
    %602 = vmatpush1.bf16.msra.mxu0 %v388
    %603 = vmatprep.subr.bf16.mxu0 %v387
    %604 = vmatpush1.bf16.msra.mxu0 %v386
    %605 = vmatprep.subr.bf16.mxu0 %v385
    %606 = vmatpush1.bf16.msra.mxu0 %v384
    %607 = vmatprep.subr.bf16.mxu0 %v383
    %608 = vmatpush1.bf16.msra.mxu0 %v382
    %609 = vmatprep.subr.bf16.mxu0 0
    %610 = vmatpush2.bf16.msra.mxu0 0
    %611 = vmatprep.subr.bf16.mxu0 0
    %612 = vmatpush2.bf16.msra.mxu0 0
    %613 = vmatprep.subr.bf16.mxu0 0
    %614 = vmatpush2.bf16.msra.mxu0 0
    %615 = vmatprep.subr.bf16.mxu0 0
    %616 = vmatpush2.bf16.msra.mxu0 0
    %617 = vmatprep.subr.bf16.mxu0 0
    %618 = vmatpush2.bf16.msra.mxu0 0
    %619 = vmatprep.subr.bf16.mxu0 0
    %620 = vmatpush2.bf16.msra.mxu0 0
    %621 = vmatprep.subr.bf16.mxu0 0
    %622 = vmatpush2.bf16.msra.mxu0 0
    %623 = vmatprep.subr.bf16.mxu0 0
    %624 = vmatpush2.bf16.msra.mxu0 0
    %625 = vmatprep.mubr.bf16.mxu0 0
    %626 = vmatmul.mubr.bf16.gmra.mxu0 %v548
    %v627 = vpop.f32.mrf.mxu0
    %v628 = vadd.f32 %v241, %v627
    %v629 = vpop.f32.mrf.mxu0
    %v630 = vadd.f32 %v245, %v629
    %v631 = vpop.f32.mrf.mxu0
    %v632 = vpop.f32.mrf.mxu0
    %633 = vdwg.mxu0
    %634 = vst [vmem:[#allocation3 + $0x60] sm:$0xff] %v628
    %635 = vst [vmem:[#allocation3 + $0x68] sm:$0xff] %v630
    %v636 = vld [vmem:[#allocation2 + $0x20] sm:$0xff]
    %v637 = vld [vmem:[#allocation2 + $0x28] sm:$0xff]
    %638 = vmatprep.subr.bf16.mxu0 0
    %639 = vmatpush1.bf16.msra.mxu0 0
    %640 = vmatprep.subr.bf16.mxu0 0
    %641 = vmatpush1.bf16.msra.mxu0 0
    %642 = vmatprep.subr.bf16.mxu0 0
    %643 = vmatpush1.bf16.msra.mxu0 0
    %644 = vmatprep.subr.bf16.mxu0 0
    %645 = vmatpush1.bf16.msra.mxu0 0
    %646 = vmatprep.subr.bf16.mxu0 %v474
    %647 = vmatpush1.bf16.msra.mxu0 %v473
    %648 = vmatprep.subr.bf16.mxu0 %v472
    %649 = vmatpush1.bf16.msra.mxu0 %v471
    %650 = vmatprep.subr.bf16.mxu0 %v470
    %651 = vmatpush1.bf16.msra.mxu0 %v469
    %652 = vmatprep.subr.bf16.mxu0 %v468
    %653 = vmatpush1.bf16.msra.mxu0 %v467
    %654 = vmatprep.subr.bf16.mxu0 0
    %655 = vmatpush2.bf16.msra.mxu0 0
    %656 = vmatprep.subr.bf16.mxu0 0
    %657 = vmatpush2.bf16.msra.mxu0 0
    %658 = vmatprep.subr.bf16.mxu0 0
    %659 = vmatpush2.bf16.msra.mxu0 0
    %660 = vmatprep.subr.bf16.mxu0 0
    %661 = vmatpush2.bf16.msra.mxu0 0
    %662 = vmatprep.subr.bf16.mxu0 0
    %663 = vmatpush2.bf16.msra.mxu0 0
    %664 = vmatprep.subr.bf16.mxu0 0
    %665 = vmatpush2.bf16.msra.mxu0 0
    %666 = vmatprep.subr.bf16.mxu0 0
    %667 = vmatpush2.bf16.msra.mxu0 0
    %668 = vmatprep.subr.bf16.mxu0 0
    %669 = vmatpush2.bf16.msra.mxu0 0
    %670 = vmatprep.mubr.bf16.mxu0 0
    %671 = vmatmul.mubr.bf16.gmra.mxu0 %v548
    %v672 = vpop.f32.mrf.mxu0
    %v673 = vadd.f32 0.0, %v672
    %v674 = vpop.f32.mrf.mxu0
    %v675 = vadd.f32 0.0, %v674
    %v676 = vpop.f32.mrf.mxu0
    %v677 = vpop.f32.mrf.mxu0
    %678 = vdwg.mxu0
    %v679 = vadd.f32 %v636, %v673
    %v680 = vadd.f32 %v637, %v675
    %v681 = vmul.f32 %v41, %v679
    %v682 = vmul.f32 %v42, %v680
    %v683 = vtanh.pop %v681
    %v684 = vtanh.pop %v682
    %v685 = vmul.f32 %v41, %v683
    %v686 = vmul.f32 %v42, %v684
    %v687 = vadd.f32 %v685, %v43
    %v688 = vadd.f32 %v686, %v44
    %v689 = vmul.f32 %v687, %v540
    %v690 = vmul.f32 %v687, %v688
    %692 = vrot.lane.b32.xlu0 %v690, 64
    %v693 = vpop.permute.xlu0 %692
    %v695 = vadd.f32 %v689, %v693
    %v696 = vtanh.pop %v695
    %v697 = vmul.f32 %v688, %v696
    %v698 = vpack.c.bf16 %v697, %v697
    %700 = vrot.lane.b32.xlu0 %v698, 64
    %v701 = vpop.permute.xlu0 %700
    %v703 = vsel %vm311, %v701, 0
    %705 = vmatprep.subr.bf16.mxu0 0
    %706 = vmatpush1.bf16.msra.mxu0 0
    %707 = vmatprep.subr.bf16.mxu0 0
    %708 = vmatpush1.bf16.msra.mxu0 0
    %709 = vmatprep.subr.bf16.mxu0 0
    %710 = vmatpush1.bf16.msra.mxu0 0
    %711 = vmatprep.subr.bf16.mxu0 0
    %712 = vmatpush1.bf16.msra.mxu0 0
    %713 = vmatprep.subr.bf16.mxu0 %v302
    %714 = vmatpush1.bf16.msra.mxu0 %v301
    %715 = vmatprep.subr.bf16.mxu0 %v300
    %716 = vmatpush1.bf16.msra.mxu0 %v299
    %717 = vmatprep.subr.bf16.mxu0 %v298
    %718 = vmatpush1.bf16.msra.mxu0 %v297
    %719 = vmatprep.subr.bf16.mxu0 %v296
    %720 = vmatpush1.bf16.msra.mxu0 %v295
    %721 = vmatprep.subr.bf16.mxu0 0
    %722 = vmatpush2.bf16.msra.mxu0 0
    %723 = vmatprep.subr.bf16.mxu0 0
    %724 = vmatpush2.bf16.msra.mxu0 0
    %725 = vmatprep.subr.bf16.mxu0 0
    %726 = vmatpush2.bf16.msra.mxu0 0
    %727 = vmatprep.subr.bf16.mxu0 0
    %728 = vmatpush2.bf16.msra.mxu0 0
    %729 = vmatprep.subr.bf16.mxu0 0
    %730 = vmatpush2.bf16.msra.mxu0 0
    %731 = vmatprep.subr.bf16.mxu0 0
    %732 = vmatpush2.bf16.msra.mxu0 0
    %733 = vmatprep.subr.bf16.mxu0 0
    %734 = vmatpush2.bf16.msra.mxu0 0
    %735 = vmatprep.subr.bf16.mxu0 0
    %736 = vmatpush2.bf16.msra.mxu0 0
    %737 = vmatprep.mubr.bf16.mxu0 0
    %738 = vmatmul.mubr.bf16.gmra.mxu0 %v703
    %v739 = vpop.f32.mrf.mxu0
    %v740 = vadd.f32 %v241, %v739
    %v741 = vpop.f32.mrf.mxu0
    %v742 = vadd.f32 %v245, %v741
    %v743 = vpop.f32.mrf.mxu0
    %v744 = vpop.f32.mrf.mxu0
    %745 = vdwg.mxu0
    %746 = vst [vmem:[#allocation3 + $0x20] sm:$0xff] %v740
    %747 = vst [vmem:[#allocation3 + $0x28] sm:$0xff] %v742
    %748 = vmatprep.subr.bf16.mxu0 0
    %749 = vmatpush1.bf16.msra.mxu0 0
    %750 = vmatprep.subr.bf16.mxu0 0
    %751 = vmatpush1.bf16.msra.mxu0 0
    %752 = vmatprep.subr.bf16.mxu0 0
    %753 = vmatpush1.bf16.msra.mxu0 0
    %754 = vmatprep.subr.bf16.mxu0 0
    %755 = vmatpush1.bf16.msra.mxu0 0
    %756 = vmatprep.subr.bf16.mxu0 %v389
    %757 = vmatpush1.bf16.msra.mxu0 %v388
    %758 = vmatprep.subr.bf16.mxu0 %v387
    %759 = vmatpush1.bf16.msra.mxu0 %v386
    %760 = vmatprep.subr.bf16.mxu0 %v385
    %761 = vmatpush1.bf16.msra.mxu0 %v384
    %762 = vmatprep.subr.bf16.mxu0 %v383
    %763 = vmatpush1.bf16.msra.mxu0 %v382
    %764 = vmatprep.subr.bf16.mxu0 0
    %765 = vmatpush2.bf16.msra.mxu0 0
    %766 = vmatprep.subr.bf16.mxu0 0
    %767 = vmatpush2.bf16.msra.mxu0 0
    %768 = vmatprep.subr.bf16.mxu0 0
    %769 = vmatpush2.bf16.msra.mxu0 0
    %770 = vmatprep.subr.bf16.mxu0 0
    %771 = vmatpush2.bf16.msra.mxu0 0
    %772 = vmatprep.subr.bf16.mxu0 0
    %773 = vmatpush2.bf16.msra.mxu0 0
    %774 = vmatprep.subr.bf16.mxu0 0
    %775 = vmatpush2.bf16.msra.mxu0 0
    %776 = vmatprep.subr.bf16.mxu0 0
    %777 = vmatpush2.bf16.msra.mxu0 0
    %778 = vmatprep.subr.bf16.mxu0 0
    %779 = vmatpush2.bf16.msra.mxu0 0
    %780 = vmatprep.mubr.bf16.mxu0 0
    %781 = vmatmul.mubr.bf16.gmra.mxu0 %v703
    %v782 = vpop.f32.mrf.mxu0
    %v783 = vadd.f32 %v241, %v782
    %v784 = vpop.f32.mrf.mxu0
    %v785 = vadd.f32 %v245, %v784
    %v786 = vpop.f32.mrf.mxu0
    %v787 = vpop.f32.mrf.mxu0
    %788 = vdwg.mxu0
    %789 = vst [vmem:[#allocation3 + $0x50] sm:$0xff] %v783
    %790 = vst [vmem:[#allocation3 + $0x58] sm:$0xff] %v785
    %v791 = vld [vmem:[#allocation2 + $0x30] sm:$0xff]
    %v792 = vld [vmem:[#allocation2 + $0x38] sm:$0xff]
    %793 = vmatprep.subr.bf16.mxu0 0
    %794 = vmatpush1.bf16.msra.mxu0 0
    %795 = vmatprep.subr.bf16.mxu0 0
    %796 = vmatpush1.bf16.msra.mxu0 0
    %797 = vmatprep.subr.bf16.mxu0 0
    %798 = vmatpush1.bf16.msra.mxu0 0
    %799 = vmatprep.subr.bf16.mxu0 0
    %800 = vmatpush1.bf16.msra.mxu0 0
    %801 = vmatprep.subr.bf16.mxu0 %v474
    %802 = vmatpush1.bf16.msra.mxu0 %v473
    %803 = vmatprep.subr.bf16.mxu0 %v472
    %804 = vmatpush1.bf16.msra.mxu0 %v471
    %805 = vmatprep.subr.bf16.mxu0 %v470
    %806 = vmatpush1.bf16.msra.mxu0 %v469
    %807 = vmatprep.subr.bf16.mxu0 %v468
    %808 = vmatpush1.bf16.msra.mxu0 %v467
    %809 = vmatprep.subr.bf16.mxu0 0
    %810 = vmatpush2.bf16.msra.mxu0 0
    %811 = vmatprep.subr.bf16.mxu0 0
    %812 = vmatpush2.bf16.msra.mxu0 0
    %813 = vmatprep.subr.bf16.mxu0 0
    %814 = vmatpush2.bf16.msra.mxu0 0
    %815 = vmatprep.subr.bf16.mxu0 0
    %816 = vmatpush2.bf16.msra.mxu0 0
    %817 = vmatprep.subr.bf16.mxu0 0
    %818 = vmatpush2.bf16.msra.mxu0 0
    %819 = vmatprep.subr.bf16.mxu0 0
    %820 = vmatpush2.bf16.msra.mxu0 0
    %821 = vmatprep.subr.bf16.mxu0 0
    %822 = vmatpush2.bf16.msra.mxu0 0
    %823 = vmatprep.subr.bf16.mxu0 0
    %824 = vmatpush2.bf16.msra.mxu0 0
    %825 = vmatprep.mubr.bf16.mxu0 0
    %826 = vmatmul.mubr.bf16.gmra.mxu0 %v703
    %v827 = vpop.f32.mrf.mxu0
    %v828 = vadd.f32 0.0, %v827
    %v829 = vpop.f32.mrf.mxu0
    %v830 = vadd.f32 0.0, %v829
    %v831 = vpop.f32.mrf.mxu0
    %v832 = vpop.f32.mrf.mxu0
    %833 = vdwg.mxu0
    %v834 = vadd.f32 %v791, %v828
    %v835 = vadd.f32 %v792, %v830
    %v836 = vmul.f32 %v41, %v834
    %v837 = vmul.f32 %v42, %v835
    %v838 = vtanh.pop %v836
    %v839 = vtanh.pop %v837
    %v840 = vmul.f32 %v41, %v838
    %v841 = vmul.f32 %v42, %v839
    %v842 = vadd.f32 %v840, %v43
    %v843 = vadd.f32 %v841, %v44
    %v844 = vmul.f32 %v842, %v695
    %v845 = vmul.f32 %v842, %v843
    %847 = vrot.lane.b32.xlu0 %v845, 64
    %v848 = vpop.permute.xlu0 %847
    %v850 = vadd.f32 %v844, %v848
    %v851 = vtanh.pop %v850
    %v852 = vmul.f32 %v843, %v851
    %v853 = vpack.c.bf16 %v852, %v852
    %855 = vrot.lane.b32.xlu0 %v853, 64
    %v856 = vpop.permute.xlu0 %855
    %v858 = vsel %vm311, %v856, 0
    %860 = vmatprep.subr.bf16.mxu0 0
    %861 = vmatpush1.bf16.msra.mxu0 0
    %862 = vmatprep.subr.bf16.mxu0 0
    %863 = vmatpush1.bf16.msra.mxu0 0
    %864 = vmatprep.subr.bf16.mxu0 0
    %865 = vmatpush1.bf16.msra.mxu0 0
    %866 = vmatprep.subr.bf16.mxu0 0
    %867 = vmatpush1.bf16.msra.mxu0 0
    %868 = vmatprep.subr.bf16.mxu0 %v302
    %869 = vmatpush1.bf16.msra.mxu0 %v301
    %870 = vmatprep.subr.bf16.mxu0 %v300
    %871 = vmatpush1.bf16.msra.mxu0 %v299
    %872 = vmatprep.subr.bf16.mxu0 %v298
    %873 = vmatpush1.bf16.msra.mxu0 %v297
    %874 = vmatprep.subr.bf16.mxu0 %v296
    %875 = vmatpush1.bf16.msra.mxu0 %v295
    %876 = vmatprep.subr.bf16.mxu0 0
    %877 = vmatpush2.bf16.msra.mxu0 0
    %878 = vmatprep.subr.bf16.mxu0 0
    %879 = vmatpush2.bf16.msra.mxu0 0
    %880 = vmatprep.subr.bf16.mxu0 0
    %881 = vmatpush2.bf16.msra.mxu0 0
    %882 = vmatprep.subr.bf16.mxu0 0
    %883 = vmatpush2.bf16.msra.mxu0 0
    %884 = vmatprep.subr.bf16.mxu0 0
    %885 = vmatpush2.bf16.msra.mxu0 0
    %886 = vmatprep.subr.bf16.mxu0 0
    %887 = vmatpush2.bf16.msra.mxu0 0
    %888 = vmatprep.subr.bf16.mxu0 0
    %889 = vmatpush2.bf16.msra.mxu0 0
    %890 = vmatprep.subr.bf16.mxu0 0
    %891 = vmatpush2.bf16.msra.mxu0 0
    %892 = vmatprep.mubr.bf16.mxu0 0
    %893 = vmatmul.mubr.bf16.gmra.mxu0 %v858
    %v894 = vpop.f32.mrf.mxu0
    %v895 = vadd.f32 %v241, %v894
    %v896 = vpop.f32.mrf.mxu0
    %v897 = vadd.f32 %v245, %v896
    %v898 = vpop.f32.mrf.mxu0
    %v899 = vpop.f32.mrf.mxu0
    %900 = vdwg.mxu0
    %901 = vst [vmem:[#allocation3 + $0x30] sm:$0xff] %v895
    %902 = vst [vmem:[#allocation3 + $0x38] sm:$0xff] %v897
    %903 = vmatprep.subr.bf16.mxu0 0
    %904 = vmatpush1.bf16.msra.mxu0 0
    %905 = vmatprep.subr.bf16.mxu0 0
    %906 = vmatpush1.bf16.msra.mxu0 0
    %907 = vmatprep.subr.bf16.mxu0 0
    %908 = vmatpush1.bf16.msra.mxu0 0
    %909 = vmatprep.subr.bf16.mxu0 0
    %910 = vmatpush1.bf16.msra.mxu0 0
    %911 = vmatprep.subr.bf16.mxu0 %v389
    %912 = vmatpush1.bf16.msra.mxu0 %v388
    %913 = vmatprep.subr.bf16.mxu0 %v387
    %914 = vmatpush1.bf16.msra.mxu0 %v386
    %915 = vmatprep.subr.bf16.mxu0 %v385
    %916 = vmatpush1.bf16.msra.mxu0 %v384
    %917 = vmatprep.subr.bf16.mxu0 %v383
    %918 = vmatpush1.bf16.msra.mxu0 %v382
    %919 = vmatprep.subr.bf16.mxu0 0
    %920 = vmatpush2.bf16.msra.mxu0 0
    %921 = vmatprep.subr.bf16.mxu0 0
    %922 = vmatpush2.bf16.msra.mxu0 0
    %923 = vmatprep.subr.bf16.mxu0 0
    %924 = vmatpush2.bf16.msra.mxu0 0
    %925 = vmatprep.subr.bf16.mxu0 0
    %926 = vmatpush2.bf16.msra.mxu0 0
    %927 = vmatprep.subr.bf16.mxu0 0
    %928 = vmatpush2.bf16.msra.mxu0 0
    %929 = vmatprep.subr.bf16.mxu0 0
    %930 = vmatpush2.bf16.msra.mxu0 0
    %931 = vmatprep.subr.bf16.mxu0 0
    %932 = vmatpush2.bf16.msra.mxu0 0
    %933 = vmatprep.subr.bf16.mxu0 0
    %934 = vmatpush2.bf16.msra.mxu0 0
    %935 = vmatprep.mubr.bf16.mxu0 0
    %936 = vmatmul.mubr.bf16.gmra.mxu0 %v858
    %v937 = vpop.f32.mrf.mxu0
    %v938 = vadd.f32 %v241, %v937
    %v939 = vpop.f32.mrf.mxu0
    %v940 = vadd.f32 %v245, %v939
    %v941 = vpop.f32.mrf.mxu0
    %v942 = vpop.f32.mrf.mxu0
    %943 = vdwg.mxu0
    %944 = vst [vmem:[#allocation3 + $0x40] sm:$0xff] %v938
    %945 = vst [vmem:[#allocation3 + $0x48] sm:$0xff] %v940
    %v946 = vld [vmem:[#allocation2 + $0x40] sm:$0xff]
    %v947 = vld [vmem:[#allocation2 + $0x48] sm:$0xff]
    %948 = vmatprep.subr.bf16.mxu0 0
    %949 = vmatpush1.bf16.msra.mxu0 0
    %950 = vmatprep.subr.bf16.mxu0 0
    %951 = vmatpush1.bf16.msra.mxu0 0
    %952 = vmatprep.subr.bf16.mxu0 0
    %953 = vmatpush1.bf16.msra.mxu0 0
    %954 = vmatprep.subr.bf16.mxu0 0
    %955 = vmatpush1.bf16.msra.mxu0 0
    %956 = vmatprep.subr.bf16.mxu0 %v474
    %957 = vmatpush1.bf16.msra.mxu0 %v473
    %958 = vmatprep.subr.bf16.mxu0 %v472
    %959 = vmatpush1.bf16.msra.mxu0 %v471
    %960 = vmatprep.subr.bf16.mxu0 %v470
    %961 = vmatpush1.bf16.msra.mxu0 %v469
    %962 = vmatprep.subr.bf16.mxu0 %v468
    %963 = vmatpush1.bf16.msra.mxu0 %v467
    %964 = vmatprep.subr.bf16.mxu0 0
    %965 = vmatpush2.bf16.msra.mxu0 0
    %966 = vmatprep.subr.bf16.mxu0 0
    %967 = vmatpush2.bf16.msra.mxu0 0
    %968 = vmatprep.subr.bf16.mxu0 0
    %969 = vmatpush2.bf16.msra.mxu0 0
    %970 = vmatprep.subr.bf16.mxu0 0
    %971 = vmatpush2.bf16.msra.mxu0 0
    %972 = vmatprep.subr.bf16.mxu0 0
    %973 = vmatpush2.bf16.msra.mxu0 0
    %974 = vmatprep.subr.bf16.mxu0 0
    %975 = vmatpush2.bf16.msra.mxu0 0
    %976 = vmatprep.subr.bf16.mxu0 0
    %977 = vmatpush2.bf16.msra.mxu0 0
    %978 = vmatprep.subr.bf16.mxu0 0
    %979 = vmatpush2.bf16.msra.mxu0 0
    %980 = vmatprep.mubr.bf16.mxu0 0
    %981 = vmatmul.mubr.bf16.gmra.mxu0 %v858
    %v982 = vpop.f32.mrf.mxu0
    %v983 = vadd.f32 0.0, %v982
    %v984 = vpop.f32.mrf.mxu0
    %v985 = vadd.f32 0.0, %v984
    %v986 = vpop.f32.mrf.mxu0
    %v987 = vpop.f32.mrf.mxu0
    %988 = vdwg.mxu0
    %v989 = vadd.f32 %v946, %v983
    %v990 = vadd.f32 %v947, %v985
    %v991 = vmul.f32 %v41, %v989
    %v992 = vmul.f32 %v42, %v990
    %v993 = vtanh.pop %v991
    %v994 = vtanh.pop %v992
    %v995 = vmul.f32 %v41, %v993
    %v996 = vmul.f32 %v42, %v994
    %v997 = vadd.f32 %v995, %v43
    %v998 = vadd.f32 %v996, %v44
    %v999 = vmul.f32 %v997, %v850
    %v1000 = vmul.f32 %v997, %v998
    %1002 = vrot.lane.b32.xlu0 %v1000, 64
    %v1003 = vpop.permute.xlu0 %1002
    %v1005 = vadd.f32 %v999, %v1003
    %v1006 = vtanh.pop %v1005
    %v1007 = vmul.f32 %v998, %v1006
    %v1008 = vpack.c.bf16 %v1007, %v1007
    %1010 = vrot.lane.b32.xlu0 %v1008, 64
    %v1011 = vpop.permute.xlu0 %1010
    %v1013 = vsel %vm311, %v1011, 0
    %1015 = vmatprep.subr.bf16.mxu0 0
    %1016 = vmatpush1.bf16.msra.mxu0 0
    %1017 = vmatprep.subr.bf16.mxu0 0
    %1018 = vmatpush1.bf16.msra.mxu0 0
    %1019 = vmatprep.subr.bf16.mxu0 0
    %1020 = vmatpush1.bf16.msra.mxu0 0
    %1021 = vmatprep.subr.bf16.mxu0 0
    %1022 = vmatpush1.bf16.msra.mxu0 0
    %1023 = vmatprep.subr.bf16.mxu0 %v302
    %1024 = vmatpush1.bf16.msra.mxu0 %v301
    %1025 = vmatprep.subr.bf16.mxu0 %v300
    %1026 = vmatpush1.bf16.msra.mxu0 %v299
    %1027 = vmatprep.subr.bf16.mxu0 %v298
    %1028 = vmatpush1.bf16.msra.mxu0 %v297
    %1029 = vmatprep.subr.bf16.mxu0 %v296
    %1030 = vmatpush1.bf16.msra.mxu0 %v295
    %1031 = vmatprep.subr.bf16.mxu0 0
    %1032 = vmatpush2.bf16.msra.mxu0 0
    %1033 = vmatprep.subr.bf16.mxu0 0
    %1034 = vmatpush2.bf16.msra.mxu0 0
    %1035 = vmatprep.subr.bf16.mxu0 0
    %1036 = vmatpush2.bf16.msra.mxu0 0
    %1037 = vmatprep.subr.bf16.mxu0 0
    %1038 = vmatpush2.bf16.msra.mxu0 0
    %1039 = vmatprep.subr.bf16.mxu0 0
    %1040 = vmatpush2.bf16.msra.mxu0 0
    %1041 = vmatprep.subr.bf16.mxu0 0
    %1042 = vmatpush2.bf16.msra.mxu0 0
    %1043 = vmatprep.subr.bf16.mxu0 0
    %1044 = vmatpush2.bf16.msra.mxu0 0
    %1045 = vmatprep.subr.bf16.mxu0 0
    %1046 = vmatpush2.bf16.msra.mxu0 0
    %1047 = vmatprep.mubr.bf16.mxu0 0
    %1048 = vmatmul.mubr.bf16.gmra.mxu0 %v1013
    %v1049 = vpop.f32.mrf.mxu0
    %v1050 = vadd.f32 0.0, %v1049
    %v1051 = vpop.f32.mrf.mxu0
    %v1052 = vadd.f32 0.0, %v1051
    %v1053 = vpop.f32.mrf.mxu0
    %v1054 = vpop.f32.mrf.mxu0
    %1055 = vdwg.mxu0
    %1056 = vmatprep.subr.bf16.mxu0 0
    %1057 = vmatpush1.bf16.msra.mxu0 0
    %1058 = vmatprep.subr.bf16.mxu0 0
    %1059 = vmatpush1.bf16.msra.mxu0 0
    %1060 = vmatprep.subr.bf16.mxu0 0
    %1061 = vmatpush1.bf16.msra.mxu0 0
    %1062 = vmatprep.subr.bf16.mxu0 0
    %1063 = vmatpush1.bf16.msra.mxu0 0
    %1064 = vmatprep.subr.bf16.mxu0 %v389
    %1065 = vmatpush1.bf16.msra.mxu0 %v388
    %1066 = vmatprep.subr.bf16.mxu0 %v387
    %1067 = vmatpush1.bf16.msra.mxu0 %v386
    %1068 = vmatprep.subr.bf16.mxu0 %v385
    %1069 = vmatpush1.bf16.msra.mxu0 %v384
    %1070 = vmatprep.subr.bf16.mxu0 %v383
    %1071 = vmatpush1.bf16.msra.mxu0 %v382
    %1072 = vmatprep.subr.bf16.mxu0 0
    %1073 = vmatpush2.bf16.msra.mxu0 0
    %1074 = vmatprep.subr.bf16.mxu0 0
    %1075 = vmatpush2.bf16.msra.mxu0 0
    %1076 = vmatprep.subr.bf16.mxu0 0
    %1077 = vmatpush2.bf16.msra.mxu0 0
    %1078 = vmatprep.subr.bf16.mxu0 0
    %1079 = vmatpush2.bf16.msra.mxu0 0
    %1080 = vmatprep.subr.bf16.mxu0 0
    %1081 = vmatpush2.bf16.msra.mxu0 0
    %1082 = vmatprep.subr.bf16.mxu0 0
    %1083 = vmatpush2.bf16.msra.mxu0 0
    %1084 = vmatprep.subr.bf16.mxu0 0
    %1085 = vmatpush2.bf16.msra.mxu0 0
    %1086 = vmatprep.subr.bf16.mxu0 0
    %1087 = vmatpush2.bf16.msra.mxu0 0
    %1088 = vmatprep.mubr.bf16.mxu0 0
    %1089 = vmatmul.mubr.bf16.gmra.mxu0 %v1013
    %v1090 = vpop.f32.mrf.mxu0
    %v1091 = vadd.f32 0.0, %v1090
    %v1092 = vpop.f32.mrf.mxu0
    %v1093 = vadd.f32 0.0, %v1092
    %v1094 = vpop.f32.mrf.mxu0
    %v1095 = vpop.f32.mrf.mxu0
    %1096 = vdwg.mxu0
    %v1097 = vld [vmem:[#allocation3 + $0x40] sm:$0xff]
    %v1098 = vld [vmem:[#allocation3 + $0x48] sm:$0xff]
    %v1099 = vadd.f32 %v1097, %v1050
    %v1100 = vadd.f32 %v1098, %v1052
    %1101 = vst [vmem:[#allocation3 + $0x40] sm:$0xff] %v1099
    %1102 = vst [vmem:[#allocation3 + $0x48] sm:$0xff] %v1100
    %v1103 = vld [vmem:[#allocation3 + $0x30] sm:$0xff]
    %v1104 = vld [vmem:[#allocation3 + $0x38] sm:$0xff]
    %v1105 = vadd.f32 %v1103, %v1091
    %v1106 = vadd.f32 %v1104, %v1093
    %1107 = vst [vmem:[#allocation3 + $0x30] sm:$0xff] %v1105
    %1108 = vst [vmem:[#allocation3 + $0x38] sm:$0xff] %v1106
    %v1109 = vld [vmem:[#allocation2 + $0x50] sm:$0xff]
    %v1110 = vld [vmem:[#allocation2 + $0x58] sm:$0xff]
    %1111 = vmatprep.subr.bf16.mxu0 0
    %1112 = vmatpush1.bf16.msra.mxu0 0
    %1113 = vmatprep.subr.bf16.mxu0 0
    %1114 = vmatpush1.bf16.msra.mxu0 0
    %1115 = vmatprep.subr.bf16.mxu0 0
    %1116 = vmatpush1.bf16.msra.mxu0 0
    %1117 = vmatprep.subr.bf16.mxu0 0
    %1118 = vmatpush1.bf16.msra.mxu0 0
    %1119 = vmatprep.subr.bf16.mxu0 %v474
    %1120 = vmatpush1.bf16.msra.mxu0 %v473
    %1121 = vmatprep.subr.bf16.mxu0 %v472
    %1122 = vmatpush1.bf16.msra.mxu0 %v471
    %1123 = vmatprep.subr.bf16.mxu0 %v470
    %1124 = vmatpush1.bf16.msra.mxu0 %v469
    %1125 = vmatprep.subr.bf16.mxu0 %v468
    %1126 = vmatpush1.bf16.msra.mxu0 %v467
    %1127 = vmatprep.subr.bf16.mxu0 0
    %1128 = vmatpush2.bf16.msra.mxu0 0
    %1129 = vmatprep.subr.bf16.mxu0 0
    %1130 = vmatpush2.bf16.msra.mxu0 0
    %1131 = vmatprep.subr.bf16.mxu0 0
    %1132 = vmatpush2.bf16.msra.mxu0 0
    %1133 = vmatprep.subr.bf16.mxu0 0
    %1134 = vmatpush2.bf16.msra.mxu0 0
    %1135 = vmatprep.subr.bf16.mxu0 0
    %1136 = vmatpush2.bf16.msra.mxu0 0
    %1137 = vmatprep.subr.bf16.mxu0 0
    %1138 = vmatpush2.bf16.msra.mxu0 0
    %1139 = vmatprep.subr.bf16.mxu0 0
    %1140 = vmatpush2.bf16.msra.mxu0 0
    %1141 = vmatprep.subr.bf16.mxu0 0
    %1142 = vmatpush2.bf16.msra.mxu0 0
    %1143 = vmatprep.mubr.bf16.mxu0 0
    %1144 = vmatmul.mubr.bf16.gmra.mxu0 %v1013
    %v1145 = vpop.f32.mrf.mxu0
    %v1146 = vadd.f32 0.0, %v1145
    %v1147 = vpop.f32.mrf.mxu0
    %v1148 = vadd.f32 0.0, %v1147
    %v1149 = vpop.f32.mrf.mxu0
    %v1150 = vpop.f32.mrf.mxu0
    %1151 = vdwg.mxu0
    %v1152 = vadd.f32 %v1109, %v1146
    %v1153 = vadd.f32 %v1110, %v1148
    %v1154 = vmul.f32 %v41, %v1152
    %v1155 = vmul.f32 %v42, %v1153
    %v1156 = vtanh.pop %v1154
    %v1157 = vtanh.pop %v1155
    %v1158 = vmul.f32 %v41, %v1156
    %v1159 = vmul.f32 %v42, %v1157
    %v1160 = vadd.f32 %v1158, %v43
    %v1161 = vadd.f32 %v1159, %v44
    %v1162 = vmul.f32 %v1160, %v1005
    %v1163 = vmul.f32 %v1160, %v1161
    %1165 = vrot.lane.b32.xlu0 %v1163, 64
    %v1166 = vpop.permute.xlu0 %1165
    %v1168 = vadd.f32 %v1162, %v1166
    %v1169 = vtanh.pop %v1168
    %v1170 = vmul.f32 %v1161, %v1169
    %v1171 = vpack.c.bf16 %v1170, %v1170
    %1173 = vrot.lane.b32.xlu0 %v1171, 64
    %v1174 = vpop.permute.xlu0 %1173
    %v1176 = vsel %vm311, %v1174, 0
    %1178 = vmatprep.subr.bf16.mxu0 0
    %1179 = vmatpush1.bf16.msra.mxu0 0
    %1180 = vmatprep.subr.bf16.mxu0 0
    %1181 = vmatpush1.bf16.msra.mxu0 0
    %1182 = vmatprep.subr.bf16.mxu0 0
    %1183 = vmatpush1.bf16.msra.mxu0 0
    %1184 = vmatprep.subr.bf16.mxu0 0
    %1185 = vmatpush1.bf16.msra.mxu0 0
    %1186 = vmatprep.subr.bf16.mxu0 %v302
    %1187 = vmatpush1.bf16.msra.mxu0 %v301
    %1188 = vmatprep.subr.bf16.mxu0 %v300
    %1189 = vmatpush1.bf16.msra.mxu0 %v299
    %1190 = vmatprep.subr.bf16.mxu0 %v298
    %1191 = vmatpush1.bf16.msra.mxu0 %v297
    %1192 = vmatprep.subr.bf16.mxu0 %v296
    %1193 = vmatpush1.bf16.msra.mxu0 %v295
    %1194 = vmatprep.subr.bf16.mxu0 0
    %1195 = vmatpush2.bf16.msra.mxu0 0
    %1196 = vmatprep.subr.bf16.mxu0 0
    %1197 = vmatpush2.bf16.msra.mxu0 0
    %1198 = vmatprep.subr.bf16.mxu0 0
    %1199 = vmatpush2.bf16.msra.mxu0 0
    %1200 = vmatprep.subr.bf16.mxu0 0
    %1201 = vmatpush2.bf16.msra.mxu0 0
    %1202 = vmatprep.subr.bf16.mxu0 0
    %1203 = vmatpush2.bf16.msra.mxu0 0
    %1204 = vmatprep.subr.bf16.mxu0 0
    %1205 = vmatpush2.bf16.msra.mxu0 0
    %1206 = vmatprep.subr.bf16.mxu0 0
    %1207 = vmatpush2.bf16.msra.mxu0 0
    %1208 = vmatprep.subr.bf16.mxu0 0
    %1209 = vmatpush2.bf16.msra.mxu0 0
    %1210 = vmatprep.mubr.bf16.mxu0 0
    %1211 = vmatmul.mubr.bf16.gmra.mxu0 %v1176
    %v1212 = vpop.f32.mrf.mxu0
    %v1213 = vadd.f32 0.0, %v1212
    %v1214 = vpop.f32.mrf.mxu0
    %v1215 = vadd.f32 0.0, %v1214
    %v1216 = vpop.f32.mrf.mxu0
    %v1217 = vpop.f32.mrf.mxu0
    %1218 = vdwg.mxu0
    %1219 = vmatprep.subr.bf16.mxu0 0
    %1220 = vmatpush1.bf16.msra.mxu0 0
    %1221 = vmatprep.subr.bf16.mxu0 0
    %1222 = vmatpush1.bf16.msra.mxu0 0
    %1223 = vmatprep.subr.bf16.mxu0 0
    %1224 = vmatpush1.bf16.msra.mxu0 0
    %1225 = vmatprep.subr.bf16.mxu0 0
    %1226 = vmatpush1.bf16.msra.mxu0 0
    %1227 = vmatprep.subr.bf16.mxu0 %v389
    %1228 = vmatpush1.bf16.msra.mxu0 %v388
    %1229 = vmatprep.subr.bf16.mxu0 %v387
    %1230 = vmatpush1.bf16.msra.mxu0 %v386
    %1231 = vmatprep.subr.bf16.mxu0 %v385
    %1232 = vmatpush1.bf16.msra.mxu0 %v384
    %1233 = vmatprep.subr.bf16.mxu0 %v383
    %1234 = vmatpush1.bf16.msra.mxu0 %v382
    %1235 = vmatprep.subr.bf16.mxu0 0
    %1236 = vmatpush2.bf16.msra.mxu0 0
    %1237 = vmatprep.subr.bf16.mxu0 0
    %1238 = vmatpush2.bf16.msra.mxu0 0
    %1239 = vmatprep.subr.bf16.mxu0 0
    %1240 = vmatpush2.bf16.msra.mxu0 0
    %1241 = vmatprep.subr.bf16.mxu0 0
    %1242 = vmatpush2.bf16.msra.mxu0 0
    %1243 = vmatprep.subr.bf16.mxu0 0
    %1244 = vmatpush2.bf16.msra.mxu0 0
    %1245 = vmatprep.subr.bf16.mxu0 0
    %1246 = vmatpush2.bf16.msra.mxu0 0
    %1247 = vmatprep.subr.bf16.mxu0 0
    %1248 = vmatpush2.bf16.msra.mxu0 0
    %1249 = vmatprep.subr.bf16.mxu0 0
    %1250 = vmatpush2.bf16.msra.mxu0 0
    %1251 = vmatprep.mubr.bf16.mxu0 0
    %1252 = vmatmul.mubr.bf16.gmra.mxu0 %v1176
    %v1253 = vpop.f32.mrf.mxu0
    %v1254 = vadd.f32 0.0, %v1253
    %v1255 = vpop.f32.mrf.mxu0
    %v1256 = vadd.f32 0.0, %v1255
    %v1257 = vpop.f32.mrf.mxu0
    %v1258 = vpop.f32.mrf.mxu0
    %1259 = vdwg.mxu0
    %v1260 = vld [vmem:[#allocation3 + $0x50] sm:$0xff]
    %v1261 = vld [vmem:[#allocation3 + $0x58] sm:$0xff]
    %v1262 = vadd.f32 %v1260, %v1213
    %v1263 = vadd.f32 %v1261, %v1215
    %1264 = vst [vmem:[#allocation3 + $0x50] sm:$0xff] %v1262
    %1265 = vst [vmem:[#allocation3 + $0x58] sm:$0xff] %v1263
    %v1266 = vld [vmem:[#allocation3 + $0x20] sm:$0xff]
    %v1267 = vld [vmem:[#allocation3 + $0x28] sm:$0xff]
    %v1268 = vadd.f32 %v1266, %v1254
    %v1269 = vadd.f32 %v1267, %v1256
    %1270 = vst [vmem:[#allocation3 + $0x20] sm:$0xff] %v1268
    %1271 = vst [vmem:[#allocation3 + $0x28] sm:$0xff] %v1269
    %v1272 = vld [vmem:[#allocation2 + $0x60] sm:$0xff]
    %v1273 = vld [vmem:[#allocation2 + $0x68] sm:$0xff]
    %1274 = vmatprep.subr.bf16.mxu0 0
    %1275 = vmatpush1.bf16.msra.mxu0 0
    %1276 = vmatprep.subr.bf16.mxu0 0
    %1277 = vmatpush1.bf16.msra.mxu0 0
    %1278 = vmatprep.subr.bf16.mxu0 0
    %1279 = vmatpush1.bf16.msra.mxu0 0
    %1280 = vmatprep.subr.bf16.mxu0 0
    %1281 = vmatpush1.bf16.msra.mxu0 0
    %1282 = vmatprep.subr.bf16.mxu0 %v474
    %1283 = vmatpush1.bf16.msra.mxu0 %v473
    %1284 = vmatprep.subr.bf16.mxu0 %v472
    %1285 = vmatpush1.bf16.msra.mxu0 %v471
    %1286 = vmatprep.subr.bf16.mxu0 %v470
    %1287 = vmatpush1.bf16.msra.mxu0 %v469
    %1288 = vmatprep.subr.bf16.mxu0 %v468
    %1289 = vmatpush1.bf16.msra.mxu0 %v467
    %1290 = vmatprep.subr.bf16.mxu0 0
    %1291 = vmatpush2.bf16.msra.mxu0 0
    %1292 = vmatprep.subr.bf16.mxu0 0
    %1293 = vmatpush2.bf16.msra.mxu0 0
    %1294 = vmatprep.subr.bf16.mxu0 0
    %1295 = vmatpush2.bf16.msra.mxu0 0
    %1296 = vmatprep.subr.bf16.mxu0 0
    %1297 = vmatpush2.bf16.msra.mxu0 0
    %1298 = vmatprep.subr.bf16.mxu0 0
    %1299 = vmatpush2.bf16.msra.mxu0 0
    %1300 = vmatprep.subr.bf16.mxu0 0
    %1301 = vmatpush2.bf16.msra.mxu0 0
    %1302 = vmatprep.subr.bf16.mxu0 0
    %1303 = vmatpush2.bf16.msra.mxu0 0
    %1304 = vmatprep.subr.bf16.mxu0 0
    %1305 = vmatpush2.bf16.msra.mxu0 0
    %1306 = vmatprep.mubr.bf16.mxu0 0
    %1307 = vmatmul.mubr.bf16.gmra.mxu0 %v1176
    %v1308 = vpop.f32.mrf.mxu0
    %v1309 = vadd.f32 0.0, %v1308
    %v1310 = vpop.f32.mrf.mxu0
    %v1311 = vadd.f32 0.0, %v1310
    %v1312 = vpop.f32.mrf.mxu0
    %v1313 = vpop.f32.mrf.mxu0
    %1314 = vdwg.mxu0
    %v1315 = vadd.f32 %v1272, %v1309
    %v1316 = vadd.f32 %v1273, %v1311
    %v1317 = vmul.f32 %v41, %v1315
    %v1318 = vmul.f32 %v42, %v1316
    %v1319 = vtanh.pop %v1317
    %v1320 = vtanh.pop %v1318
    %v1321 = vmul.f32 %v41, %v1319
    %v1322 = vmul.f32 %v42, %v1320
    %v1323 = vadd.f32 %v1321, %v43
    %v1324 = vadd.f32 %v1322, %v44
    %v1325 = vmul.f32 %v1323, %v1168
    %v1326 = vmul.f32 %v1323, %v1324
    %1328 = vrot.lane.b32.xlu0 %v1326, 64
    %v1329 = vpop.permute.xlu0 %1328
    %v1331 = vadd.f32 %v1325, %v1329
    %v1332 = vtanh.pop %v1331
    %v1333 = vmul.f32 %v1324, %v1332
    %v1334 = vpack.c.bf16 %v1333, %v1333
    %1336 = vrot.lane.b32.xlu0 %v1334, 64
    %v1337 = vpop.permute.xlu0 %1336
    %v1339 = vsel %vm311, %v1337, 0
    %1341 = vmatprep.subr.bf16.mxu0 0
    %1342 = vmatpush1.bf16.msra.mxu0 0
    %1343 = vmatprep.subr.bf16.mxu0 0
    %1344 = vmatpush1.bf16.msra.mxu0 0
    %1345 = vmatprep.subr.bf16.mxu0 0
    %1346 = vmatpush1.bf16.msra.mxu0 0
    %1347 = vmatprep.subr.bf16.mxu0 0
    %1348 = vmatpush1.bf16.msra.mxu0 0
    %1349 = vmatprep.subr.bf16.mxu0 %v302
    %1350 = vmatpush1.bf16.msra.mxu0 %v301
    %1351 = vmatprep.subr.bf16.mxu0 %v300
    %1352 = vmatpush1.bf16.msra.mxu0 %v299
    %1353 = vmatprep.subr.bf16.mxu0 %v298
    %1354 = vmatpush1.bf16.msra.mxu0 %v297
    %1355 = vmatprep.subr.bf16.mxu0 %v296
    %1356 = vmatpush1.bf16.msra.mxu0 %v295
    %1357 = vmatprep.subr.bf16.mxu0 0
    %1358 = vmatpush2.bf16.msra.mxu0 0
    %1359 = vmatprep.subr.bf16.mxu0 0
    %1360 = vmatpush2.bf16.msra.mxu0 0
    %1361 = vmatprep.subr.bf16.mxu0 0
    %1362 = vmatpush2.bf16.msra.mxu0 0
    %1363 = vmatprep.subr.bf16.mxu0 0
    %1364 = vmatpush2.bf16.msra.mxu0 0
    %1365 = vmatprep.subr.bf16.mxu0 0
    %1366 = vmatpush2.bf16.msra.mxu0 0
    %1367 = vmatprep.subr.bf16.mxu0 0
    %1368 = vmatpush2.bf16.msra.mxu0 0
    %1369 = vmatprep.subr.bf16.mxu0 0
    %1370 = vmatpush2.bf16.msra.mxu0 0
    %1371 = vmatprep.subr.bf16.mxu0 0
    %1372 = vmatpush2.bf16.msra.mxu0 0
    %1373 = vmatprep.mubr.bf16.mxu0 0
    %1374 = vmatmul.mubr.bf16.gmra.mxu0 %v1339
    %v1375 = vpop.f32.mrf.mxu0
    %v1376 = vadd.f32 0.0, %v1375
    %v1377 = vpop.f32.mrf.mxu0
    %v1378 = vadd.f32 0.0, %v1377
    %v1379 = vpop.f32.mrf.mxu0
    %v1380 = vpop.f32.mrf.mxu0
    %1381 = vdwg.mxu0
    %1382 = vmatprep.subr.bf16.mxu0 0
    %1383 = vmatpush1.bf16.msra.mxu0 0
    %1384 = vmatprep.subr.bf16.mxu0 0
    %1385 = vmatpush1.bf16.msra.mxu0 0
    %1386 = vmatprep.subr.bf16.mxu0 0
    %1387 = vmatpush1.bf16.msra.mxu0 0
    %1388 = vmatprep.subr.bf16.mxu0 0
    %1389 = vmatpush1.bf16.msra.mxu0 0
    %1390 = vmatprep.subr.bf16.mxu0 %v389
    %1391 = vmatpush1.bf16.msra.mxu0 %v388
    %1392 = vmatprep.subr.bf16.mxu0 %v387
    %1393 = vmatpush1.bf16.msra.mxu0 %v386
    %1394 = vmatprep.subr.bf16.mxu0 %v385
    %1395 = vmatpush1.bf16.msra.mxu0 %v384
    %1396 = vmatprep.subr.bf16.mxu0 %v383
    %1397 = vmatpush1.bf16.msra.mxu0 %v382
    %1398 = vmatprep.subr.bf16.mxu0 0
    %1399 = vmatpush2.bf16.msra.mxu0 0
    %1400 = vmatprep.subr.bf16.mxu0 0
    %1401 = vmatpush2.bf16.msra.mxu0 0
    %1402 = vmatprep.subr.bf16.mxu0 0
    %1403 = vmatpush2.bf16.msra.mxu0 0
    %1404 = vmatprep.subr.bf16.mxu0 0
    %1405 = vmatpush2.bf16.msra.mxu0 0
    %1406 = vmatprep.subr.bf16.mxu0 0
    %1407 = vmatpush2.bf16.msra.mxu0 0
    %1408 = vmatprep.subr.bf16.mxu0 0
    %1409 = vmatpush2.bf16.msra.mxu0 0
    %1410 = vmatprep.subr.bf16.mxu0 0
    %1411 = vmatpush2.bf16.msra.mxu0 0
    %1412 = vmatprep.subr.bf16.mxu0 0
    %1413 = vmatpush2.bf16.msra.mxu0 0
    %1414 = vmatprep.mubr.bf16.mxu0 0
    %1415 = vmatmul.mubr.bf16.gmra.mxu0 %v1339
    %v1416 = vpop.f32.mrf.mxu0
    %v1417 = vadd.f32 0.0, %v1416
    %v1418 = vpop.f32.mrf.mxu0
    %v1419 = vadd.f32 0.0, %v1418
    %v1420 = vpop.f32.mrf.mxu0
    %v1421 = vpop.f32.mrf.mxu0
    %1422 = vdwg.mxu0
    %v1423 = vld [vmem:[#allocation3 + $0x60] sm:$0xff]
    %v1424 = vld [vmem:[#allocation3 + $0x68] sm:$0xff]
    %v1425 = vadd.f32 %v1423, %v1376
    %v1426 = vadd.f32 %v1424, %v1378
    %1427 = vst [vmem:[#allocation3 + $0x60] sm:$0xff] %v1425
    %1428 = vst [vmem:[#allocation3 + $0x68] sm:$0xff] %v1426
    %v1429 = vld [vmem:[#allocation3 + $0x10] sm:$0xff]
    %v1430 = vld [vmem:[#allocation3 + $0x18] sm:$0xff]
    %v1431 = vadd.f32 %v1429, %v1417
    %v1432 = vadd.f32 %v1430, %v1419
    %1433 = vst [vmem:[#allocation3 + $0x10] sm:$0xff] %v1431
    %1434 = vst [vmem:[#allocation3 + $0x18] sm:$0xff] %v1432
    %v1435 = vld [vmem:[#allocation2 + $0x70] sm:$0xff]
    %v1436 = vld [vmem:[#allocation2 + $0x78] sm:$0xff]
    %1437 = vmatprep.subr.bf16.mxu0 0
    %1438 = vmatpush1.bf16.msra.mxu0 0
    %1439 = vmatprep.subr.bf16.mxu0 0
    %1440 = vmatpush1.bf16.msra.mxu0 0
    %1441 = vmatprep.subr.bf16.mxu0 0
    %1442 = vmatpush1.bf16.msra.mxu0 0
    %1443 = vmatprep.subr.bf16.mxu0 0
    %1444 = vmatpush1.bf16.msra.mxu0 0
    %1445 = vmatprep.subr.bf16.mxu0 %v474
    %1446 = vmatpush1.bf16.msra.mxu0 %v473
    %1447 = vmatprep.subr.bf16.mxu0 %v472
    %1448 = vmatpush1.bf16.msra.mxu0 %v471
    %1449 = vmatprep.subr.bf16.mxu0 %v470
    %1450 = vmatpush1.bf16.msra.mxu0 %v469
    %1451 = vmatprep.subr.bf16.mxu0 %v468
    %1452 = vmatpush1.bf16.msra.mxu0 %v467
    %1453 = vmatprep.subr.bf16.mxu0 0
    %1454 = vmatpush2.bf16.msra.mxu0 0
    %1455 = vmatprep.subr.bf16.mxu0 0
    %1456 = vmatpush2.bf16.msra.mxu0 0
    %1457 = vmatprep.subr.bf16.mxu0 0
    %1458 = vmatpush2.bf16.msra.mxu0 0
    %1459 = vmatprep.subr.bf16.mxu0 0
    %1460 = vmatpush2.bf16.msra.mxu0 0
    %1461 = vmatprep.subr.bf16.mxu0 0
    %1462 = vmatpush2.bf16.msra.mxu0 0
    %1463 = vmatprep.subr.bf16.mxu0 0
    %1464 = vmatpush2.bf16.msra.mxu0 0
    %1465 = vmatprep.subr.bf16.mxu0 0
    %1466 = vmatpush2.bf16.msra.mxu0 0
    %1467 = vmatprep.subr.bf16.mxu0 0
    %1468 = vmatpush2.bf16.msra.mxu0 0
    %1469 = vmatprep.mubr.bf16.mxu0 0
    %1470 = vmatmul.mubr.bf16.gmra.mxu0 %v1339
    %v1471 = vpop.f32.mrf.mxu0
    %v1472 = vadd.f32 0.0, %v1471
    %v1473 = vpop.f32.mrf.mxu0
    %v1474 = vadd.f32 0.0, %v1473
    %v1475 = vpop.f32.mrf.mxu0
    %v1476 = vpop.f32.mrf.mxu0
    %1477 = vdwg.mxu0
    %v1478 = vadd.f32 %v1435, %v1472
    %v1479 = vadd.f32 %v1436, %v1474
    %v1480 = vmul.f32 %v41, %v1478
    %v1481 = vmul.f32 %v42, %v1479
    %v1482 = vtanh.pop %v1480
    %v1483 = vtanh.pop %v1481
    %v1484 = vmul.f32 %v41, %v1482
    %v1485 = vmul.f32 %v42, %v1483
    %v1486 = vadd.f32 %v1484, %v43
    %v1487 = vadd.f32 %v1485, %v44
    %v1488 = vmul.f32 %v1486, %v1331
    %v1489 = vmul.f32 %v1486, %v1487
    %1491 = vrot.lane.b32.xlu0 %v1489, 64
    %v1492 = vpop.permute.xlu0 %1491
    %v1494 = vadd.f32 %v1488, %v1492
    %v1495 = vtanh.pop %v1494
    %v1496 = vmul.f32 %v1487, %v1495
    %v1497 = vpack.c.bf16 %v1496, %v1496
    %1499 = vrot.lane.b32.xlu0 %v1497, 64
    %v1500 = vpop.permute.xlu0 %1499
    %v1502 = vsel %vm311, %v1500, 0
    %1504 = vmatprep.subr.bf16.mxu0 0
    %1505 = vmatpush1.bf16.msra.mxu0 0
    %1506 = vmatprep.subr.bf16.mxu0 0
    %1507 = vmatpush1.bf16.msra.mxu0 0
    %1508 = vmatprep.subr.bf16.mxu0 0
    %1509 = vmatpush1.bf16.msra.mxu0 0
    %1510 = vmatprep.subr.bf16.mxu0 0
    %1511 = vmatpush1.bf16.msra.mxu0 0
    %1512 = vmatprep.subr.bf16.mxu0 %v302
    %1513 = vmatpush1.bf16.msra.mxu0 %v301
    %1514 = vmatprep.subr.bf16.mxu0 %v300
    %1515 = vmatpush1.bf16.msra.mxu0 %v299
    %1516 = vmatprep.subr.bf16.mxu0 %v298
    %1517 = vmatpush1.bf16.msra.mxu0 %v297
    %1518 = vmatprep.subr.bf16.mxu0 %v296
    %1519 = vmatpush1.bf16.msra.mxu0 %v295
    %1520 = vmatprep.subr.bf16.mxu0 0
    %1521 = vmatpush2.bf16.msra.mxu0 0
    %1522 = vmatprep.subr.bf16.mxu0 0
    %1523 = vmatpush2.bf16.msra.mxu0 0
    %1524 = vmatprep.subr.bf16.mxu0 0
    %1525 = vmatpush2.bf16.msra.mxu0 0
    %1526 = vmatprep.subr.bf16.mxu0 0
    %1527 = vmatpush2.bf16.msra.mxu0 0
    %1528 = vmatprep.subr.bf16.mxu0 0
    %1529 = vmatpush2.bf16.msra.mxu0 0
    %1530 = vmatprep.subr.bf16.mxu0 0
    %1531 = vmatpush2.bf16.msra.mxu0 0
    %1532 = vmatprep.subr.bf16.mxu0 0
    %1533 = vmatpush2.bf16.msra.mxu0 0
    %1534 = vmatprep.subr.bf16.mxu0 0
    %1535 = vmatpush2.bf16.msra.mxu0 0
    %1536 = vmatprep.mubr.bf16.mxu0 0
    %1537 = vmatmul.mubr.bf16.gmra.mxu0 %v1502
    %v1538 = vpop.f32.mrf.mxu0
    %v1539 = vadd.f32 0.0, %v1538
    %v1540 = vpop.f32.mrf.mxu0
    %v1541 = vadd.f32 0.0, %v1540
    %v1542 = vpop.f32.mrf.mxu0
    %v1543 = vpop.f32.mrf.mxu0
    %1544 = vdwg.mxu0
    %1545 = vmatprep.subr.bf16.mxu0 0
    %1546 = vmatpush1.bf16.msra.mxu0 0
    %1547 = vmatprep.subr.bf16.mxu0 0
    %1548 = vmatpush1.bf16.msra.mxu0 0
    %1549 = vmatprep.subr.bf16.mxu0 0
    %1550 = vmatpush1.bf16.msra.mxu0 0
    %1551 = vmatprep.subr.bf16.mxu0 0
    %1552 = vmatpush1.bf16.msra.mxu0 0
    %1553 = vmatprep.subr.bf16.mxu0 %v389
    %1554 = vmatpush1.bf16.msra.mxu0 %v388
    %1555 = vmatprep.subr.bf16.mxu0 %v387
    %1556 = vmatpush1.bf16.msra.mxu0 %v386
    %1557 = vmatprep.subr.bf16.mxu0 %v385
    %1558 = vmatpush1.bf16.msra.mxu0 %v384
    %1559 = vmatprep.subr.bf16.mxu0 %v383
    %1560 = vmatpush1.bf16.msra.mxu0 %v382
    %1561 = vmatprep.subr.bf16.mxu0 0
    %1562 = vmatpush2.bf16.msra.mxu0 0
    %1563 = vmatprep.subr.bf16.mxu0 0
    %1564 = vmatpush2.bf16.msra.mxu0 0
    %1565 = vmatprep.subr.bf16.mxu0 0
    %1566 = vmatpush2.bf16.msra.mxu0 0
    %1567 = vmatprep.subr.bf16.mxu0 0
    %1568 = vmatpush2.bf16.msra.mxu0 0
    %1569 = vmatprep.subr.bf16.mxu0 0
    %1570 = vmatpush2.bf16.msra.mxu0 0
    %1571 = vmatprep.subr.bf16.mxu0 0
    %1572 = vmatpush2.bf16.msra.mxu0 0
    %1573 = vmatprep.subr.bf16.mxu0 0
    %1574 = vmatpush2.bf16.msra.mxu0 0
    %1575 = vmatprep.subr.bf16.mxu0 0
    %1576 = vmatpush2.bf16.msra.mxu0 0
    %1577 = vmatprep.mubr.bf16.mxu0 0
    %1578 = vmatmul.mubr.bf16.gmra.mxu0 %v1502
    %v1579 = vpop.f32.mrf.mxu0
    %v1580 = vadd.f32 0.0, %v1579
    %v1581 = vpop.f32.mrf.mxu0
    %v1582 = vadd.f32 0.0, %v1581
    %v1583 = vpop.f32.mrf.mxu0
    %v1584 = vpop.f32.mrf.mxu0
    %1585 = vdwg.mxu0
    %v1586 = vld [vmem:[#allocation3 + $0x70] sm:$0xff]
    %v1587 = vld [vmem:[#allocation3 + $0x78] sm:$0xff]
    %v1588 = vadd.f32 %v1586, %v1539
    %v1589 = vadd.f32 %v1587, %v1541
    %1590 = vst [vmem:[#allocation3 + $0x70] sm:$0xff] %v1588
    %1591 = vst [vmem:[#allocation3 + $0x78] sm:$0xff] %v1589
    %v1592 = vld [vmem:[#allocation3] sm:$0xff]
    %v1593 = vld [vmem:[#allocation3 + $0x8] sm:$0xff]
    %v1594 = vadd.f32 %v1592, %v1580
    %v1595 = vadd.f32 %v1593, %v1582
    %1596 = vst [vmem:[#allocation3] sm:$0xff] %v1594
    %1597 = vst [vmem:[#allocation3 + $0x8] sm:$0xff] %v1595
    %v1598 = vld [vmem:[#allocation4 + $0xe0] sm:$0xff]
    %v1599 = vld [vmem:[#allocation4 + $0xe8] sm:$0xff]
    %v1600 = vld [vmem:[#allocation4 + $0xf0] sm:$0xff]
    %v1601 = vld [vmem:[#allocation4 + $0xf8] sm:$0xff]
    %v1602 = vld [vmem:[#allocation4 + $0x100] sm:$0xff]
    %v1603 = vld [vmem:[#allocation4 + $0x108] sm:$0xff]
    %v1604 = vld [vmem:[#allocation4 + $0x110] sm:$0xff]
    %v1605 = vld [vmem:[#allocation4 + $0x118] sm:$0xff]
    %v1606 = vld [vmem:[#allocation3] sm:$0xff]
    %v1607 = vld [vmem:[#allocation3 + $0x8] sm:$0xff]
    %v1608 = vmul.f32 %v41, %v1606
    %v1609 = vmul.f32 %v42, %v1607
    %v1610 = vtanh.pop %v1608
    %v1611 = vtanh.pop %v1609
    %v1612 = vmul.f32 %v41, %v1610
    %v1613 = vmul.f32 %v42, %v1611
    %v1614 = vadd.f32 %v1612, %v43
    %v1615 = vadd.f32 %v1613, %v44
    %v1616 = vmul.f32 %v1614, 0.0
    %v1617 = vmul.f32 %v1614, %v1615
    %1619 = vrot.lane.b32.xlu0 %v1617, 64
    %v1620 = vpop.permute.xlu0 %1619
    %v1622 = vadd.f32 %v1616, %v1620
    %v1623 = vtanh.pop %v1622
    %v1624 = vmul.f32 %v1615, %v1623
    %v1625 = vpack.c.bf16 %v1624, %v1624
    %v1626 = vld [vmem:[#allocation3 + $0x10] sm:$0xff]
    %v1627 = vld [vmem:[#allocation3 + $0x18] sm:$0xff]
    %1629 = vrot.lane.b32.xlu0 %v1625, 64
    %v1630 = vpop.permute.xlu0 %1629
    %v1639 = vunpack.c.l.b16 %v1598
    %v1640 = vunpack.c.h.b16 %v1598
    %v1641 = vunpack.c.l.b16 %v1599
    %v1642 = vunpack.c.h.b16 %v1599
    %v1643 = vunpack.c.l.b16 %v1600
    %v1644 = vunpack.c.h.b16 %v1600
    %v1645 = vunpack.c.l.b16 %v1601
    %v1646 = vunpack.c.h.b16 %v1601
    %v1647 = vunpack.c.l.b16 %v1602
    %v1648 = vunpack.c.h.b16 %v1602
    %v1649 = vunpack.c.l.b16 %v1603
    %v1650 = vunpack.c.h.b16 %v1603
    %v1651 = vunpack.c.l.b16 %v1604
    %v1652 = vunpack.c.h.b16 %v1604
    %v1653 = vunpack.c.l.b16 %v1605
    %v1654 = vunpack.c.h.b16 %v1605
    %v1655 = vpack.c.b16 %v1641, %v1639
    %v1656 = vpack.c.b16 %v1642, %v1640
    %v1657 = vpack.c.b16 %v1645, %v1643
    %v1658 = vpack.c.b16 %v1646, %v1644
    %v1659 = vpack.c.b16 %v1649, %v1647
    %v1660 = vpack.c.b16 %v1650, %v1648
    %v1661 = vpack.c.b16 %v1653, %v1651
    %v1662 = vpack.c.b16 %v1654, %v1652
    %v1672 = vsel %vm311, %v1630, 0
    %1674 = vmatprep.subr.bf16.mxu0 0
    %1675 = vmatpush1.bf16.msra.mxu0 0
    %1676 = vmatprep.subr.bf16.mxu0 0
    %1677 = vmatpush1.bf16.msra.mxu0 0
    %1678 = vmatprep.subr.bf16.mxu0 0
    %1679 = vmatpush1.bf16.msra.mxu0 0
    %1680 = vmatprep.subr.bf16.mxu0 0
    %1681 = vmatpush1.bf16.msra.mxu0 0
    %1682 = vmatprep.subr.bf16.mxu0 %v1662
    %1683 = vmatpush1.bf16.msra.mxu0 %v1661
    %1684 = vmatprep.subr.bf16.mxu0 %v1660
    %1685 = vmatpush1.bf16.msra.mxu0 %v1659
    %1686 = vmatprep.subr.bf16.mxu0 %v1658
    %1687 = vmatpush1.bf16.msra.mxu0 %v1657
    %1688 = vmatprep.subr.bf16.mxu0 %v1656
    %1689 = vmatpush1.bf16.msra.mxu0 %v1655
    %1690 = vmatprep.subr.bf16.mxu0 0
    %1691 = vmatpush2.bf16.msra.mxu0 0
    %1692 = vmatprep.subr.bf16.mxu0 0
    %1693 = vmatpush2.bf16.msra.mxu0 0
    %1694 = vmatprep.subr.bf16.mxu0 0
    %1695 = vmatpush2.bf16.msra.mxu0 0
    %1696 = vmatprep.subr.bf16.mxu0 0
    %1697 = vmatpush2.bf16.msra.mxu0 0
    %1698 = vmatprep.subr.bf16.mxu0 0
    %1699 = vmatpush2.bf16.msra.mxu0 0
    %1700 = vmatprep.subr.bf16.mxu0 0
    %1701 = vmatpush2.bf16.msra.mxu0 0
    %1702 = vmatprep.subr.bf16.mxu0 0
    %1703 = vmatpush2.bf16.msra.mxu0 0
    %1704 = vmatprep.subr.bf16.mxu0 0
    %1705 = vmatpush2.bf16.msra.mxu0 0
    %1706 = vmatprep.mubr.bf16.mxu0 0
    %1707 = vmatmul.mubr.bf16.gmra.mxu0 %v1672
    %v1708 = vpop.f32.mrf.mxu0
    %v1709 = vadd.f32 0.0, %v1708
    %v1710 = vpop.f32.mrf.mxu0
    %v1711 = vadd.f32 0.0, %v1710
    %v1712 = vpop.f32.mrf.mxu0
    %v1713 = vpop.f32.mrf.mxu0
    %1714 = vdwg.mxu0
    %v1715 = vadd.f32 %v1626, %v1709
    %v1716 = vadd.f32 %v1627, %v1711
    %v1717 = vmul.f32 %v41, %v1715
    %v1718 = vmul.f32 %v42, %v1716
    %v1719 = vtanh.pop %v1717
    %v1720 = vtanh.pop %v1718
    %v1721 = vmul.f32 %v41, %v1719
    %v1722 = vmul.f32 %v42, %v1720
    %v1723 = vadd.f32 %v1721, %v43
    %v1724 = vadd.f32 %v1722, %v44
    %v1725 = vmul.f32 %v1723, %v1622
    %v1726 = vmul.f32 %v1723, %v1724
    %1728 = vrot.lane.b32.xlu0 %v1726, 64
    %v1729 = vpop.permute.xlu0 %1728
    %v1731 = vadd.f32 %v1725, %v1729
    %v1732 = vtanh.pop %v1731
    %v1733 = vmul.f32 %v1724, %v1732
    %v1734 = vpack.c.bf16 %v1733, %v1733
    %v1735 = vld [vmem:[#allocation3 + $0x20] sm:$0xff]
    %v1736 = vld [vmem:[#allocation3 + $0x28] sm:$0xff]
    %1738 = vrot.lane.b32.xlu0 %v1734, 64
    %v1739 = vpop.permute.xlu0 %1738
    %v1741 = vsel %vm311, %v1739, 0
    %1743 = vmatprep.subr.bf16.mxu0 0
    %1744 = vmatpush1.bf16.msra.mxu0 0
    %1745 = vmatprep.subr.bf16.mxu0 0
    %1746 = vmatpush1.bf16.msra.mxu0 0
    %1747 = vmatprep.subr.bf16.mxu0 0
    %1748 = vmatpush1.bf16.msra.mxu0 0
    %1749 = vmatprep.subr.bf16.mxu0 0
    %1750 = vmatpush1.bf16.msra.mxu0 0
    %1751 = vmatprep.subr.bf16.mxu0 %v1662
    %1752 = vmatpush1.bf16.msra.mxu0 %v1661
    %1753 = vmatprep.subr.bf16.mxu0 %v1660
    %1754 = vmatpush1.bf16.msra.mxu0 %v1659
    %1755 = vmatprep.subr.bf16.mxu0 %v1658
    %1756 = vmatpush1.bf16.msra.mxu0 %v1657
    %1757 = vmatprep.subr.bf16.mxu0 %v1656
    %1758 = vmatpush1.bf16.msra.mxu0 %v1655
    %1759 = vmatprep.subr.bf16.mxu0 0
    %1760 = vmatpush2.bf16.msra.mxu0 0
    %1761 = vmatprep.subr.bf16.mxu0 0
    %1762 = vmatpush2.bf16.msra.mxu0 0
    %1763 = vmatprep.subr.bf16.mxu0 0
    %1764 = vmatpush2.bf16.msra.mxu0 0
    %1765 = vmatprep.subr.bf16.mxu0 0
    %1766 = vmatpush2.bf16.msra.mxu0 0
    %1767 = vmatprep.subr.bf16.mxu0 0
    %1768 = vmatpush2.bf16.msra.mxu0 0
    %1769 = vmatprep.subr.bf16.mxu0 0
    %1770 = vmatpush2.bf16.msra.mxu0 0
    %1771 = vmatprep.subr.bf16.mxu0 0
    %1772 = vmatpush2.bf16.msra.mxu0 0
    %1773 = vmatprep.subr.bf16.mxu0 0
    %1774 = vmatpush2.bf16.msra.mxu0 0
    %1775 = vmatprep.mubr.bf16.mxu0 0
    %1776 = vmatmul.mubr.bf16.gmra.mxu0 %v1741
    %v1777 = vpop.f32.mrf.mxu0
    %v1778 = vadd.f32 0.0, %v1777
    %v1779 = vpop.f32.mrf.mxu0
    %v1780 = vadd.f32 0.0, %v1779
    %v1781 = vpop.f32.mrf.mxu0
    %v1782 = vpop.f32.mrf.mxu0
    %1783 = vdwg.mxu0
    %v1784 = vadd.f32 %v1735, %v1778
    %v1785 = vadd.f32 %v1736, %v1780
    %v1786 = vmul.f32 %v41, %v1784
    %v1787 = vmul.f32 %v42, %v1785
    %v1788 = vtanh.pop %v1786
    %v1789 = vtanh.pop %v1787
    %v1790 = vmul.f32 %v41, %v1788
    %v1791 = vmul.f32 %v42, %v1789
    %v1792 = vadd.f32 %v1790, %v43
    %v1793 = vadd.f32 %v1791, %v44
    %v1794 = vmul.f32 %v1792, %v1731
    %v1795 = vmul.f32 %v1792, %v1793
    %1797 = vrot.lane.b32.xlu0 %v1795, 64
    %v1798 = vpop.permute.xlu0 %1797
    %v1800 = vadd.f32 %v1794, %v1798
    %v1801 = vtanh.pop %v1800
    %v1802 = vmul.f32 %v1793, %v1801
    %v1803 = vpack.c.bf16 %v1802, %v1802
    %v1804 = vld [vmem:[#allocation3 + $0x30] sm:$0xff]
    %v1805 = vld [vmem:[#allocation3 + $0x38] sm:$0xff]
    %1807 = vrot.lane.b32.xlu0 %v1803, 64
    %v1808 = vpop.permute.xlu0 %1807
    %v1810 = vsel %vm311, %v1808, 0
    %1812 = vmatprep.subr.bf16.mxu0 0
    %1813 = vmatpush1.bf16.msra.mxu0 0
    %1814 = vmatprep.subr.bf16.mxu0 0
    %1815 = vmatpush1.bf16.msra.mxu0 0
    %1816 = vmatprep.subr.bf16.mxu0 0
    %1817 = vmatpush1.bf16.msra.mxu0 0
    %1818 = vmatprep.subr.bf16.mxu0 0
    %1819 = vmatpush1.bf16.msra.mxu0 0
    %1820 = vmatprep.subr.bf16.mxu0 %v1662
    %1821 = vmatpush1.bf16.msra.mxu0 %v1661
    %1822 = vmatprep.subr.bf16.mxu0 %v1660
    %1823 = vmatpush1.bf16.msra.mxu0 %v1659
    %1824 = vmatprep.subr.bf16.mxu0 %v1658
    %1825 = vmatpush1.bf16.msra.mxu0 %v1657
    %1826 = vmatprep.subr.bf16.mxu0 %v1656
    %1827 = vmatpush1.bf16.msra.mxu0 %v1655
    %1828 = vmatprep.subr.bf16.mxu0 0
    %1829 = vmatpush2.bf16.msra.mxu0 0
    %1830 = vmatprep.subr.bf16.mxu0 0
    %1831 = vmatpush2.bf16.msra.mxu0 0
    %1832 = vmatprep.subr.bf16.mxu0 0
    %1833 = vmatpush2.bf16.msra.mxu0 0
    %1834 = vmatprep.subr.bf16.mxu0 0
    %1835 = vmatpush2.bf16.msra.mxu0 0
    %1836 = vmatprep.subr.bf16.mxu0 0
    %1837 = vmatpush2.bf16.msra.mxu0 0
    %1838 = vmatprep.subr.bf16.mxu0 0
    %1839 = vmatpush2.bf16.msra.mxu0 0
    %1840 = vmatprep.subr.bf16.mxu0 0
    %1841 = vmatpush2.bf16.msra.mxu0 0
    %1842 = vmatprep.subr.bf16.mxu0 0
    %1843 = vmatpush2.bf16.msra.mxu0 0
    %1844 = vmatprep.mubr.bf16.mxu0 0
    %1845 = vmatmul.mubr.bf16.gmra.mxu0 %v1810
    %v1846 = vpop.f32.mrf.mxu0
    %v1847 = vadd.f32 0.0, %v1846
    %v1848 = vpop.f32.mrf.mxu0
    %v1849 = vadd.f32 0.0, %v1848
    %v1850 = vpop.f32.mrf.mxu0
    %v1851 = vpop.f32.mrf.mxu0
    %1852 = vdwg.mxu0
    %v1853 = vadd.f32 %v1804, %v1847
    %v1854 = vadd.f32 %v1805, %v1849
    %v1855 = vmul.f32 %v41, %v1853
    %v1856 = vmul.f32 %v42, %v1854
    %v1857 = vtanh.pop %v1855
    %v1858 = vtanh.pop %v1856
    %v1859 = vmul.f32 %v41, %v1857
    %v1860 = vmul.f32 %v42, %v1858
    %v1861 = vadd.f32 %v1859, %v43
    %v1862 = vadd.f32 %v1860, %v44
    %v1863 = vmul.f32 %v1861, %v1800
    %v1864 = vmul.f32 %v1861, %v1862
    %1866 = vrot.lane.b32.xlu0 %v1864, 64
    %v1867 = vpop.permute.xlu0 %1866
    %v1869 = vadd.f32 %v1863, %v1867
    %v1870 = vtanh.pop %v1869
    %v1871 = vmul.f32 %v1862, %v1870
    %v1872 = vpack.c.bf16 %v1871, %v1871
    %v1873 = vld [vmem:[#allocation3 + $0x40] sm:$0xff]
    %v1874 = vld [vmem:[#allocation3 + $0x48] sm:$0xff]
    %1876 = vrot.lane.b32.xlu0 %v1872, 64
    %v1877 = vpop.permute.xlu0 %1876
    %v1879 = vsel %vm311, %v1877, 0
    %1881 = vmatprep.subr.bf16.mxu0 0
    %1882 = vmatpush1.bf16.msra.mxu0 0
    %1883 = vmatprep.subr.bf16.mxu0 0
    %1884 = vmatpush1.bf16.msra.mxu0 0
    %1885 = vmatprep.subr.bf16.mxu0 0
    %1886 = vmatpush1.bf16.msra.mxu0 0
    %1887 = vmatprep.subr.bf16.mxu0 0
    %1888 = vmatpush1.bf16.msra.mxu0 0
    %1889 = vmatprep.subr.bf16.mxu0 %v1662
    %1890 = vmatpush1.bf16.msra.mxu0 %v1661
    %1891 = vmatprep.subr.bf16.mxu0 %v1660
    %1892 = vmatpush1.bf16.msra.mxu0 %v1659
    %1893 = vmatprep.subr.bf16.mxu0 %v1658
    %1894 = vmatpush1.bf16.msra.mxu0 %v1657
    %1895 = vmatprep.subr.bf16.mxu0 %v1656
    %1896 = vmatpush1.bf16.msra.mxu0 %v1655
    %1897 = vmatprep.subr.bf16.mxu0 0
    %1898 = vmatpush2.bf16.msra.mxu0 0
    %1899 = vmatprep.subr.bf16.mxu0 0
    %1900 = vmatpush2.bf16.msra.mxu0 0
    %1901 = vmatprep.subr.bf16.mxu0 0
    %1902 = vmatpush2.bf16.msra.mxu0 0
    %1903 = vmatprep.subr.bf16.mxu0 0
    %1904 = vmatpush2.bf16.msra.mxu0 0
    %1905 = vmatprep.subr.bf16.mxu0 0
    %1906 = vmatpush2.bf16.msra.mxu0 0
    %1907 = vmatprep.subr.bf16.mxu0 0
    %1908 = vmatpush2.bf16.msra.mxu0 0
    %1909 = vmatprep.subr.bf16.mxu0 0
    %1910 = vmatpush2.bf16.msra.mxu0 0
    %1911 = vmatprep.subr.bf16.mxu0 0
    %1912 = vmatpush2.bf16.msra.mxu0 0
    %1913 = vmatprep.mubr.bf16.mxu0 0
    %1914 = vmatmul.mubr.bf16.gmra.mxu0 %v1879
    %v1915 = vpop.f32.mrf.mxu0
    %v1916 = vadd.f32 0.0, %v1915
    %v1917 = vpop.f32.mrf.mxu0
    %v1918 = vadd.f32 0.0, %v1917
    %v1919 = vpop.f32.mrf.mxu0
    %v1920 = vpop.f32.mrf.mxu0
    %1921 = vdwg.mxu0
    %v1922 = vadd.f32 %v1873, %v1916
    %v1923 = vadd.f32 %v1874, %v1918
    %v1924 = vmul.f32 %v41, %v1922
    %v1925 = vmul.f32 %v42, %v1923
    %v1926 = vtanh.pop %v1924
    %v1927 = vtanh.pop %v1925
    %v1928 = vmul.f32 %v41, %v1926
    %v1929 = vmul.f32 %v42, %v1927
    %v1930 = vadd.f32 %v1928, %v43
    %v1931 = vadd.f32 %v1929, %v44
    %v1932 = vmul.f32 %v1930, %v1869
    %v1933 = vmul.f32 %v1930, %v1931
    %1935 = vrot.lane.b32.xlu0 %v1933, 64
    %v1936 = vpop.permute.xlu0 %1935
    %v1938 = vadd.f32 %v1932, %v1936
    %v1939 = vtanh.pop %v1938
    %v1940 = vmul.f32 %v1931, %v1939
    %v1941 = vpack.c.bf16 %v1940, %v1940
    %v1942 = vld [vmem:[#allocation3 + $0x50] sm:$0xff]
    %v1943 = vld [vmem:[#allocation3 + $0x58] sm:$0xff]
    %1945 = vrot.lane.b32.xlu0 %v1941, 64
    %v1946 = vpop.permute.xlu0 %1945
    %v1948 = vsel %vm311, %v1946, 0
    %1950 = vmatprep.subr.bf16.mxu0 0
    %1951 = vmatpush1.bf16.msra.mxu0 0
    %1952 = vmatprep.subr.bf16.mxu0 0
    %1953 = vmatpush1.bf16.msra.mxu0 0
    %1954 = vmatprep.subr.bf16.mxu0 0
    %1955 = vmatpush1.bf16.msra.mxu0 0
    %1956 = vmatprep.subr.bf16.mxu0 0
    %1957 = vmatpush1.bf16.msra.mxu0 0
    %1958 = vmatprep.subr.bf16.mxu0 %v1662
    %1959 = vmatpush1.bf16.msra.mxu0 %v1661
    %1960 = vmatprep.subr.bf16.mxu0 %v1660
    %1961 = vmatpush1.bf16.msra.mxu0 %v1659
    %1962 = vmatprep.subr.bf16.mxu0 %v1658
    %1963 = vmatpush1.bf16.msra.mxu0 %v1657
    %1964 = vmatprep.subr.bf16.mxu0 %v1656
    %1965 = vmatpush1.bf16.msra.mxu0 %v1655
    %1966 = vmatprep.subr.bf16.mxu0 0
    %1967 = vmatpush2.bf16.msra.mxu0 0
    %1968 = vmatprep.subr.bf16.mxu0 0
    %1969 = vmatpush2.bf16.msra.mxu0 0
    %1970 = vmatprep.subr.bf16.mxu0 0
    %1971 = vmatpush2.bf16.msra.mxu0 0
    %1972 = vmatprep.subr.bf16.mxu0 0
    %1973 = vmatpush2.bf16.msra.mxu0 0
    %1974 = vmatprep.subr.bf16.mxu0 0
    %1975 = vmatpush2.bf16.msra.mxu0 0
    %1976 = vmatprep.subr.bf16.mxu0 0
    %1977 = vmatpush2.bf16.msra.mxu0 0
    %1978 = vmatprep.subr.bf16.mxu0 0
    %1979 = vmatpush2.bf16.msra.mxu0 0
    %1980 = vmatprep.subr.bf16.mxu0 0
    %1981 = vmatpush2.bf16.msra.mxu0 0
    %1982 = vmatprep.mubr.bf16.mxu0 0
    %1983 = vmatmul.mubr.bf16.gmra.mxu0 %v1948
    %v1984 = vpop.f32.mrf.mxu0
    %v1985 = vadd.f32 0.0, %v1984
    %v1986 = vpop.f32.mrf.mxu0
    %v1987 = vadd.f32 0.0, %v1986
    %v1988 = vpop.f32.mrf.mxu0
    %v1989 = vpop.f32.mrf.mxu0
    %1990 = vdwg.mxu0
    %v1991 = vadd.f32 %v1942, %v1985
    %v1992 = vadd.f32 %v1943, %v1987
    %v1993 = vmul.f32 %v41, %v1991
    %v1994 = vmul.f32 %v42, %v1992
    %v1995 = vtanh.pop %v1993
    %v1996 = vtanh.pop %v1994
    %v1997 = vmul.f32 %v41, %v1995
    %v1998 = vmul.f32 %v42, %v1996
    %v1999 = vadd.f32 %v1997, %v43
    %v2000 = vadd.f32 %v1998, %v44
    %v2001 = vmul.f32 %v1999, %v1938
    %v2002 = vmul.f32 %v1999, %v2000
    %2004 = vrot.lane.b32.xlu0 %v2002, 64
    %v2005 = vpop.permute.xlu0 %2004
    %v2007 = vadd.f32 %v2001, %v2005
    %v2008 = vtanh.pop %v2007
    %v2009 = vmul.f32 %v2000, %v2008
    %v2010 = vpack.c.bf16 %v2009, %v2009
    %v2011 = vld [vmem:[#allocation3 + $0x60] sm:$0xff]
    %v2012 = vld [vmem:[#allocation3 + $0x68] sm:$0xff]
    %2014 = vrot.lane.b32.xlu0 %v2010, 64
    %v2015 = vpop.permute.xlu0 %2014
    %v2017 = vsel %vm311, %v2015, 0
    %2019 = vmatprep.subr.bf16.mxu0 0
    %2020 = vmatpush1.bf16.msra.mxu0 0
    %2021 = vmatprep.subr.bf16.mxu0 0
    %2022 = vmatpush1.bf16.msra.mxu0 0
    %2023 = vmatprep.subr.bf16.mxu0 0
    %2024 = vmatpush1.bf16.msra.mxu0 0
    %2025 = vmatprep.subr.bf16.mxu0 0
    %2026 = vmatpush1.bf16.msra.mxu0 0
    %2027 = vmatprep.subr.bf16.mxu0 %v1662
    %2028 = vmatpush1.bf16.msra.mxu0 %v1661
    %2029 = vmatprep.subr.bf16.mxu0 %v1660
    %2030 = vmatpush1.bf16.msra.mxu0 %v1659
    %2031 = vmatprep.subr.bf16.mxu0 %v1658
    %2032 = vmatpush1.bf16.msra.mxu0 %v1657
    %2033 = vmatprep.subr.bf16.mxu0 %v1656
    %2034 = vmatpush1.bf16.msra.mxu0 %v1655
    %2035 = vmatprep.subr.bf16.mxu0 0
    %2036 = vmatpush2.bf16.msra.mxu0 0
    %2037 = vmatprep.subr.bf16.mxu0 0
    %2038 = vmatpush2.bf16.msra.mxu0 0
    %2039 = vmatprep.subr.bf16.mxu0 0
    %2040 = vmatpush2.bf16.msra.mxu0 0
    %2041 = vmatprep.subr.bf16.mxu0 0
    %2042 = vmatpush2.bf16.msra.mxu0 0
    %2043 = vmatprep.subr.bf16.mxu0 0
    %2044 = vmatpush2.bf16.msra.mxu0 0
    %2045 = vmatprep.subr.bf16.mxu0 0
    %2046 = vmatpush2.bf16.msra.mxu0 0
    %2047 = vmatprep.subr.bf16.mxu0 0
    %2048 = vmatpush2.bf16.msra.mxu0 0
    %2049 = vmatprep.subr.bf16.mxu0 0
    %2050 = vmatpush2.bf16.msra.mxu0 0
    %2051 = vmatprep.mubr.bf16.mxu0 0
    %2052 = vmatmul.mubr.bf16.gmra.mxu0 %v2017
    %v2053 = vpop.f32.mrf.mxu0
    %v2054 = vadd.f32 0.0, %v2053
    %v2055 = vpop.f32.mrf.mxu0
    %v2056 = vadd.f32 0.0, %v2055
    %v2057 = vpop.f32.mrf.mxu0
    %v2058 = vpop.f32.mrf.mxu0
    %2059 = vdwg.mxu0
    %v2060 = vadd.f32 %v2011, %v2054
    %v2061 = vadd.f32 %v2012, %v2056
    %v2062 = vmul.f32 %v41, %v2060
    %v2063 = vmul.f32 %v42, %v2061
    %v2064 = vtanh.pop %v2062
    %v2065 = vtanh.pop %v2063
    %v2066 = vmul.f32 %v41, %v2064
    %v2067 = vmul.f32 %v42, %v2065
    %v2068 = vadd.f32 %v2066, %v43
    %v2069 = vadd.f32 %v2067, %v44
    %v2070 = vmul.f32 %v2068, %v2007
    %v2071 = vmul.f32 %v2068, %v2069
    %2073 = vrot.lane.b32.xlu0 %v2071, 64
    %v2074 = vpop.permute.xlu0 %2073
    %v2076 = vadd.f32 %v2070, %v2074
    %v2077 = vtanh.pop %v2076
    %v2078 = vmul.f32 %v2069, %v2077
    %v2079 = vpack.c.bf16 %v2078, %v2078
    %v2080 = vld [vmem:[#allocation3 + $0x70] sm:$0xff]
    %v2081 = vld [vmem:[#allocation3 + $0x78] sm:$0xff]
    %2083 = vrot.lane.b32.xlu0 %v2079, 64
    %v2084 = vpop.permute.xlu0 %2083
    %v2086 = vsel %vm311, %v2084, 0
    %2088 = vmatprep.subr.bf16.mxu0 0
    %2089 = vmatpush1.bf16.msra.mxu0 0
    %2090 = vmatprep.subr.bf16.mxu0 0
    %2091 = vmatpush1.bf16.msra.mxu0 0
    %2092 = vmatprep.subr.bf16.mxu0 0
    %2093 = vmatpush1.bf16.msra.mxu0 0
    %2094 = vmatprep.subr.bf16.mxu0 0
    %2095 = vmatpush1.bf16.msra.mxu0 0
    %2096 = vmatprep.subr.bf16.mxu0 %v1662
    %2097 = vmatpush1.bf16.msra.mxu0 %v1661
    %2098 = vmatprep.subr.bf16.mxu0 %v1660
    %2099 = vmatpush1.bf16.msra.mxu0 %v1659
    %2100 = vmatprep.subr.bf16.mxu0 %v1658
    %2101 = vmatpush1.bf16.msra.mxu0 %v1657
    %2102 = vmatprep.subr.bf16.mxu0 %v1656
    %2103 = vmatpush1.bf16.msra.mxu0 %v1655
    %2104 = vmatprep.subr.bf16.mxu0 0
    %2105 = vmatpush2.bf16.msra.mxu0 0
    %2106 = vmatprep.subr.bf16.mxu0 0
    %2107 = vmatpush2.bf16.msra.mxu0 0
    %2108 = vmatprep.subr.bf16.mxu0 0
    %2109 = vmatpush2.bf16.msra.mxu0 0
    %2110 = vmatprep.subr.bf16.mxu0 0
    %2111 = vmatpush2.bf16.msra.mxu0 0
    %2112 = vmatprep.subr.bf16.mxu0 0
    %2113 = vmatpush2.bf16.msra.mxu0 0
    %2114 = vmatprep.subr.bf16.mxu0 0
    %2115 = vmatpush2.bf16.msra.mxu0 0
    %2116 = vmatprep.subr.bf16.mxu0 0
    %2117 = vmatpush2.bf16.msra.mxu0 0
    %2118 = vmatprep.subr.bf16.mxu0 0
    %2119 = vmatpush2.bf16.msra.mxu0 0
    %2120 = vmatprep.mubr.bf16.mxu0 0
    %2121 = vmatmul.mubr.bf16.gmra.mxu0 %v2086
    %v2122 = vpop.f32.mrf.mxu0
    %v2123 = vadd.f32 0.0, %v2122
    %v2124 = vpop.f32.mrf.mxu0
    %v2125 = vadd.f32 0.0, %v2124
    %v2126 = vpop.f32.mrf.mxu0
    %v2127 = vpop.f32.mrf.mxu0
    %2128 = vdwg.mxu0
    %v2129 = vadd.f32 %v2080, %v2123
    %v2130 = vadd.f32 %v2081, %v2125
    %v2131 = vmul.f32 %v41, %v2129
    %v2132 = vmul.f32 %v42, %v2130
    %v2133 = vtanh.pop %v2131
    %v2134 = vtanh.pop %v2132
    %v2135 = vmul.f32 %v41, %v2133
    %v2136 = vmul.f32 %v42, %v2134
    %v2137 = vadd.f32 %v2135, %v43
    %v2138 = vadd.f32 %v2136, %v44
    %v2139 = vmul.f32 %v2137, %v2076
    %v2140 = vmul.f32 %v2137, %v2138
    %2142 = vrot.lane.b32.xlu0 %v2140, 64
    %v2143 = vpop.permute.xlu0 %2142
    %v2145 = vadd.f32 %v2139, %v2143
    %v2146 = vtanh.pop %v2145
    %v2147 = vmul.f32 %v2138, %v2146
    %v2148 = vpack.c.bf16 %v2147, %v2147
    %v2149 = vld [vmem:[#allocation4 + $0x120] sm:$0xf]
    %v2150 = vld [vmem:[#allocation4 + $0x128] sm:$0xf]
    %v2151 = vld [vmem:[#allocation4 + $0x130] sm:$0xf]
    %v2152 = vld [vmem:[#allocation4 + $0x138] sm:$0xf]
    %v2153 = vld [vmem:[#allocation4 + $0x140] sm:$0xf]
    %v2154 = vld [vmem:[#allocation4 + $0x148] sm:$0xf]
    %v2155 = vld [vmem:[#allocation4 + $0x150] sm:$0xf]
    %v2156 = vld [vmem:[#allocation4 + $0x158] sm:$0xf]
    %v2157 = vld [vmem:[%s1] sm:$0xf]
    %v2158 = vld [vmem:[#allocation4 + $0x160] sm:$0xf]
    %v2159 = vld [vmem:[#allocation4 + $0x168] sm:$0xf]
    %v2162 = vunpack.c.l.b16 %v2158
    %v2163 = vunpack.c.l.b16 %v2159
    %v2164 = vpack.c.b16 %v2163, %v2162
    %vm2166 = vcmask 130048
    %v2168 = vsel %vm2166, %v2157, 0
    %2170 = vmatprep.subr.bf16.mxu0 0
    %2171 = vmatpush1.bf16.msra.mxu0 0
    %2172 = vmatprep.subr.bf16.mxu0 0
    %2173 = vmatpush1.bf16.msra.mxu0 0
    %2174 = vmatprep.subr.bf16.mxu0 0
    %2175 = vmatpush1.bf16.msra.mxu0 0
    %2176 = vmatprep.subr.bf16.mxu0 0
    %2177 = vmatpush1.bf16.msra.mxu0 0
    %2178 = vmatprep.subr.bf16.mxu0 0
    %2179 = vmatpush1.bf16.msra.mxu0 0
    %2180 = vmatprep.subr.bf16.mxu0 0
    %2181 = vmatpush1.bf16.msra.mxu0 0
    %2182 = vmatprep.subr.bf16.mxu0 0
    %2183 = vmatpush1.bf16.msra.mxu0 0
    %2184 = vmatprep.subr.bf16.mxu0 0
    %2185 = vmatpush1.bf16.msra.mxu0 %v2164
    %2186 = vmatprep.subr.bf16.mxu0 0
    %2187 = vmatpush2.bf16.msra.mxu0 0
    %2188 = vmatprep.subr.bf16.mxu0 0
    %2189 = vmatpush2.bf16.msra.mxu0 0
    %2190 = vmatprep.subr.bf16.mxu0 0
    %2191 = vmatpush2.bf16.msra.mxu0 0
    %2192 = vmatprep.subr.bf16.mxu0 0
    %2193 = vmatpush2.bf16.msra.mxu0 0
    %2194 = vmatprep.subr.bf16.mxu0 0
    %2195 = vmatpush2.bf16.msra.mxu0 0
    %2196 = vmatprep.subr.bf16.mxu0 0
    %2197 = vmatpush2.bf16.msra.mxu0 0
    %2198 = vmatprep.subr.bf16.mxu0 0
    %2199 = vmatpush2.bf16.msra.mxu0 0
    %2200 = vmatprep.subr.bf16.mxu0 0
    %2201 = vmatpush2.bf16.msra.mxu0 0
    %2202 = vmatprep.mubr.bf16.mxu0 0
    %2203 = vmatmul.mubr.bf16.gmra.mxu0 %v2168
    %v2204 = vpop.f32.mrf.mxu0
    %v2205 = vadd.f32 0.0, %v2204
    %v2206 = vpop.f32.mrf.mxu0
    %v2207 = vpop.f32.mrf.mxu0
    %v2208 = vpop.f32.mrf.mxu0
    %2209 = vdwg.mxu0
    %2211 = vrot.lane.b32.xlu0 %v2148, 64
    %v2212 = vpop.permute.xlu0 %2211
    %v2221 = vunpack.c.l.b16 %v2149
    %v2222 = vunpack.c.l.b16 %v2150
    %v2223 = vunpack.c.l.b16 %v2151
    %v2224 = vunpack.c.l.b16 %v2152
    %v2225 = vunpack.c.l.b16 %v2153
    %v2226 = vunpack.c.l.b16 %v2154
    %v2227 = vunpack.c.l.b16 %v2155
    %v2228 = vunpack.c.l.b16 %v2156
    %v2229 = vpack.c.b16 %v2222, %v2221
    %v2230 = vpack.c.b16 %v2224, %v2223
    %v2231 = vpack.c.b16 %v2226, %v2225
    %v2232 = vpack.c.b16 %v2228, %v2227
    %v2238 = vsel %vm311, %v2212, 0
    %2240 = vmatprep.subr.bf16.mxu0 0
    %2241 = vmatpush1.bf16.msra.mxu0 0
    %2242 = vmatprep.subr.bf16.mxu0 0
    %2243 = vmatpush1.bf16.msra.mxu0 0
    %2244 = vmatprep.subr.bf16.mxu0 0
    %2245 = vmatpush1.bf16.msra.mxu0 0
    %2246 = vmatprep.subr.bf16.mxu0 0
    %2247 = vmatpush1.bf16.msra.mxu0 0
    %2248 = vmatprep.subr.bf16.mxu0 0
    %2249 = vmatpush1.bf16.msra.mxu0 %v2232
    %2250 = vmatprep.subr.bf16.mxu0 0
    %2251 = vmatpush1.bf16.msra.mxu0 %v2231
    %2252 = vmatprep.subr.bf16.mxu0 0
    %2253 = vmatpush1.bf16.msra.mxu0 %v2230
    %2254 = vmatprep.subr.bf16.mxu0 0
    %2255 = vmatpush1.bf16.msra.mxu0 %v2229
    %2256 = vmatprep.subr.bf16.mxu0 0
    %2257 = vmatpush2.bf16.msra.mxu0 0
    %2258 = vmatprep.subr.bf16.mxu0 0
    %2259 = vmatpush2.bf16.msra.mxu0 0
    %2260 = vmatprep.subr.bf16.mxu0 0
    %2261 = vmatpush2.bf16.msra.mxu0 0
    %2262 = vmatprep.subr.bf16.mxu0 0
    %2263 = vmatpush2.bf16.msra.mxu0 0
    %2264 = vmatprep.subr.bf16.mxu0 0
    %2265 = vmatpush2.bf16.msra.mxu0 0
    %2266 = vmatprep.subr.bf16.mxu0 0
    %2267 = vmatpush2.bf16.msra.mxu0 0
    %2268 = vmatprep.subr.bf16.mxu0 0
    %2269 = vmatpush2.bf16.msra.mxu0 0
    %2270 = vmatprep.subr.bf16.mxu0 0
    %2271 = vmatpush2.bf16.msra.mxu0 0
    %2272 = vmatprep.mubr.bf16.mxu0 0
    %2273 = vmatmul.mubr.bf16.gmra.mxu0 %v2238
    %v2274 = vpop.f32.mrf.mxu0
    %v2275 = vadd.f32 %v2205, %v2274
    %v2276 = vpop.f32.mrf.mxu0
    %v2277 = vpop.f32.mrf.mxu0
    %v2278 = vpop.f32.mrf.mxu0
    %2279 = vdwg.mxu0
    %v2280 = vld [vmem:[%s3 + $0x20] ss:$0 sm:$0xff]
    %v2281 = vadd.f32 %v2275, %v2280
    %v2282 = vmax.f32 %v2281, 0.0
    %v2283 = vpack.c.bf16 %v2282, %v2282
    %v2284 = vld [vmem:[#allocation4 + $0x170] sm:$0xf]
    %v2285 = vld [vmem:[#allocation4 + $0x178] sm:$0xf]
    %v2286 = vld [vmem:[#allocation4 + $0x180] sm:$0xf]
    %v2287 = vld [vmem:[#allocation4 + $0x188] sm:$0xf]
    %v2288 = vld [vmem:[#allocation4 + $0x190] sm:$0xf]
    %v2289 = vld [vmem:[#allocation4 + $0x198] sm:$0xf]
    %v2290 = vld [vmem:[#allocation4 + $0x1a0] sm:$0xf]
    %v2291 = vld [vmem:[#allocation4 + $0x1a8] sm:$0xf]
    %v2292 = vld [vmem:[#allocation4 + $0x1b0] sm:$0xf]
    %v2293 = vld [vmem:[#allocation4 + $0x1b8] sm:$0xf]
    %v2294 = vld [vmem:[#allocation4 + $0x1c0] sm:$0xf]
    %v2295 = vld [vmem:[#allocation4 + $0x1c8] sm:$0xf]
    %v2296 = vld [vmem:[#allocation4 + $0x1d0] sm:$0xf]
    %v2297 = vld [vmem:[#allocation4 + $0x1d8] sm:$0xf]
    %v2298 = vld [vmem:[#allocation4 + $0x1e0] sm:$0xf]
    %v2299 = vld [vmem:[#allocation4 + $0x1e8] sm:$0xf]
    %v2300 = vld [vmem:[%s3 + $0x30] ss:$0 sm:$0xff]
    %v2317 = vunpack.c.l.b16 %v2284
    %v2318 = vunpack.c.l.b16 %v2285
    %v2319 = vunpack.c.l.b16 %v2286
    %v2320 = vunpack.c.l.b16 %v2287
    %v2321 = vunpack.c.l.b16 %v2288
    %v2322 = vunpack.c.l.b16 %v2289
    %v2323 = vunpack.c.l.b16 %v2290
    %v2324 = vunpack.c.l.b16 %v2291
    %v2325 = vunpack.c.l.b16 %v2292
    %v2326 = vunpack.c.l.b16 %v2293
    %v2327 = vunpack.c.l.b16 %v2294
    %v2328 = vunpack.c.l.b16 %v2295
    %v2329 = vunpack.c.l.b16 %v2296
    %v2330 = vunpack.c.l.b16 %v2297
    %v2331 = vunpack.c.l.b16 %v2298
    %v2332 = vunpack.c.l.b16 %v2299
    %v2333 = vpack.c.b16 %v2318, %v2317
    %v2334 = vpack.c.b16 %v2320, %v2319
    %v2335 = vpack.c.b16 %v2322, %v2321
    %v2336 = vpack.c.b16 %v2324, %v2323
    %v2337 = vpack.c.b16 %v2326, %v2325
    %v2338 = vpack.c.b16 %v2328, %v2327
    %v2339 = vpack.c.b16 %v2330, %v2329
    %v2340 = vpack.c.b16 %v2332, %v2331
    %2349 = vmatprep.subr.bf16.mxu0 0
    %2350 = vmatpush1.bf16.msra.mxu0 %v2340
    %2351 = vmatprep.subr.bf16.mxu0 0
    %2352 = vmatpush1.bf16.msra.mxu0 %v2339
    %2353 = vmatprep.subr.bf16.mxu0 0
    %2354 = vmatpush1.bf16.msra.mxu0 %v2338
    %2355 = vmatprep.subr.bf16.mxu0 0
    %2356 = vmatpush1.bf16.msra.mxu0 %v2337
    %2357 = vmatprep.subr.bf16.mxu0 0
    %2358 = vmatpush1.bf16.msra.mxu0 %v2336
    %2359 = vmatprep.subr.bf16.mxu0 0
    %2360 = vmatpush1.bf16.msra.mxu0 %v2335
    %2361 = vmatprep.subr.bf16.mxu0 0
    %2362 = vmatpush1.bf16.msra.mxu0 %v2334
    %2363 = vmatprep.subr.bf16.mxu0 0
    %2364 = vmatpush1.bf16.msra.mxu0 %v2333
    %2365 = vmatprep.subr.bf16.mxu0 0
    %2366 = vmatpush2.bf16.msra.mxu0 0
    %2367 = vmatprep.subr.bf16.mxu0 0
    %2368 = vmatpush2.bf16.msra.mxu0 0
    %2369 = vmatprep.subr.bf16.mxu0 0
    %2370 = vmatpush2.bf16.msra.mxu0 0
    %2371 = vmatprep.subr.bf16.mxu0 0
    %2372 = vmatpush2.bf16.msra.mxu0 0
    %2373 = vmatprep.subr.bf16.mxu0 0
    %2374 = vmatpush2.bf16.msra.mxu0 0
    %2375 = vmatprep.subr.bf16.mxu0 0
    %2376 = vmatpush2.bf16.msra.mxu0 0
    %2377 = vmatprep.subr.bf16.mxu0 0
    %2378 = vmatpush2.bf16.msra.mxu0 0
    %2379 = vmatprep.subr.bf16.mxu0 0
    %2380 = vmatpush2.bf16.msra.mxu0 0
    %2381 = vmatprep.mubr.bf16.mxu0 0
    %2382 = vmatmul.mubr.bf16.gmra.mxu0 %v2283
    %v2383 = vpop.f32.mrf.mxu0
    %v2384 = vadd.f32 %v2300, %v2383
    %v2385 = vpop.f32.mrf.mxu0
    %v2386 = vpop.f32.mrf.mxu0
    %v2387 = vpop.f32.mrf.mxu0
    %2388 = vdwg.mxu0
    %v2389 = vmul.f32 %v2384, 0.5
    %v2390 = vtanh.pop %v2389
    %v2391 = vmul.f32 %v2390, 0.5
    %v2392 = vadd.f32 %v2391, 0.5
    %v2393 = vmax.f32 %v2384, 0.0
    %v2394 = vand.u32 2147483647, %v2384
    %v2395 = vsub.f32 0.0, %v2394
    %v2396 = vmul.f32 %v2395, 1.442695
    %v2397 = vpow.pop %v2396
    %v2398 = vadd.f32 %v2397, 1.0
    %v2399 = vlog2.pop %v2398
    %v2400 = vmul.f32 %v2399, 0.6931472
    %v2401 = vmul.f32 -0.5, %v2397
    %v2402 = vadd.f32 %v2401, 1.0
    %v2403 = vmul.f32 %v2402, %v2397
    %v2404 = vand.u32 2147483647, %v2397
    %vm2405 = vcmp.lt.f32.partialorder %v2404, 0.0004427343
    %v2406 = vsel %vm2405, %v2403, %v2400
    %v2407 = vadd.f32 %v2393, %v2406
    %vm2408 = vcmp.eq.s32.totalorder %v33, 0
    %v2409 = vsel %vm2408, %v2392, %v2407
    %2410 = vst [vmem:[%s4] sm:$0xff] %v2409
    // Predicated region
    $region22: #{_forward.1} parent=1 // pred_check
      _
    $region23: #{_forward.1} parent=1 // pred_check_branch
      %2412 = sbr.rel (0) target = $region25
    $region24: #{_forward.1} parent=1 // pred_region
      _
    $region25: #{_forward.1} parent=1 // pred_fallthru
      _
    // Predicated region
    $region26: #{_forward.1} parent=1 // pred_check
      _
    $region27: #{_forward.1} parent=1 // pred_check_branch
      %2414 = sbr.rel (0) target = $region29
    $region28: #{_forward.1} parent=1 // pred_region
      _
    $region29: #{_forward.1} parent=1 // pred_fallthru
      _
    %2415 = vsyncpa [#allocation5], 1

</llo_original>
